<compile_context>
chip_gen: v5e
topology: v5e:2x2
jax: 0.10.0
libtpu: 0.0.40
codegen_flags: <defaults>
</compile_context>

<pallas_src>
import functools

import jax
import jax.numpy as jnp
from jax import lax
from jax.experimental import pallas as pl
from jax.experimental.pallas import tpu as pltpu

LANE = 128
SUBLANE = 8


def _dwconv_kernel(x_ref, w_ref, o_ref, *scratch, ksize, pad, w_off,
                   h_in, w_in, h_out, w_out, n_batch, row_strip, n_strips):
    """One (channel-block, batch-block, multiplier-replica) tile, channel-last.

    x_ref : (nb, H, W, Cb)          input planes, channels on the 128-lane axis
    w_ref : (K, K, Cb)              per-tap weight vectors for this replica
    o_ref : (nb, H_out, W_out, Cb)
    scratch (only when pad > 0):
      xp_ref: (H + 2*pad, w_off + W + pad, Cb) zero-halo plane in the input dtype;
              the interior lives at sublane offset `w_off` (multiple of 8).
    """
    cb = o_ref.shape[-1]
    # Hoist & upcast the K*K weight vectors once (loop constants for the strips).
    wv = [[w_ref[ki, kj, :].astype(jnp.float32) for kj in range(ksize)]
          for ki in range(ksize)]

    if ksize == 1:
        # 1x1 depthwise conv is a per-channel scale; no halo / strips needed.
        for b in range(n_batch):
            o_ref[b] = (x_ref[b].astype(jnp.float32) * wv[0][0]).astype(o_ref.dtype)
        return

    xp_ref = scratch[0]
    xp_cols = xp_ref.shape[1]

    # Zero only the halo strips (interior is fully overwritten per batch item).
    xp_ref[0:pad, :, :] = jnp.zeros((pad, xp_cols, cb), xp_ref.dtype)
    xp_ref[pad + h_in:, :, :] = jnp.zeros((pad, xp_cols, cb), xp_ref.dtype)
    xp_ref[pad:pad + h_in, 0:w_off, :] = jnp.zeros((h_in, w_off, cb), xp_ref.dtype)
    xp_ref[pad:pad + h_in, w_off + w_in:, :] = jnp.zeros((h_in, pad, cb), xp_ref.dtype)

    unroll = n_strips <= 8

    for b in range(n_batch):
        # Drop the plane into the scratch interior (same dtype: a pure copy).
        xp_ref[pad:pad + h_in, w_off:w_off + w_in, :] = x_ref[b]

        def strip_body(s, carry, b=b):
            # Clamp the last strip so it stays in-bounds (overlapping rows are
            # simply recomputed with identical values).
            r0 = jnp.minimum(s * row_strip, h_out - row_strip)
            acc = jnp.zeros((row_strip, w_out, cb), jnp.float32)
            # K is a small compile-time constant: fully unroll the taps. Shifts hit
            # only the leading (H) and sublane (W) axes; lanes (channels) never move.
            for ki in range(ksize):
                for kj in range(ksize):
                    c0 = w_off - pad + kj
                    win = xp_ref[pl.ds(r0 + ki, row_strip), c0:c0 + w_out, :]
                    acc = acc + win.astype(jnp.float32) * wv[ki][kj]
            o_ref[b, pl.ds(r0, row_strip), :, :] = acc.astype(o_ref.dtype)
            return carry

        lax.fori_loop(0, n_strips, strip_body, 0, unroll=unroll)


def depthwise_conv2d(x, weight, channel_multiplier):
    """x: (N, C, H, W); weight: (C * mult, 1, K, K). Returns (N, C*mult, H_out, W_out)."""
    n, c, h, w = x.shape
    mult = channel_multiplier
    c_out, _, k, _ = weight.shape
    assert c_out == c * mult
    pad = k // 2
    h_out = h + 2 * pad - k + 1
    w_out = w + 2 * pad - k + 1

    # ---- layout plumbing: input channels onto the 128-lane axis. The multiplier is
    #      handled by a grid axis (no jnp.repeat of the input in HBM). ----
    x_nhwc = jnp.transpose(x, (0, 2, 3, 1))                     # (N, H, W, C)
    c_pad = ((c + LANE - 1) // LANE) * LANE
    if c_pad != c:
        x_nhwc = jnp.pad(x_nhwc, ((0, 0), (0, 0), (0, 0), (0, c_pad - c)))

    # weight[o] with o = ci*mult + m  ->  (mult, K, K, C) per-replica tap vectors.
    w_r = weight[:, 0, :, :].reshape(c, mult, k, k)
    w_r = jnp.transpose(w_r, (1, 2, 3, 0))                      # (mult, K, K, C)
    if c_pad != c:
        w_r = jnp.pad(w_r, ((0, 0), (0, 0), (0, 0), (0, c_pad - c)))

    # Sublane-aligned column offset for the scratch interior store.
    w_off = ((pad + SUBLANE - 1) // SUBLANE) * SUBLANE if pad > 0 else 0
    xp_cols = w_off + w + pad

    # ---- generation-aware VMEM budget ----
    try:
        vmem_cap = int(pltpu.get_tpu_info().vmem_capacity_bytes)
    except Exception:
        vmem_cap = 64 * 1024 * 1024                             # conservative (v7x)
    vmem_limit = min(int(vmem_cap * 0.75), 112 * 1024 * 1024)
    budget = int(vmem_limit * 0.7)                              # headroom

    x_item = x.dtype.itemsize
    w_item = weight.dtype.itemsize

    def vmem_bytes(c_blk, nb):
        return (2 * nb * h * w * c_blk * x_item                 # input (dbl-buffered)
                + 2 * k * k * c_blk * w_item                    # weights
                + 2 * nb * h_out * w_out * c_blk * x_item       # output
                + ((h + 2 * pad) * xp_cols * c_blk * x_item if pad > 0 else 0))

    # Largest multiple of 128 dividing c_pad that fits; then largest batch block.
    c_blk = LANE
    for cand in range(c_pad, 0, -LANE):
        if c_pad % cand == 0 and vmem_bytes(cand, 1) <= budget:
            c_blk = cand
            break
    nb = 1
    for cand in range(min(n, 8), 0, -1):
        if n % cand == 0 and vmem_bytes(c_blk, cand) <= budget:
            nb = cand
            break
    num_cb = c_pad // c_blk
    n_blk = n // nb
    # TODO(synk): for very large H*W add a halo'd spatial row-block grid axis; for
    # typical feature-map sizes a full (H, W, c_blk) plane fits VMEM comfortably.

    # Row-strip size so the f32 accumulator stays vreg-resident (<= ~16 vregs).
    vregs_per_row = ((w_out + SUBLANE - 1) // SUBLANE) * (c_blk // LANE)
    row_strip = max(1, min(h_out, 16 // max(1, vregs_per_row)))
    n_strips = -(-h_out // row_strip)

    kernel = functools.partial(
        _dwconv_kernel, ksize=k, pad=pad, w_off=w_off, h_in=h, w_in=w,
        h_out=h_out, w_out=w_out, n_batch=nb, row_strip=row_strip,
        n_strips=n_strips)

    scratch_shapes = []
    if pad > 0:
        scratch_shapes.append(pltpu.VMEM((h + 2 * pad, xp_cols, c_blk), x.dtype))

    out_p = pl.pallas_call(
        kernel,
        out_shape=jax.ShapeDtypeStruct((mult, n, h_out, w_out, c_pad), x.dtype),
        grid_spec=pltpu.PrefetchScalarGridSpec(
            num_scalar_prefetch=0,
            # channel block outermost; multiplier innermost so the input block is
            # reused (not re-DMA'd) across the `mult` replicas.
            grid=(num_cb, n_blk, mult),
            in_specs=[
                pl.BlockSpec((nb, h, w, c_blk), lambda ci, ni, mi: (ni, 0, 0, ci)),
                pl.BlockSpec((None, k, k, c_blk), lambda ci, ni, mi: (mi, 0, 0, ci)),
            ],
            out_specs=pl.BlockSpec((None, nb, h_out, w_out, c_blk),
                                   lambda ci, ni, mi: (mi, ni, 0, 0, ci)),
            scratch_shapes=scratch_shapes,
        ),
        compiler_params=pltpu.CompilerParams(
            dimension_semantics=("parallel", "parallel", "parallel"),
            vmem_limit_bytes=vmem_limit,
        ),
    )(x_nhwc, w_r)

    out_p = out_p[..., :c]                                      # drop lane padding
    # out_p[m, n, y, x, ci] -> out[n, ci*mult + m, y, x]
    out = jnp.transpose(out_p, (1, 4, 0, 2, 3)).reshape(n, c * mult, h_out, w_out)
    return out


def init_kernel(key, in_channels, kernel_size, channel_multiplier):
    """Kaiming-uniform (a=sqrt(5)) init, matching nn.init.kaiming_uniform_ bounds."""
    out_channels = in_channels * channel_multiplier
    fan_in = 1 * kernel_size * kernel_size
    bound = 1.0 / (fan_in ** 0.5)
    return jax.random.uniform(
        key, (out_channels, 1, kernel_size, kernel_size),
        dtype=jnp.float32, minval=-bound, maxval=bound)


def _reference_depthwise(x, weight, channel_multiplier):
    """Pure-JAX reference (lax.conv_general_dilated with feature_group_count)."""
    c = x.shape[1]
    k = weight.shape[-1]
    pad = k // 2
    return jax.lax.conv_general_dilated(
        x, weight, window_strides=(1, 1),
        padding=((pad, pad), (pad, pad)),
        dimension_numbers=("NCHW", "OIHW", "NCHW"),
        feature_group_count=c)


if __name__ == "__main__":
    key = jax.random.PRNGKey(0)
    kx, kw = jax.random.split(key)

    N, C, H, W = 2, 4, 16, 16
    K = 3
    MULT = 2

    x = jax.random.normal(kx, (N, C, H, W), dtype=jnp.float32)
    weight = init_kernel(kw, C, K, MULT)

    out = depthwise_conv2d(x, weight, MULT)
    out = jax.block_until_ready(out)

    ref = _reference_depthwise(x, weight, MULT)
    assert out.shape == ref.shape, (out.shape, ref.shape)
    assert jnp.allclose(out, ref, atol=1e-5, rtol=1e-5), "mismatch vs reference"

    print("KERNEL_OK")
</pallas_src>

<mosaic_0001>
module attributes {stable_mosaic.version = 11 : i64} {
  func.func @_dwconv_kernel(%arg0: i32, %arg1: i32, %arg2: i32, %arg3: memref<2x16x16x128xf32, #tpu.memory_space<vmem>>, %arg4: memref<1x3x3x128xf32, #tpu.memory_space<vmem>>, %arg5: memref<1x2x16x16x128xf32, #tpu.memory_space<vmem>>, %arg6: memref<18x25x128xf32, #tpu.memory_space<vmem>>) attributes {dimension_semantics = [#tpu.dimension_semantics<parallel>, #tpu.dimension_semantics<parallel>, #tpu.dimension_semantics<parallel>], iteration_bounds = array<i64: 1, 1, 2>, scalar_prefetch = 0 : i64, scratch_operands = 1 : i64, tpu.core_type = #tpu.core_type<tc>, window_params = [{transform_indices = @transform_0, window_bounds = array<i64: 2, 16, 16, 128>}, {transform_indices = @transform_1, window_bounds = array<i64: 1, 3, 3, 128>}, {transform_indices = @transform_2, window_bounds = array<i64: 1, 2, 16, 16, 128>}]} {
    %c0 = arith.constant 0 : index
    %c0_0 = arith.constant 0 : index
    %c0_1 = arith.constant 0 : index
    %c0_2 = arith.constant 0 : index
    %0 = vector.load %arg4[%c0, %c0_0, %c0_1, %c0_2] : memref<1x3x3x128xf32, #tpu.memory_space<vmem>>, vector<1x1x1x128xf32>
    %1 = vector.shape_cast %0 : vector<1x1x1x128xf32> to vector<128xf32>
    %c0_3 = arith.constant 0 : index
    %c0_4 = arith.constant 0 : index
    %c1 = arith.constant 1 : index
    %c0_5 = arith.constant 0 : index
    %2 = vector.load %arg4[%c0_3, %c0_4, %c1, %c0_5] : memref<1x3x3x128xf32, #tpu.memory_space<vmem>>, vector<1x1x1x128xf32>
    %3 = vector.shape_cast %2 : vector<1x1x1x128xf32> to vector<128xf32>
    %c0_6 = arith.constant 0 : index
    %c0_7 = arith.constant 0 : index
    %c2 = arith.constant 2 : index
    %c0_8 = arith.constant 0 : index
    %4 = vector.load %arg4[%c0_6, %c0_7, %c2, %c0_8] : memref<1x3x3x128xf32, #tpu.memory_space<vmem>>, vector<1x1x1x128xf32>
    %5 = vector.shape_cast %4 : vector<1x1x1x128xf32> to vector<128xf32>
    %c0_9 = arith.constant 0 : index
    %c1_10 = arith.constant 1 : index
    %c0_11 = arith.constant 0 : index
    %c0_12 = arith.constant 0 : index
    %6 = vector.load %arg4[%c0_9, %c1_10, %c0_11, %c0_12] : memref<1x3x3x128xf32, #tpu.memory_space<vmem>>, vector<1x1x1x128xf32>
    %7 = vector.shape_cast %6 : vector<1x1x1x128xf32> to vector<128xf32>
    %c0_13 = arith.constant 0 : index
    %c1_14 = arith.constant 1 : index
    %c1_15 = arith.constant 1 : index
    %c0_16 = arith.constant 0 : index
    %8 = vector.load %arg4[%c0_13, %c1_14, %c1_15, %c0_16] : memref<1x3x3x128xf32, #tpu.memory_space<vmem>>, vector<1x1x1x128xf32>
    %9 = vector.shape_cast %8 : vector<1x1x1x128xf32> to vector<128xf32>
    %c0_17 = arith.constant 0 : index
    %c1_18 = arith.constant 1 : index
    %c2_19 = arith.constant 2 : index
    %c0_20 = arith.constant 0 : index
    %10 = vector.load %arg4[%c0_17, %c1_18, %c2_19, %c0_20] : memref<1x3x3x128xf32, #tpu.memory_space<vmem>>, vector<1x1x1x128xf32>
    %11 = vector.shape_cast %10 : vector<1x1x1x128xf32> to vector<128xf32>
    %c0_21 = arith.constant 0 : index
    %c2_22 = arith.constant 2 : index
    %c0_23 = arith.constant 0 : index
    %c0_24 = arith.constant 0 : index
    %12 = vector.load %arg4[%c0_21, %c2_22, %c0_23, %c0_24] : memref<1x3x3x128xf32, #tpu.memory_space<vmem>>, vector<1x1x1x128xf32>
    %13 = vector.shape_cast %12 : vector<1x1x1x128xf32> to vector<128xf32>
    %c0_25 = arith.constant 0 : index
    %c2_26 = arith.constant 2 : index
    %c1_27 = arith.constant 1 : index
    %c0_28 = arith.constant 0 : index
    %14 = vector.load %arg4[%c0_25, %c2_26, %c1_27, %c0_28] : memref<1x3x3x128xf32, #tpu.memory_space<vmem>>, vector<1x1x1x128xf32>
    %15 = vector.shape_cast %14 : vector<1x1x1x128xf32> to vector<128xf32>
    %c0_29 = arith.constant 0 : index
    %c2_30 = arith.constant 2 : index
    %c2_31 = arith.constant 2 : index
    %c0_32 = arith.constant 0 : index
    %16 = vector.load %arg4[%c0_29, %c2_30, %c2_31, %c0_32] : memref<1x3x3x128xf32, #tpu.memory_space<vmem>>, vector<1x1x1x128xf32>
    %17 = vector.shape_cast %16 : vector<1x1x1x128xf32> to vector<128xf32>
    %cst = arith.constant 0.000000e+00 : f32
    %18 = vector.broadcast %cst : f32 to vector<1x25x128xf32>
    %c0_33 = arith.constant 0 : index
    %c0_34 = arith.constant 0 : index
    %c0_35 = arith.constant 0 : index
    %19 = vector.load %arg6[%c0_33, %c0_34, %c0_35] : memref<18x25x128xf32, #tpu.memory_space<vmem>>, vector<1x25x128xf32>
    tpu.vector_store %arg6[%c0_33, %c0_34, %c0_35], %18 {strides = array<i32>} : memref<18x25x128xf32, #tpu.memory_space<vmem>>, vector<1x25x128xf32>,
    %cst_36 = arith.constant 0.000000e+00 : f32
    %20 = vector.broadcast %cst_36 : f32 to vector<1x25x128xf32>
    %c17 = arith.constant 17 : index
    %c0_37 = arith.constant 0 : index
    %c0_38 = arith.constant 0 : index
    %21 = vector.load %arg6[%c17, %c0_37, %c0_38] : memref<18x25x128xf32, #tpu.memory_space<vmem>>, vector<1x25x128xf32>
    tpu.vector_store %arg6[%c17, %c0_37, %c0_38], %20 {strides = array<i32>} : memref<18x25x128xf32, #tpu.memory_space<vmem>>, vector<1x25x128xf32>,
    %cst_39 = arith.constant 0.000000e+00 : f32
    %22 = vector.broadcast %cst_39 : f32 to vector<16x8x128xf32>
    %c1_40 = arith.constant 1 : index
    %c0_41 = arith.constant 0 : index
    %c0_42 = arith.constant 0 : index
    %23 = vector.load %arg6[%c1_40, %c0_41, %c0_42] : memref<18x25x128xf32, #tpu.memory_space<vmem>>, vector<16x8x128xf32>
    tpu.vector_store %arg6[%c1_40, %c0_41, %c0_42], %22 {strides = array<i32>} : memref<18x25x128xf32, #tpu.memory_space<vmem>>, vector<16x8x128xf32>,
    %cst_43 = arith.constant 0.000000e+00 : f32
    %24 = vector.broadcast %cst_43 : f32 to vector<16x1x128xf32>
    %c1_44 = arith.constant 1 : index
    %c24 = arith.constant 24 : index
    %c0_45 = arith.constant 0 : index
    %25 = vector.load %arg6[%c1_44, %c24, %c0_45] : memref<18x25x128xf32, #tpu.memory_space<vmem>>, vector<16x1x128xf32>
    tpu.vector_store %arg6[%c1_44, %c24, %c0_45], %24 {strides = array<i32>} : memref<18x25x128xf32, #tpu.memory_space<vmem>>, vector<16x1x128xf32>,
    %c0_46 = arith.constant 0 : index
    %c0_47 = arith.constant 0 : index
    %c0_48 = arith.constant 0 : index
    %c0_49 = arith.constant 0 : index
    %26 = vector.load %arg3[%c0_46, %c0_47, %c0_48, %c0_49] : memref<2x16x16x128xf32, #tpu.memory_space<vmem>>, vector<1x16x16x128xf32>
    %27 = vector.shape_cast %26 : vector<1x16x16x128xf32> to vector<16x16x128xf32>
    %c1_50 = arith.constant 1 : index
    %c8 = arith.constant 8 : index
    %c0_51 = arith.constant 0 : index
    %28 = vector.load %arg6[%c1_50, %c8, %c0_51] : memref<18x25x128xf32, #tpu.memory_space<vmem>>, vector<16x16x128xf32>
    tpu.vector_store %arg6[%c1_50, %c8, %c0_51], %27 {strides = array<i32>} : memref<18x25x128xf32, #tpu.memory_space<vmem>>, vector<16x16x128xf32>,
    %c0_i32 = arith.constant 0 : i32
    %c8_i32 = arith.constant 8 : i32
    %29 = arith.muli %c0_i32, %c8_i32 : i32
    %c8_i32_52 = arith.constant 8 : i32
    %30 = arith.minsi %29, %c8_i32_52 : i32
    %cst_53 = arith.constant 0.000000e+00 : f32
    %31 = vector.broadcast %cst_53 : f32 to vector<8x16x128xf32>
    %c0_i32_54 = arith.constant 0 : i32
    %32 = arith.addi %30, %c0_i32_54 : i32
    %33 = arith.index_cast %32 : i32 to index
    %c7 = arith.constant 7 : index
    %c0_55 = arith.constant 0 : index
    %34 = vector.load %arg6[%33, %c7, %c0_55] : memref<18x25x128xf32, #tpu.memory_space<vmem>>, vector<8x16x128xf32>
    %35 = vector.shape_cast %1 : vector<128xf32> to vector<1x1x128xf32>
    %36 = vector.broadcast %35 : vector<1x1x128xf32> to vector<8x16x128xf32>
    %37 = arith.mulf %34, %36 : vector<8x16x128xf32>
    %38 = arith.addf %31, %37 : vector<8x16x128xf32>
    %c0_i32_56 = arith.constant 0 : i32
    %39 = arith.addi %30, %c0_i32_56 : i32
    %40 = arith.index_cast %39 : i32 to index
    %c8_57 = arith.constant 8 : index
    %c0_58 = arith.constant 0 : index
    %41 = vector.load %arg6[%40, %c8_57, %c0_58] : memref<18x25x128xf32, #tpu.memory_space<vmem>>, vector<8x16x128xf32>
    %42 = vector.shape_cast %3 : vector<128xf32> to vector<1x1x128xf32>
    %43 = vector.broadcast %42 : vector<1x1x128xf32> to vector<8x16x128xf32>
    %44 = arith.mulf %41, %43 : vector<8x16x128xf32>
    %45 = arith.addf %38, %44 : vector<8x16x128xf32>
    %c0_i32_59 = arith.constant 0 : i32
    %46 = arith.addi %30, %c0_i32_59 : i32
    %47 = arith.index_cast %46 : i32 to index
    %c9 = arith.constant 9 : index
    %c0_60 = arith.constant 0 : index
    %48 = vector.load %arg6[%47, %c9, %c0_60] : memref<18x25x128xf32, #tpu.memory_space<vmem>>, vector<8x16x128xf32>
    %49 = vector.shape_cast %5 : vector<128xf32> to vector<1x1x128xf32>
    %50 = vector.broadcast %49 : vector<1x1x128xf32> to vector<8x16x128xf32>
    %51 = arith.mulf %48, %50 : vector<8x16x128xf32>
    %52 = arith.addf %45, %51 : vector<8x16x128xf32>
    %c1_i32 = arith.constant 1 : i32
    %53 = arith.addi %30, %c1_i32 : i32
    %54 = arith.index_cast %53 : i32 to index
    %c7_61 = arith.constant 7 : index
    %c0_62 = arith.constant 0 : index
    %55 = vector.load %arg6[%54, %c7_61, %c0_62] : memref<18x25x128xf32, #tpu.memory_space<vmem>>, vector<8x16x128xf32>
    %56 = vector.shape_cast %7 : vector<128xf32> to vector<1x1x128xf32>
    %57 = vector.broadcast %56 : vector<1x1x128xf32> to vector<8x16x128xf32>
    %58 = arith.mulf %55, %57 : vector<8x16x128xf32>
    %59 = arith.addf %52, %58 : vector<8x16x128xf32>
    %c1_i32_63 = arith.constant 1 : i32
    %60 = arith.addi %30, %c1_i32_63 : i32
    %61 = arith.index_cast %60 : i32 to index
    %c8_64 = arith.constant 8 : index
    %c0_65 = arith.constant 0 : index
    %62 = vector.load %arg6[%61, %c8_64, %c0_65] : memref<18x25x128xf32, #tpu.memory_space<vmem>>, vector<8x16x128xf32>
    %63 = vector.shape_cast %9 : vector<128xf32> to vector<1x1x128xf32>
    %64 = vector.broadcast %63 : vector<1x1x128xf32> to vector<8x16x128xf32>
    %65 = arith.mulf %62, %64 : vector<8x16x128xf32>
    %66 = arith.addf %59, %65 : vector<8x16x128xf32>
    %c1_i32_66 = arith.constant 1 : i32
    %67 = arith.addi %30, %c1_i32_66 : i32
    %68 = arith.index_cast %67 : i32 to index
    %c9_67 = arith.constant 9 : index
    %c0_68 = arith.constant 0 : index
    %69 = vector.load %arg6[%68, %c9_67, %c0_68] : memref<18x25x128xf32, #tpu.memory_space<vmem>>, vector<8x16x128xf32>
    %70 = vector.shape_cast %11 : vector<128xf32> to vector<1x1x128xf32>
    %71 = vector.broadcast %70 : vector<1x1x128xf32> to vector<8x16x128xf32>
    %72 = arith.mulf %69, %71 : vector<8x16x128xf32>
    %73 = arith.addf %66, %72 : vector<8x16x128xf32>
    %c2_i32 = arith.constant 2 : i32
    %74 = arith.addi %30, %c2_i32 : i32
    %75 = arith.index_cast %74 : i32 to index
    %c7_69 = arith.constant 7 : index
    %c0_70 = arith.constant 0 : index
    %76 = vector.load %arg6[%75, %c7_69, %c0_70] : memref<18x25x128xf32, #tpu.memory_space<vmem>>, vector<8x16x128xf32>
    %77 = vector.shape_cast %13 : vector<128xf32> to vector<1x1x128xf32>
    %78 = vector.broadcast %77 : vector<1x1x128xf32> to vector<8x16x128xf32>
    %79 = arith.mulf %76, %78 : vector<8x16x128xf32>
    %80 = arith.addf %73, %79 : vector<8x16x128xf32>
    %c2_i32_71 = arith.constant 2 : i32
    %81 = arith.addi %30, %c2_i32_71 : i32
    %82 = arith.index_cast %81 : i32 to index
    %c8_72 = arith.constant 8 : index
    %c0_73 = arith.constant 0 : index
    %83 = vector.load %arg6[%82, %c8_72, %c0_73] : memref<18x25x128xf32, #tpu.memory_space<vmem>>, vector<8x16x128xf32>
    %84 = vector.shape_cast %15 : vector<128xf32> to vector<1x1x128xf32>
    %85 = vector.broadcast %84 : vector<1x1x128xf32> to vector<8x16x128xf32>
    %86 = arith.mulf %83, %85 : vector<8x16x128xf32>
    %87 = arith.addf %80, %86 : vector<8x16x128xf32>
    %c2_i32_74 = arith.constant 2 : i32
    %88 = arith.addi %30, %c2_i32_74 : i32
    %89 = arith.index_cast %88 : i32 to index
    %c9_75 = arith.constant 9 : index
    %c0_76 = arith.constant 0 : index
    %90 = vector.load %arg6[%89, %c9_75, %c0_76] : memref<18x25x128xf32, #tpu.memory_space<vmem>>, vector<8x16x128xf32>
    %91 = vector.shape_cast %17 : vector<128xf32> to vector<1x1x128xf32>
    %92 = vector.broadcast %91 : vector<1x1x128xf32> to vector<8x16x128xf32>
    %93 = arith.mulf %90, %92 : vector<8x16x128xf32>
    %94 = arith.addf %87, %93 : vector<8x16x128xf32>
    %c0_77 = arith.constant 0 : index
    %c0_78 = arith.constant 0 : index
    %95 = arith.index_cast %30 : i32 to index
    %c0_79 = arith.constant 0 : index
    %c0_80 = arith.constant 0 : index
    %96 = vector.load %arg5[%c0_77, %c0_78, %95, %c0_79, %c0_80] : memref<1x2x16x16x128xf32, #tpu.memory_space<vmem>>, vector<1x1x8x16x128xf32>
    %97 = vector.shape_cast %96 : vector<1x1x8x16x128xf32> to vector<8x16x128xf32>
    %98 = vector.shape_cast %94 : vector<8x16x128xf32> to vector<1x1x8x16x128xf32>
    tpu.vector_store %arg5[%c0_77, %c0_78, %95, %c0_79, %c0_80], %98 {strides = array<i32>} : memref<1x2x16x16x128xf32, #tpu.memory_space<vmem>>, vector<1x1x8x16x128xf32>,
    %c1_i32_81 = arith.constant 1 : i32
    %c8_i32_82 = arith.constant 8 : i32
    %99 = arith.muli %c1_i32_81, %c8_i32_82 : i32
    %c8_i32_83 = arith.constant 8 : i32
    %100 = arith.minsi %99, %c8_i32_83 : i32
    %cst_84 = arith.constant 0.000000e+00 : f32
    %101 = vector.broadcast %cst_84 : f32 to vector<8x16x128xf32>
    %c0_i32_85 = arith.constant 0 : i32
    %102 = arith.addi %100, %c0_i32_85 : i32
    %103 = arith.index_cast %102 : i32 to index
    %c7_86 = arith.constant 7 : index
    %c0_87 = arith.constant 0 : index
    %104 = vector.load %arg6[%103, %c7_86, %c0_87] : memref<18x25x128xf32, #tpu.memory_space<vmem>>, vector<8x16x128xf32>
    %105 = vector.shape_cast %1 : vector<128xf32> to vector<1x1x128xf32>
    %106 = vector.broadcast %105 : vector<1x1x128xf32> to vector<8x16x128xf32>
    %107 = arith.mulf %104, %106 : vector<8x16x128xf32>
    %108 = arith.addf %101, %107 : vector<8x16x128xf32>
    %c0_i32_88 = arith.constant 0 : i32
    %109 = arith.addi %100, %c0_i32_88 : i32
    %110 = arith.index_cast %109 : i32 to index
    %c8_89 = arith.constant 8 : index
    %c0_90 = arith.constant 0 : index
    %111 = vector.load %arg6[%110, %c8_89, %c0_90] : memref<18x25x128xf32, #tpu.memory_space<vmem>>, vector<8x16x128xf32>
    %112 = vector.shape_cast %3 : vector<128xf32> to vector<1x1x128xf32>
    %113 = vector.broadcast %112 : vector<1x1x128xf32> to vector<8x16x128xf32>
    %114 = arith.mulf %111, %113 : vector<8x16x128xf32>
    %115 = arith.addf %108, %114 : vector<8x16x128xf32>
    %c0_i32_91 = arith.constant 0 : i32
    %116 = arith.addi %100, %c0_i32_91 : i32
    %117 = arith.index_cast %116 : i32 to index
    %c9_92 = arith.constant 9 : index
    %c0_93 = arith.constant 0 : index
    %118 = vector.load %arg6[%117, %c9_92, %c0_93] : memref<18x25x128xf32, #tpu.memory_space<vmem>>, vector<8x16x128xf32>
    %119 = vector.shape_cast %5 : vector<128xf32> to vector<1x1x128xf32>
    %120 = vector.broadcast %119 : vector<1x1x128xf32> to vector<8x16x128xf32>
    %121 = arith.mulf %118, %120 : vector<8x16x128xf32>
    %122 = arith.addf %115, %121 : vector<8x16x128xf32>
    %c1_i32_94 = arith.constant 1 : i32
    %123 = arith.addi %100, %c1_i32_94 : i32
    %124 = arith.index_cast %123 : i32 to index
    %c7_95 = arith.constant 7 : index
    %c0_96 = arith.constant 0 : index
    %125 = vector.load %arg6[%124, %c7_95, %c0_96] : memref<18x25x128xf32, #tpu.memory_space<vmem>>, vector<8x16x128xf32>
    %126 = vector.shape_cast %7 : vector<128xf32> to vector<1x1x128xf32>
    %127 = vector.broadcast %126 : vector<1x1x128xf32> to vector<8x16x128xf32>
    %128 = arith.mulf %125, %127 : vector<8x16x128xf32>
    %129 = arith.addf %122, %128 : vector<8x16x128xf32>
    %c1_i32_97 = arith.constant 1 : i32
    %130 = arith.addi %100, %c1_i32_97 : i32
    %131 = arith.index_cast %130 : i32 to index
    %c8_98 = arith.constant 8 : index
    %c0_99 = arith.constant 0 : index
    %132 = vector.load %arg6[%131, %c8_98, %c0_99] : memref<18x25x128xf32, #tpu.memory_space<vmem>>, vector<8x16x128xf32>
    %133 = vector.shape_cast %9 : vector<128xf32> to vector<1x1x128xf32>
    %134 = vector.broadcast %133 : vector<1x1x128xf32> to vector<8x16x128xf32>
    %135 = arith.mulf %132, %134 : vector<8x16x128xf32>
    %136 = arith.addf %129, %135 : vector<8x16x128xf32>
    %c1_i32_100 = arith.constant 1 : i32
    %137 = arith.addi %100, %c1_i32_100 : i32
    %138 = arith.index_cast %137 : i32 to index
    %c9_101 = arith.constant 9 : index
    %c0_102 = arith.constant 0 : index
    %139 = vector.load %arg6[%138, %c9_101, %c0_102] : memref<18x25x128xf32, #tpu.memory_space<vmem>>, vector<8x16x128xf32>
    %140 = vector.shape_cast %11 : vector<128xf32> to vector<1x1x128xf32>
    %141 = vector.broadcast %140 : vector<1x1x128xf32> to vector<8x16x128xf32>
    %142 = arith.mulf %139, %141 : vector<8x16x128xf32>
    %143 = arith.addf %136, %142 : vector<8x16x128xf32>
    %c2_i32_103 = arith.constant 2 : i32
    %144 = arith.addi %100, %c2_i32_103 : i32
    %145 = arith.index_cast %144 : i32 to index
    %c7_104 = arith.constant 7 : index
    %c0_105 = arith.constant 0 : index
    %146 = vector.load %arg6[%145, %c7_104, %c0_105] : memref<18x25x128xf32, #tpu.memory_space<vmem>>, vector<8x16x128xf32>
    %147 = vector.shape_cast %13 : vector<128xf32> to vector<1x1x128xf32>
    %148 = vector.broadcast %147 : vector<1x1x128xf32> to vector<8x16x128xf32>
    %149 = arith.mulf %146, %148 : vector<8x16x128xf32>
    %150 = arith.addf %143, %149 : vector<8x16x128xf32>
    %c2_i32_106 = arith.constant 2 : i32
    %151 = arith.addi %100, %c2_i32_106 : i32
    %152 = arith.index_cast %151 : i32 to index
    %c8_107 = arith.constant 8 : index
    %c0_108 = arith.constant 0 : index
    %153 = vector.load %arg6[%152, %c8_107, %c0_108] : memref<18x25x128xf32, #tpu.memory_space<vmem>>, vector<8x16x128xf32>
    %154 = vector.shape_cast %15 : vector<128xf32> to vector<1x1x128xf32>
    %155 = vector.broadcast %154 : vector<1x1x128xf32> to vector<8x16x128xf32>
    %156 = arith.mulf %153, %155 : vector<8x16x128xf32>
    %157 = arith.addf %150, %156 : vector<8x16x128xf32>
    %c2_i32_109 = arith.constant 2 : i32
    %158 = arith.addi %100, %c2_i32_109 : i32
    %159 = arith.index_cast %158 : i32 to index
    %c9_110 = arith.constant 9 : index
    %c0_111 = arith.constant 0 : index
    %160 = vector.load %arg6[%159, %c9_110, %c0_111] : memref<18x25x128xf32, #tpu.memory_space<vmem>>, vector<8x16x128xf32>
    %161 = vector.shape_cast %17 : vector<128xf32> to vector<1x1x128xf32>
    %162 = vector.broadcast %161 : vector<1x1x128xf32> to vector<8x16x128xf32>
    %163 = arith.mulf %160, %162 : vector<8x16x128xf32>
    %164 = arith.addf %157, %163 : vector<8x16x128xf32>
    %c0_112 = arith.constant 0 : index
    %c0_113 = arith.constant 0 : index
    %165 = arith.index_cast %100 : i32 to index
    %c0_114 = arith.constant 0 : index
    %c0_115 = arith.constant 0 : index
    %166 = vector.load %arg5[%c0_112, %c0_113, %165, %c0_114, %c0_115] : memref<1x2x16x16x128xf32, #tpu.memory_space<vmem>>, vector<1x1x8x16x128xf32>
    %167 = vector.shape_cast %166 : vector<1x1x8x16x128xf32> to vector<8x16x128xf32>
    %168 = vector.shape_cast %164 : vector<8x16x128xf32> to vector<1x1x8x16x128xf32>
    tpu.vector_store %arg5[%c0_112, %c0_113, %165, %c0_114, %c0_115], %168 {strides = array<i32>} : memref<1x2x16x16x128xf32, #tpu.memory_space<vmem>>, vector<1x1x8x16x128xf32>,
    %c2_i32_116 = arith.constant 2 : i32
    %c1_117 = arith.constant 1 : index
    %c0_118 = arith.constant 0 : index
    %c0_119 = arith.constant 0 : index
    %c0_120 = arith.constant 0 : index
    %169 = vector.load %arg3[%c1_117, %c0_118, %c0_119, %c0_120] : memref<2x16x16x128xf32, #tpu.memory_space<vmem>>, vector<1x16x16x128xf32>
    %170 = vector.shape_cast %169 : vector<1x16x16x128xf32> to vector<16x16x128xf32>
    %c1_121 = arith.constant 1 : index
    %c8_122 = arith.constant 8 : index
    %c0_123 = arith.constant 0 : index
    %171 = vector.load %arg6[%c1_121, %c8_122, %c0_123] : memref<18x25x128xf32, #tpu.memory_space<vmem>>, vector<16x16x128xf32>
    tpu.vector_store %arg6[%c1_121, %c8_122, %c0_123], %170 {strides = array<i32>} : memref<18x25x128xf32, #tpu.memory_space<vmem>>, vector<16x16x128xf32>,
    %c0_i32_124 = arith.constant 0 : i32
    %c8_i32_125 = arith.constant 8 : i32
    %172 = arith.muli %c0_i32_124, %c8_i32_125 : i32
    %c8_i32_126 = arith.constant 8 : i32
    %173 = arith.minsi %172, %c8_i32_126 : i32
    %cst_127 = arith.constant 0.000000e+00 : f32
    %174 = vector.broadcast %cst_127 : f32 to vector<8x16x128xf32>
    %c0_i32_128 = arith.constant 0 : i32
    %175 = arith.addi %173, %c0_i32_128 : i32
    %176 = arith.index_cast %175 : i32 to index
    %c7_129 = arith.constant 7 : index
    %c0_130 = arith.constant 0 : index
    %177 = vector.load %arg6[%176, %c7_129, %c0_130] : memref<18x25x128xf32, #tpu.memory_space<vmem>>, vector<8x16x128xf32>
    %178 = vector.shape_cast %1 : vector<128xf32> to vector<1x1x128xf32>
    %179 = vector.broadcast %178 : vector<1x1x128xf32> to vector<8x16x128xf32>
    %180 = arith.mulf %177, %179 : vector<8x16x128xf32>
    %181 = arith.addf %174, %180 : vector<8x16x128xf32>
    %c0_i32_131 = arith.constant 0 : i32
    %182 = arith.addi %173, %c0_i32_131 : i32
    %183 = arith.index_cast %182 : i32 to index
    %c8_132 = arith.constant 8 : index
    %c0_133 = arith.constant 0 : index
    %184 = vector.load %arg6[%183, %c8_132, %c0_133] : memref<18x25x128xf32, #tpu.memory_space<vmem>>, vector<8x16x128xf32>
    %185 = vector.shape_cast %3 : vector<128xf32> to vector<1x1x128xf32>
    %186 = vector.broadcast %185 : vector<1x1x128xf32> to vector<8x16x128xf32>
    %187 = arith.mulf %184, %186 : vector<8x16x128xf32>
    %188 = arith.addf %181, %187 : vector<8x16x128xf32>
    %c0_i32_134 = arith.constant 0 : i32
    %189 = arith.addi %173, %c0_i32_134 : i32
    %190 = arith.index_cast %189 : i32 to index
    %c9_135 = arith.constant 9 : index
    %c0_136 = arith.constant 0 : index
    %191 = vector.load %arg6[%190, %c9_135, %c0_136] : memref<18x25x128xf32, #tpu.memory_space<vmem>>, vector<8x16x128xf32>
    %192 = vector.shape_cast %5 : vector<128xf32> to vector<1x1x128xf32>
    %193 = vector.broadcast %192 : vector<1x1x128xf32> to vector<8x16x128xf32>
    %194 = arith.mulf %191, %193 : vector<8x16x128xf32>
    %195 = arith.addf %188, %194 : vector<8x16x128xf32>
    %c1_i32_137 = arith.constant 1 : i32
    %196 = arith.addi %173, %c1_i32_137 : i32
    %197 = arith.index_cast %196 : i32 to index
    %c7_138 = arith.constant 7 : index
    %c0_139 = arith.constant 0 : index
    %198 = vector.load %arg6[%197, %c7_138, %c0_139] : memref<18x25x128xf32, #tpu.memory_space<vmem>>, vector<8x16x128xf32>
    %199 = vector.shape_cast %7 : vector<128xf32> to vector<1x1x128xf32>
    %200 = vector.broadcast %199 : vector<1x1x128xf32> to vector<8x16x128xf32>
    %201 = arith.mulf %198, %200 : vector<8x16x128xf32>
    %202 = arith.addf %195, %201 : vector<8x16x128xf32>
    %c1_i32_140 = arith.constant 1 : i32
    %203 = arith.addi %173, %c1_i32_140 : i32
    %204 = arith.index_cast %203 : i32 to index
    %c8_141 = arith.constant 8 : index
    %c0_142 = arith.constant 0 : index
    %205 = vector.load %arg6[%204, %c8_141, %c0_142] : memref<18x25x128xf32, #tpu.memory_space<vmem>>, vector<8x16x128xf32>
    %206 = vector.shape_cast %9 : vector<128xf32> to vector<1x1x128xf32>
    %207 = vector.broadcast %206 : vector<1x1x128xf32> to vector<8x16x128xf32>
    %208 = arith.mulf %205, %207 : vector<8x16x128xf32>
    %209 = arith.addf %202, %208 : vector<8x16x128xf32>
    %c1_i32_143 = arith.constant 1 : i32
    %210 = arith.addi %173, %c1_i32_143 : i32
    %211 = arith.index_cast %210 : i32 to index
    %c9_144 = arith.constant 9 : index
    %c0_145 = arith.constant 0 : index
    %212 = vector.load %arg6[%211, %c9_144, %c0_145] : memref<18x25x128xf32, #tpu.memory_space<vmem>>, vector<8x16x128xf32>
    %213 = vector.shape_cast %11 : vector<128xf32> to vector<1x1x128xf32>
    %214 = vector.broadcast %213 : vector<1x1x128xf32> to vector<8x16x128xf32>
    %215 = arith.mulf %212, %214 : vector<8x16x128xf32>
    %216 = arith.addf %209, %215 : vector<8x16x128xf32>
    %c2_i32_146 = arith.constant 2 : i32
    %217 = arith.addi %173, %c2_i32_146 : i32
    %218 = arith.index_cast %217 : i32 to index
    %c7_147 = arith.constant 7 : index
    %c0_148 = arith.constant 0 : index
    %219 = vector.load %arg6[%218, %c7_147, %c0_148] : memref<18x25x128xf32, #tpu.memory_space<vmem>>, vector<8x16x128xf32>
    %220 = vector.shape_cast %13 : vector<128xf32> to vector<1x1x128xf32>
    %221 = vector.broadcast %220 : vector<1x1x128xf32> to vector<8x16x128xf32>
    %222 = arith.mulf %219, %221 : vector<8x16x128xf32>
    %223 = arith.addf %216, %222 : vector<8x16x128xf32>
    %c2_i32_149 = arith.constant 2 : i32
    %224 = arith.addi %173, %c2_i32_149 : i32
    %225 = arith.index_cast %224 : i32 to index
    %c8_150 = arith.constant 8 : index
    %c0_151 = arith.constant 0 : index
    %226 = vector.load %arg6[%225, %c8_150, %c0_151] : memref<18x25x128xf32, #tpu.memory_space<vmem>>, vector<8x16x128xf32>
    %227 = vector.shape_cast %15 : vector<128xf32> to vector<1x1x128xf32>
    %228 = vector.broadcast %227 : vector<1x1x128xf32> to vector<8x16x128xf32>
    %229 = arith.mulf %226, %228 : vector<8x16x128xf32>
    %230 = arith.addf %223, %229 : vector<8x16x128xf32>
    %c2_i32_152 = arith.constant 2 : i32
    %231 = arith.addi %173, %c2_i32_152 : i32
    %232 = arith.index_cast %231 : i32 to index
    %c9_153 = arith.constant 9 : index
    %c0_154 = arith.constant 0 : index
    %233 = vector.load %arg6[%232, %c9_153, %c0_154] : memref<18x25x128xf32, #tpu.memory_space<vmem>>, vector<8x16x128xf32>
    %234 = vector.shape_cast %17 : vector<128xf32> to vector<1x1x128xf32>
    %235 = vector.broadcast %234 : vector<1x1x128xf32> to vector<8x16x128xf32>
    %236 = arith.mulf %233, %235 : vector<8x16x128xf32>
    %237 = arith.addf %230, %236 : vector<8x16x128xf32>
    %c0_155 = arith.constant 0 : index
    %c1_156 = arith.constant 1 : index
    %238 = arith.index_cast %173 : i32 to index
    %c0_157 = arith.constant 0 : index
    %c0_158 = arith.constant 0 : index
    %239 = vector.load %arg5[%c0_155, %c1_156, %238, %c0_157, %c0_158] : memref<1x2x16x16x128xf32, #tpu.memory_space<vmem>>, vector<1x1x8x16x128xf32>
    %240 = vector.shape_cast %239 : vector<1x1x8x16x128xf32> to vector<8x16x128xf32>
    %241 = vector.shape_cast %237 : vector<8x16x128xf32> to vector<1x1x8x16x128xf32>
    tpu.vector_store %arg5[%c0_155, %c1_156, %238, %c0_157, %c0_158], %241 {strides = array<i32>} : memref<1x2x16x16x128xf32, #tpu.memory_space<vmem>>, vector<1x1x8x16x128xf32>,
    %c1_i32_159 = arith.constant 1 : i32
    %c8_i32_160 = arith.constant 8 : i32
    %242 = arith.muli %c1_i32_159, %c8_i32_160 : i32
    %c8_i32_161 = arith.constant 8 : i32
    %243 = arith.minsi %242, %c8_i32_161 : i32
    %cst_162 = arith.constant 0.000000e+00 : f32
    %244 = vector.broadcast %cst_162 : f32 to vector<8x16x128xf32>
    %c0_i32_163 = arith.constant 0 : i32
    %245 = arith.addi %243, %c0_i32_163 : i32
    %246 = arith.index_cast %245 : i32 to index
    %c7_164 = arith.constant 7 : index
    %c0_165 = arith.constant 0 : index
    %247 = vector.load %arg6[%246, %c7_164, %c0_165] : memref<18x25x128xf32, #tpu.memory_space<vmem>>, vector<8x16x128xf32>
    %248 = vector.shape_cast %1 : vector<128xf32> to vector<1x1x128xf32>
    %249 = vector.broadcast %248 : vector<1x1x128xf32> to vector<8x16x128xf32>
    %250 = arith.mulf %247, %249 : vector<8x16x128xf32>
    %251 = arith.addf %244, %250 : vector<8x16x128xf32>
    %c0_i32_166 = arith.constant 0 : i32
    %252 = arith.addi %243, %c0_i32_166 : i32
    %253 = arith.index_cast %252 : i32 to index
    %c8_167 = arith.constant 8 : index
    %c0_168 = arith.constant 0 : index
    %254 = vector.load %arg6[%253, %c8_167, %c0_168] : memref<18x25x128xf32, #tpu.memory_space<vmem>>, vector<8x16x128xf32>
    %255 = vector.shape_cast %3 : vector<128xf32> to vector<1x1x128xf32>
    %256 = vector.broadcast %255 : vector<1x1x128xf32> to vector<8x16x128xf32>
    %257 = arith.mulf %254, %256 : vector<8x16x128xf32>
    %258 = arith.addf %251, %257 : vector<8x16x128xf32>
    %c0_i32_169 = arith.constant 0 : i32
    %259 = arith.addi %243, %c0_i32_169 : i32
    %260 = arith.index_cast %259 : i32 to index
    %c9_170 = arith.constant 9 : index
    %c0_171 = arith.constant 0 : index
    %261 = vector.load %arg6[%260, %c9_170, %c0_171] : memref<18x25x128xf32, #tpu.memory_space<vmem>>, vector<8x16x128xf32>
    %262 = vector.shape_cast %5 : vector<128xf32> to vector<1x1x128xf32>
    %263 = vector.broadcast %262 : vector<1x1x128xf32> to vector<8x16x128xf32>
    %264 = arith.mulf %261, %263 : vector<8x16x128xf32>
    %265 = arith.addf %258, %264 : vector<8x16x128xf32>
    %c1_i32_172 = arith.constant 1 : i32
    %266 = arith.addi %243, %c1_i32_172 : i32
    %267 = arith.index_cast %266 : i32 to index
    %c7_173 = arith.constant 7 : index
    %c0_174 = arith.constant 0 : index
    %268 = vector.load %arg6[%267, %c7_173, %c0_174] : memref<18x25x128xf32, #tpu.memory_space<vmem>>, vector<8x16x128xf32>
    %269 = vector.shape_cast %7 : vector<128xf32> to vector<1x1x128xf32>
    %270 = vector.broadcast %269 : vector<1x1x128xf32> to vector<8x16x128xf32>
    %271 = arith.mulf %268, %270 : vector<8x16x128xf32>
    %272 = arith.addf %265, %271 : vector<8x16x128xf32>
    %c1_i32_175 = arith.constant 1 : i32
    %273 = arith.addi %243, %c1_i32_175 : i32
    %274 = arith.index_cast %273 : i32 to index
    %c8_176 = arith.constant 8 : index
    %c0_177 = arith.constant 0 : index
    %275 = vector.load %arg6[%274, %c8_176, %c0_177] : memref<18x25x128xf32, #tpu.memory_space<vmem>>, vector<8x16x128xf32>
    %276 = vector.shape_cast %9 : vector<128xf32> to vector<1x1x128xf32>
    %277 = vector.broadcast %276 : vector<1x1x128xf32> to vector<8x16x128xf32>
    %278 = arith.mulf %275, %277 : vector<8x16x128xf32>
    %279 = arith.addf %272, %278 : vector<8x16x128xf32>
    %c1_i32_178 = arith.constant 1 : i32
    %280 = arith.addi %243, %c1_i32_178 : i32
    %281 = arith.index_cast %280 : i32 to index
    %c9_179 = arith.constant 9 : index
    %c0_180 = arith.constant 0 : index
    %282 = vector.load %arg6[%281, %c9_179, %c0_180] : memref<18x25x128xf32, #tpu.memory_space<vmem>>, vector<8x16x128xf32>
    %283 = vector.shape_cast %11 : vector<128xf32> to vector<1x1x128xf32>
    %284 = vector.broadcast %283 : vector<1x1x128xf32> to vector<8x16x128xf32>
    %285 = arith.mulf %282, %284 : vector<8x16x128xf32>
    %286 = arith.addf %279, %285 : vector<8x16x128xf32>
    %c2_i32_181 = arith.constant 2 : i32
    %287 = arith.addi %243, %c2_i32_181 : i32
    %288 = arith.index_cast %287 : i32 to index
    %c7_182 = arith.constant 7 : index
    %c0_183 = arith.constant 0 : index
    %289 = vector.load %arg6[%288, %c7_182, %c0_183] : memref<18x25x128xf32, #tpu.memory_space<vmem>>, vector<8x16x128xf32>
    %290 = vector.shape_cast %13 : vector<128xf32> to vector<1x1x128xf32>
    %291 = vector.broadcast %290 : vector<1x1x128xf32> to vector<8x16x128xf32>
    %292 = arith.mulf %289, %291 : vector<8x16x128xf32>
    %293 = arith.addf %286, %292 : vector<8x16x128xf32>
    %c2_i32_184 = arith.constant 2 : i32
    %294 = arith.addi %243, %c2_i32_184 : i32
    %295 = arith.index_cast %294 : i32 to index
    %c8_185 = arith.constant 8 : index
    %c0_186 = arith.constant 0 : index
    %296 = vector.load %arg6[%295, %c8_185, %c0_186] : memref<18x25x128xf32, #tpu.memory_space<vmem>>, vector<8x16x128xf32>
    %297 = vector.shape_cast %15 : vector<128xf32> to vector<1x1x128xf32>
    %298 = vector.broadcast %297 : vector<1x1x128xf32> to vector<8x16x128xf32>
    %299 = arith.mulf %296, %298 : vector<8x16x128xf32>
    %300 = arith.addf %293, %299 : vector<8x16x128xf32>
    %c2_i32_187 = arith.constant 2 : i32
    %301 = arith.addi %243, %c2_i32_187 : i32
    %302 = arith.index_cast %301 : i32 to index
    %c9_188 = arith.constant 9 : index
    %c0_189 = arith.constant 0 : index
    %303 = vector.load %arg6[%302, %c9_188, %c0_189] : memref<18x25x128xf32, #tpu.memory_space<vmem>>, vector<8x16x128xf32>
    %304 = vector.shape_cast %17 : vector<128xf32> to vector<1x1x128xf32>
    %305 = vector.broadcast %304 : vector<1x1x128xf32> to vector<8x16x128xf32>
    %306 = arith.mulf %303, %305 : vector<8x16x128xf32>
    %307 = arith.addf %300, %306 : vector<8x16x128xf32>
    %c0_190 = arith.constant 0 : index
    %c1_191 = arith.constant 1 : index
    %308 = arith.index_cast %243 : i32 to index
    %c0_192 = arith.constant 0 : index
    %c0_193 = arith.constant 0 : index
    %309 = vector.load %arg5[%c0_190, %c1_191, %308, %c0_192, %c0_193] : memref<1x2x16x16x128xf32, #tpu.memory_space<vmem>>, vector<1x1x8x16x128xf32>
    %310 = vector.shape_cast %309 : vector<1x1x8x16x128xf32> to vector<8x16x128xf32>
    %311 = vector.shape_cast %307 : vector<8x16x128xf32> to vector<1x1x8x16x128xf32>
    tpu.vector_store %arg5[%c0_190, %c1_191, %308, %c0_192, %c0_193], %311 {strides = array<i32>} : memref<1x2x16x16x128xf32, #tpu.memory_space<vmem>>, vector<1x1x8x16x128xf32>,
    %c2_i32_194 = arith.constant 2 : i32
    return
  }
  func.func @transform_0(%arg0: i32, %arg1: i32, %arg2: i32) -> (i32, i32, i32, i32) {
    %c0_i32 = arith.constant 0 : i32
    %c0_i32_0 = arith.constant 0 : i32
    %c0_i32_1 = arith.constant 0 : i32
    return %arg1, %c0_i32, %c0_i32_0, %arg0 : i32, i32, i32, i32
  }
  func.func @transform_1(%arg0: i32, %arg1: i32, %arg2: i32) -> (i32, i32, i32, i32) {
    %c0_i32 = arith.constant 0 : i32
    %c0_i32_0 = arith.constant 0 : i32
    %c0_i32_1 = arith.constant 0 : i32
    return %arg2, %c0_i32, %c0_i32_0, %arg0 : i32, i32, i32, i32
  }
  func.func @transform_2(%arg0: i32, %arg1: i32, %arg2: i32) -> (i32, i32, i32, i32, i32) {
    %c0_i32 = arith.constant 0 : i32
    %c0_i32_0 = arith.constant 0 : i32
    %c0_i32_1 = arith.constant 0 : i32
    return %arg2, %arg1, %c0_i32, %c0_i32_0, %arg0 : i32, i32, i32, i32, i32
  }
}

</mosaic_0001>

<llo_original>
// kernel: tpu_custom_call.1
$region0: #{tpu_custom_call.1}
  #allocation0 [shape = 'u32[]', space=smem, size = 0x4, offset = 0x4, fixed_abs, tag = 'smem constant byte address 0x4 - core index']
  #allocation1 [shape = 'u32[72,128]{1,0:T(1,128)}', space=vmem, size = 0x9000, scoped, tag = 'internal scratch']
  #allocation2 [shape = 'f32[18,25,128]{2,1,0:T(8,128)}', space=vmem, size = 0x48000, scoped, tag = 'scratch operand']
  %s0 = inlined_call_operand.hbm [shape: f32[2,16,16,128], index: 0, kind: input, shape index: {}]
  %s1 = inlined_call_operand.vmem [shape: f32[2,3,3,128], index: 1, kind: input, shape index: {}]
  %s2 = inlined_call_operand.hbm [shape: f32[2,2,16,16,128], index: 2, kind: output, shape index: {}]
  %s3 = sld [smem:[#allocation0]]
  $region45: #{tpu_custom_call.1} parent=0
    _
  %s5 = ssub.s32 1, %s3
  %s6 = scalar_select 0, %s5, %s3
  $region1: #{tpu_custom_call.1} parent=0
    #allocation3 [shape = 'u8[262144]{0}', space=vmem, size = 0x40000, scoped, tag = 'input window, operand 0, single buffered']
    #allocation4 [shape = 's32[2]{0}', space=sflag, size = 0x8, scoped, tag = 'scoped memory for tpu_custom_call.1']
    #allocation5 [shape = 's32[2]{0}', space=sflag, size = 0x8, scoped, tag = 'scoped memory for tpu_custom_call.1']
    #allocation6 [shape = 'u8[524288]{0}', space=vmem, size = 0x80000, scoped, tag = 'output window, operand 0']
    %7 = vsyncpa [#allocation4], 0
    %8 = vsyncpa [#allocation5], 0
    %s9 = scalar_lea.sflag [#allocation5], 1
    %10 = vsyncpa %s9, 0
    loop: start=0, step=1, limit=4
    $region2: #{tpu_custom_call.1} parent=1 // loop_pre_header
      _
    $region3: #{tpu_custom_call.1} parent=1 // loop_header
      %s12 = sphi 0, %s16
      %p13 = scmp.ge.s32.totalorder %s12, 4
      %s19 = sphi 0, %s38
      %s20 = sphi 0, %s34
      %s21 = sphi 0, %s30
      %s22 = sphi 0, %s19
      %s23 = sphi 0, %s20
      %s24 = sphi 0, %s21
      %s25 = sphi 0, %s22
      %s26 = sphi 0, %s23
      %s27 = sphi 0, %s24
      %s43 = sphi 0, %s45
      %s46 = sphi 0, %s43
      %s47 = sphi 0, %s46
      %s63 = sphi 0, %s47
      %s71 = sphi 0, %s73
      %s74 = sphi 0, %s71
      %s75 = sphi 0, %s74
      %s91 = sphi 0, %s75
      %s101 = sphi 0, %s103
      %s104 = sphi 0, %s101
      %s105 = sphi 0, %s104
      %s121 = sphi 0, %s105
    $region4: #{tpu_custom_call.1} parent=1 // loop_header_branch
      %15 = sbr.rel (%p13) target = $region8
    $region5: #{tpu_custom_call.1} parent=1 // loop_body
      %s17 = ssub.s32 %s12, 1
      %s18 = ssub.s32 %s12, 2
      %s28 = sadd.s32 1, %s21
      %p29 = scmp.ge.s32.totalorder %s28, 2
      %s30 = scalar_select %p29, 0, %s28
      %s31 = sadd.s32 1, %s20
      %s32 = scalar_select %p29, %s31, %s20
      %p33 = scmp.ge.s32.totalorder %s32, 1
      %s34 = scalar_select %p33, 0, %s32
      %s35 = sadd.s32 1, %s19
      %s36 = scalar_select %p33, %s35, %s19
      %p37 = scmp.ge.s32.totalorder %s36, 1
      %s38 = scalar_select %p37, 0, %s36
      %s39 = ssub.s32 %s20, %s34
      %s40 = ssub.s32 %s19, %s38
      %s41 = sor.u32 %s39, %s40
      %p42 = scmp.eq.s32.totalorder %s41, 0
      %s44 = sadd.s32 %s43, 1
      %s45 = scalar_select %p42, %s43, %s44
      %p48 = pneg %p42
      %p49 = scmp.eq.s32.totalorder %s12, 1
      %p50 = por %p48, %p49
      %p51 = scmp.ne.s32.totalorder %s43, %s46
      %p52 = scmp.eq.s32.totalorder %s12, 0
      %p53 = por %p51, %p52
      %p54 = scmp.ne.s32.totalorder %s43, %s46
      %p55 = scmp.eq.s32.totalorder %s17, 1
      %p56 = por %p54, %p55
      %p57 = scmp.ne.s32.totalorder %s46, %s47
      %p58 = scmp.eq.s32.totalorder %s17, 0
      %p59 = por %p57, %p58
      %p60 = scmp.ne.s32.totalorder %s46, %s47
      %p61 = scmp.eq.s32.totalorder %s18, 1
      %p62 = por %p60, %p61
      %p64 = scmp.ne.s32.totalorder %s47, %s63
      %p65 = scmp.eq.s32.totalorder %s18, 0
      %p66 = por %p64, %p65
      %s67 = ssub.s32 %s21, %s30
      %s68 = ssub.s32 %s19, %s38
      %s69 = sor.u32 %s67, %s68
      %p70 = scmp.eq.s32.totalorder %s69, 0
      %s72 = sadd.s32 %s71, 1
      %s73 = scalar_select %p70, %s71, %s72
      %p76 = pneg %p70
      %p77 = scmp.eq.s32.totalorder %s12, 1
      %p78 = por %p76, %p77
      %p79 = scmp.ne.s32.totalorder %s71, %s74
      %p80 = scmp.eq.s32.totalorder %s12, 0
      %p81 = por %p79, %p80
      %p82 = scmp.ne.s32.totalorder %s71, %s74
      %p83 = scmp.eq.s32.totalorder %s17, 1
      %p84 = por %p82, %p83
      %p85 = scmp.ne.s32.totalorder %s74, %s75
      %p86 = scmp.eq.s32.totalorder %s17, 0
      %p87 = por %p85, %p86
      %p88 = scmp.ne.s32.totalorder %s74, %s75
      %p89 = scmp.eq.s32.totalorder %s18, 1
      %p90 = por %p88, %p89
      %p92 = scmp.ne.s32.totalorder %s75, %s91
      %p93 = scmp.eq.s32.totalorder %s18, 0
      %p94 = por %p92, %p93
      %s95 = ssub.s32 %s21, %s30
      %s96 = ssub.s32 %s20, %s34
      %s97 = sor.u32 %s95, %s96
      %s98 = ssub.s32 %s19, %s38
      %s99 = sor.u32 %s97, %s98
      %p100 = scmp.eq.s32.totalorder %s99, 0
      %s102 = sadd.s32 %s101, 1
      %s103 = scalar_select %p100, %s101, %s102
      %p106 = pneg %p100
      %p107 = scmp.eq.s32.totalorder %s12, 1
      %p108 = por %p106, %p107
      %p109 = scmp.ne.s32.totalorder %s101, %s104
      %p110 = scmp.eq.s32.totalorder %s12, 0
      %p111 = por %p109, %p110
      %p112 = scmp.ne.s32.totalorder %s101, %s104
      %p113 = scmp.eq.s32.totalorder %s17, 1
      %p114 = por %p112, %p113
      %p115 = scmp.ne.s32.totalorder %s104, %s105
      %p116 = scmp.eq.s32.totalorder %s17, 0
      %p117 = por %p115, %p116
      %p118 = scmp.ne.s32.totalorder %s104, %s105
      %p119 = scmp.eq.s32.totalorder %s18, 1
      %p120 = por %p118, %p119
      %p122 = scmp.ne.s32.totalorder %s105, %s121
      %p123 = scmp.eq.s32.totalorder %s18, 0
      %p124 = por %p122, %p123
      %p125 = scmp.le.s32.totalorder 1, %s12
      %p126 = scmp.lt.s32.totalorder %s12, 3
      %p127 = pnand %p125, %p126
      %p128 = pneg %p127
      // Predicated region
      $region9: #{tpu_custom_call.1} parent=5 // pred_check
        _
      $region10: #{tpu_custom_call.1} parent=5 // pred_check_branch
        %130 = sbr.rel (%p127) target = $region12
      $region11: #{tpu_custom_call.1} parent=5 // pred_region
        %s131 = ssub.s32 %s12, 1
        // Predicated region
        $region13: #{tpu_custom_call.1} parent=11 // pred_check
          %p132 = pneg %p59
        $region14: #{tpu_custom_call.1} parent=11 // pred_check_branch
          %134 = sbr.rel (%p132) target = $region16
        $region15: #{tpu_custom_call.1} parent=11 // pred_region
          %s135 = smul.u32 2, %s23
          %137 = vsyncadd [#allocation4], 0
          %s138 = smul.addr %s135, 32
          %s139 = sadd.s32 %s22, %s138
          %s140 = smul.addr %s139, 8
          %s141 = scalar_lea.hbm %s0, %s140
          %s142 = sshll.u32 %s141, 4
          %s143 = int_to_ptr.hbm [resolvable:$true] %s142
          %s144 = sshll.u32 [#allocation3], 4
          %s145 = int_to_ptr.vmem [resolvable:$true] %s144
          %150 = dma.hbm_to_vmem [thread:$0]  %s143, 8192, %s145, [#allocation4], 128, 128, 8
        $region16: #{tpu_custom_call.1} parent=11 // pred_fallthru
          _
      $region12: #{tpu_custom_call.1} parent=5 // pred_fallthru
        _
      %p151 = scmp.lt.s32.totalorder %s12, 2
      // Predicated region
      $region17: #{tpu_custom_call.1} parent=5 // pred_check
        %p152 = pneg %p151
      $region18: #{tpu_custom_call.1} parent=5 // pred_check_branch
        %154 = sbr.rel (%p152) target = $region20
      $region19: #{tpu_custom_call.1} parent=5 // pred_region
        // Predicated region
        $region21: #{tpu_custom_call.1} parent=19 // pred_check
          %p155 = pneg %p81
        $region22: #{tpu_custom_call.1} parent=19 // pred_check_branch
          %157 = sbr.rel (%p155) target = $region24
        $region23: #{tpu_custom_call.1} parent=19 // pred_region
          %p158 = scmp.lt.s32.totalorder %s21, 1
          %s159 = scalar_select %p158, %s21, 1
          %p160 = scmp.lt.s32.totalorder %s19, 0
          %s161 = scalar_select %p160, %s19, 0
          %s162 = smul.addr %s159, 3
          %s163 = sadd.s32 %s161, %s162
          %s164 = smul.addr %s163, 4
          %s165 = scalar_lea.vmem %s1, %s164
        $region24: #{tpu_custom_call.1} parent=19 // pred_fallthru
          _
      $region20: #{tpu_custom_call.1} parent=5 // pred_fallthru
        _
      %p166 = scmp.le.s32.totalorder 1, %s12
      %p167 = scmp.lt.s32.totalorder %s12, 3
      %p168 = pnand %p166, %p167
      %p169 = pneg %p168
      // Predicated region
      $region25: #{tpu_custom_call.1} parent=5 // pred_check
        _
      $region26: #{tpu_custom_call.1} parent=5 // pred_check_branch
        %171 = sbr.rel (%p168) target = $region28
      $region27: #{tpu_custom_call.1} parent=5 // pred_region
        %s172 = ssub.s32 %s12, 1
        // Predicated region
        $region29: #{tpu_custom_call.1} parent=27 // pred_check
          %p173 = pneg %p59
        $region30: #{tpu_custom_call.1} parent=27 // pred_check_branch
          %175 = sbr.rel (%p173) target = $region32
        $region31: #{tpu_custom_call.1} parent=27 // pred_region
          %177 = dma.done [#allocation4], 8192
        $region32: #{tpu_custom_call.1} parent=27 // pred_fallthru
          _
        %p178 = pneg %p59
        %p179 = pneg %p56
        %p180 = scmp.lt.s32.totalorder %s24, 1
        %s181 = scalar_select %p180, %s24, 1
        %p182 = scmp.lt.s32.totalorder %s22, 0
        %s183 = scalar_select %p182, %s22, 0
        %s184 = smul.addr %s181, 3
        %s185 = sadd.s32 %s183, %s184
        %s186 = smul.addr %s185, 4
        %s187 = scalar_lea.vmem %s1, %s186
        %p188 = pneg %p87
        %p189 = pneg %p84
        %p190 = pneg %p117
        %p191 = pneg %p114
        %s192 = sand.u32 %s104, 1
        %s193 = scalar_lea.sflag [#allocation5], %s192
        %s194 = sand.u32 %s104, 1
        %s195 = smul.addr %s194, 512
        %s196 = scalar_lea.vmem [#allocation6], %s195
        %s197 = smul.u32 2, %s23
        %p198 = scmp.lt.s32.totalorder %s24, 1
        %s199 = scalar_select %p198, %s24, 1
        %p200 = scmp.lt.s32.totalorder %s22, 0
        %s201 = scalar_select %p200, %s22, 0
        %s202 = smul.addr %s199, 3
        %s203 = sadd.s32 %s201, %s202
        %s204 = smul.addr %s203, 4
        %s205 = scalar_lea.vmem %s1, %s204
        %s206 = smul.u32 2, %s23
        %v207 = vld [vmem:[%s205] sm:$0x1]
        %v208 = vld [vmem:[%s205 + $0x1] sm:$0x1]
        %v209 = vld [vmem:[%s205 + $0x2] sm:$0x1]
        %s210 = scalar_lea.vmem %s205, 4
        %v211 = vld [vmem:[%s210] sm:$0x1]
        %v212 = vld [vmem:[%s210 + $0x1] sm:$0x1]
        %v213 = vld [vmem:[%s210 + $0x2] sm:$0x1]
        %s214 = scalar_lea.vmem %s205, 8
        %v215 = vld [vmem:[%s214] sm:$0x1]
        %v216 = vld [vmem:[%s214 + $0x1] sm:$0x1]
        %v217 = vld [vmem:[%s214 + $0x2] sm:$0x1]
        %218 = vst [vmem:[#allocation2] sm:$0xff] 0.0
        %219 = vst [vmem:[#allocation2 + $0x8] sm:$0xff] 0.0
        %220 = vst [vmem:[#allocation2 + $0x10] sm:$0xff] 0.0
        %221 = vst [vmem:[#allocation2 + $0x18] sm:$0x1] 0.0
        %s222 = scalar_lea.vmem [#allocation2], 544
        %223 = vst [vmem:[%s222] sm:$0xff] 0.0
        %224 = vst [vmem:[%s222 + $0x8] sm:$0xff] 0.0
        %225 = vst [vmem:[%s222 + $0x10] sm:$0xff] 0.0
        %226 = vst [vmem:[%s222 + $0x18] sm:$0x1] 0.0
        %s227 = scalar_lea.vmem [#allocation2], 32
        %228 = vst [vmem:[%s227] sm:$0xff] 0.0
        %229 = vst [vmem:[%s227 + $0x20] sm:$0xff] 0.0
        %230 = vst [vmem:[%s227 + $0x40] sm:$0xff] 0.0
        %231 = vst [vmem:[%s227 + $0x60] sm:$0xff] 0.0
        %232 = vst [vmem:[%s227 + $0x80] sm:$0xff] 0.0
        %233 = vst [vmem:[%s227 + $0xa0] sm:$0xff] 0.0
        %234 = vst [vmem:[%s227 + $0xc0] sm:$0xff] 0.0
        %235 = vst [vmem:[%s227 + $0xe0] sm:$0xff] 0.0
        %236 = vst [vmem:[%s227 + $0x100] sm:$0xff] 0.0
        %237 = vst [vmem:[%s227 + $0x120] sm:$0xff] 0.0
        %238 = vst [vmem:[%s227 + $0x140] sm:$0xff] 0.0
        %239 = vst [vmem:[%s227 + $0x160] sm:$0xff] 0.0
        %240 = vst [vmem:[%s227 + $0x180] sm:$0xff] 0.0
        %241 = vst [vmem:[%s227 + $0x1a0] sm:$0xff] 0.0
        %242 = vst [vmem:[%s227 + $0x1c0] sm:$0xff] 0.0
        %243 = vst [vmem:[%s227 + $0x1e0] sm:$0xff] 0.0
        %244 = vst [vmem:[%s227 + $0x18] sm:$0x1] 0.0
        %245 = vst [vmem:[%s227 + $0x38] sm:$0x1] 0.0
        %246 = vst [vmem:[%s227 + $0x58] sm:$0x1] 0.0
        %247 = vst [vmem:[%s227 + $0x78] sm:$0x1] 0.0
        %248 = vst [vmem:[%s227 + $0x98] sm:$0x1] 0.0
        %249 = vst [vmem:[%s227 + $0xb8] sm:$0x1] 0.0
        %250 = vst [vmem:[%s227 + $0xd8] sm:$0x1] 0.0
        %251 = vst [vmem:[%s227 + $0xf8] sm:$0x1] 0.0
        %252 = vst [vmem:[%s227 + $0x118] sm:$0x1] 0.0
        %253 = vst [vmem:[%s227 + $0x138] sm:$0x1] 0.0
        %254 = vst [vmem:[%s227 + $0x158] sm:$0x1] 0.0
        %255 = vst [vmem:[%s227 + $0x178] sm:$0x1] 0.0
        %256 = vst [vmem:[%s227 + $0x198] sm:$0x1] 0.0
        %257 = vst [vmem:[%s227 + $0x1b8] sm:$0x1] 0.0
        %258 = vst [vmem:[%s227 + $0x1d8] sm:$0x1] 0.0
        %259 = vst [vmem:[%s227 + $0x1f8] sm:$0x1] 0.0
        %v260 = vld [vmem:[#allocation3] sm:$0xff]
        %v261 = vld [vmem:[#allocation3 + $0x8] sm:$0xff]
        %v262 = vld [vmem:[#allocation3 + $0x10] sm:$0xff]
        %v263 = vld [vmem:[#allocation3 + $0x18] sm:$0xff]
        %v264 = vld [vmem:[#allocation3 + $0x20] sm:$0xff]
        %v265 = vld [vmem:[#allocation3 + $0x28] sm:$0xff]
        %v266 = vld [vmem:[#allocation3 + $0x30] sm:$0xff]
        %v267 = vld [vmem:[#allocation3 + $0x38] sm:$0xff]
        %v268 = vld [vmem:[#allocation3 + $0x40] sm:$0xff]
        %v269 = vld [vmem:[#allocation3 + $0x48] sm:$0xff]
        %v270 = vld [vmem:[#allocation3 + $0x50] sm:$0xff]
        %v271 = vld [vmem:[#allocation3 + $0x58] sm:$0xff]
        %v272 = vld [vmem:[#allocation3 + $0x60] sm:$0xff]
        %v273 = vld [vmem:[#allocation3 + $0x68] sm:$0xff]
        %v274 = vld [vmem:[#allocation3 + $0x70] sm:$0xff]
        %v275 = vld [vmem:[#allocation3 + $0x78] sm:$0xff]
        %v276 = vld [vmem:[#allocation3 + $0x80] sm:$0xff]
        %v277 = vld [vmem:[#allocation3 + $0x88] sm:$0xff]
        %v278 = vld [vmem:[#allocation3 + $0x90] sm:$0xff]
        %v279 = vld [vmem:[#allocation3 + $0x98] sm:$0xff]
        %v280 = vld [vmem:[#allocation3 + $0xa0] sm:$0xff]
        %v281 = vld [vmem:[#allocation3 + $0xa8] sm:$0xff]
        %v282 = vld [vmem:[#allocation3 + $0xb0] sm:$0xff]
        %v283 = vld [vmem:[#allocation3 + $0xb8] sm:$0xff]
        %v284 = vld [vmem:[#allocation3 + $0xc0] sm:$0xff]
        %v285 = vld [vmem:[#allocation3 + $0xc8] sm:$0xff]
        %v286 = vld [vmem:[#allocation3 + $0xd0] sm:$0xff]
        %v287 = vld [vmem:[#allocation3 + $0xd8] sm:$0xff]
        %v288 = vld [vmem:[#allocation3 + $0xe0] sm:$0xff]
        %v289 = vld [vmem:[#allocation3 + $0xe8] sm:$0xff]
        %v290 = vld [vmem:[#allocation3 + $0xf0] sm:$0xff]
        %v291 = vld [vmem:[#allocation3 + $0xf8] sm:$0xff]
        %292 = vst [vmem:[%s227 + $0x8] sm:$0xff] %v260
        %293 = vst [vmem:[%s227 + $0x10] sm:$0xff] %v261
        %294 = vst [vmem:[%s227 + $0x28] sm:$0xff] %v262
        %295 = vst [vmem:[%s227 + $0x30] sm:$0xff] %v263
        %296 = vst [vmem:[%s227 + $0x48] sm:$0xff] %v264
        %297 = vst [vmem:[%s227 + $0x50] sm:$0xff] %v265
        %298 = vst [vmem:[%s227 + $0x68] sm:$0xff] %v266
        %299 = vst [vmem:[%s227 + $0x70] sm:$0xff] %v267
        %300 = vst [vmem:[%s227 + $0x88] sm:$0xff] %v268
        %301 = vst [vmem:[%s227 + $0x90] sm:$0xff] %v269
        %302 = vst [vmem:[%s227 + $0xa8] sm:$0xff] %v270
        %303 = vst [vmem:[%s227 + $0xb0] sm:$0xff] %v271
        %304 = vst [vmem:[%s227 + $0xc8] sm:$0xff] %v272
        %305 = vst [vmem:[%s227 + $0xd0] sm:$0xff] %v273
        %306 = vst [vmem:[%s227 + $0xe8] sm:$0xff] %v274
        %307 = vst [vmem:[%s227 + $0xf0] sm:$0xff] %v275
        %308 = vst [vmem:[%s227 + $0x108] sm:$0xff] %v276
        %309 = vst [vmem:[%s227 + $0x110] sm:$0xff] %v277
        %310 = vst [vmem:[%s227 + $0x128] sm:$0xff] %v278
        %311 = vst [vmem:[%s227 + $0x130] sm:$0xff] %v279
        %312 = vst [vmem:[%s227 + $0x148] sm:$0xff] %v280
        %313 = vst [vmem:[%s227 + $0x150] sm:$0xff] %v281
        %314 = vst [vmem:[%s227 + $0x168] sm:$0xff] %v282
        %315 = vst [vmem:[%s227 + $0x170] sm:$0xff] %v283
        %316 = vst [vmem:[%s227 + $0x188] sm:$0xff] %v284
        %317 = vst [vmem:[%s227 + $0x190] sm:$0xff] %v285
        %318 = vst [vmem:[%s227 + $0x1a8] sm:$0xff] %v286
        %319 = vst [vmem:[%s227 + $0x1b0] sm:$0xff] %v287
        %320 = vst [vmem:[%s227 + $0x1c8] sm:$0xff] %v288
        %321 = vst [vmem:[%s227 + $0x1d0] sm:$0xff] %v289
        %322 = vst [vmem:[%s227 + $0x1e8] sm:$0xff] %v290
        %323 = vst [vmem:[%s227 + $0x1f0] sm:$0xff] %v291
        %v324 = vld [vmem:[#allocation2 + $0x7] sm:$0xff]
        %v325 = vld [vmem:[#allocation2 + $0xf] sm:$0xff]
        %v326 = vld [vmem:[#allocation2 + $0x27] sm:$0xff]
        %v327 = vld [vmem:[#allocation2 + $0x2f] sm:$0xff]
        %v328 = vld [vmem:[#allocation2 + $0x47] sm:$0xff]
        %v329 = vld [vmem:[#allocation2 + $0x4f] sm:$0xff]
        %v330 = vld [vmem:[#allocation2 + $0x67] sm:$0xff]
        %v331 = vld [vmem:[#allocation2 + $0x6f] sm:$0xff]
        %v332 = vld [vmem:[#allocation2 + $0x87] sm:$0xff]
        %v333 = vld [vmem:[#allocation2 + $0x8f] sm:$0xff]
        %v334 = vld [vmem:[#allocation2 + $0xa7] sm:$0xff]
        %v335 = vld [vmem:[#allocation2 + $0xaf] sm:$0xff]
        %v336 = vld [vmem:[#allocation2 + $0xc7] sm:$0xff]
        %v337 = vld [vmem:[#allocation2 + $0xcf] sm:$0xff]
        %v338 = vld [vmem:[#allocation2 + $0xe7] sm:$0xff]
        %v339 = vld [vmem:[#allocation2 + $0xef] sm:$0xff]
        %v340 = vperm.slane %v207, 0
        %v341 = vmul.f32 %v324, %v340
        %v342 = vmul.f32 %v325, %v340
        %v343 = vmul.f32 %v326, %v340
        %v344 = vmul.f32 %v327, %v340
        %v345 = vmul.f32 %v328, %v340
        %v346 = vmul.f32 %v329, %v340
        %v347 = vmul.f32 %v330, %v340
        %v348 = vmul.f32 %v331, %v340
        %v349 = vmul.f32 %v332, %v340
        %v350 = vmul.f32 %v333, %v340
        %v351 = vmul.f32 %v334, %v340
        %v352 = vmul.f32 %v335, %v340
        %v353 = vmul.f32 %v336, %v340
        %v354 = vmul.f32 %v337, %v340
        %v355 = vmul.f32 %v338, %v340
        %v356 = vmul.f32 %v339, %v340
        %v357 = vadd.f32 %v341, 0.0
        %v358 = vadd.f32 %v342, 0.0
        %v359 = vadd.f32 %v343, 0.0
        %v360 = vadd.f32 %v344, 0.0
        %v361 = vadd.f32 %v345, 0.0
        %v362 = vadd.f32 %v346, 0.0
        %v363 = vadd.f32 %v347, 0.0
        %v364 = vadd.f32 %v348, 0.0
        %v365 = vadd.f32 %v349, 0.0
        %v366 = vadd.f32 %v350, 0.0
        %v367 = vadd.f32 %v351, 0.0
        %v368 = vadd.f32 %v352, 0.0
        %v369 = vadd.f32 %v353, 0.0
        %v370 = vadd.f32 %v354, 0.0
        %v371 = vadd.f32 %v355, 0.0
        %v372 = vadd.f32 %v356, 0.0
        %v373 = vld [vmem:[#allocation2 + $0x8] sm:$0xff]
        %v374 = vld [vmem:[#allocation2 + $0x10] sm:$0xff]
        %v375 = vld [vmem:[#allocation2 + $0x28] sm:$0xff]
        %v376 = vld [vmem:[#allocation2 + $0x30] sm:$0xff]
        %v377 = vld [vmem:[#allocation2 + $0x48] sm:$0xff]
        %v378 = vld [vmem:[#allocation2 + $0x50] sm:$0xff]
        %v379 = vld [vmem:[#allocation2 + $0x68] sm:$0xff]
        %v380 = vld [vmem:[#allocation2 + $0x70] sm:$0xff]
        %v381 = vld [vmem:[#allocation2 + $0x88] sm:$0xff]
        %v382 = vld [vmem:[#allocation2 + $0x90] sm:$0xff]
        %v383 = vld [vmem:[#allocation2 + $0xa8] sm:$0xff]
        %v384 = vld [vmem:[#allocation2 + $0xb0] sm:$0xff]
        %v385 = vld [vmem:[#allocation2 + $0xc8] sm:$0xff]
        %v386 = vld [vmem:[#allocation2 + $0xd0] sm:$0xff]
        %v387 = vld [vmem:[#allocation2 + $0xe8] sm:$0xff]
        %v388 = vld [vmem:[#allocation2 + $0xf0] sm:$0xff]
        %v389 = vperm.slane %v208, 0
        %v390 = vmul.f32 %v373, %v389
        %v391 = vmul.f32 %v374, %v389
        %v392 = vmul.f32 %v375, %v389
        %v393 = vmul.f32 %v376, %v389
        %v394 = vmul.f32 %v377, %v389
        %v395 = vmul.f32 %v378, %v389
        %v396 = vmul.f32 %v379, %v389
        %v397 = vmul.f32 %v380, %v389
        %v398 = vmul.f32 %v381, %v389
        %v399 = vmul.f32 %v382, %v389
        %v400 = vmul.f32 %v383, %v389
        %v401 = vmul.f32 %v384, %v389
        %v402 = vmul.f32 %v385, %v389
        %v403 = vmul.f32 %v386, %v389
        %v404 = vmul.f32 %v387, %v389
        %v405 = vmul.f32 %v388, %v389
        %v406 = vadd.f32 %v357, %v390
        %v407 = vadd.f32 %v358, %v391
        %v408 = vadd.f32 %v359, %v392
        %v409 = vadd.f32 %v360, %v393
        %v410 = vadd.f32 %v361, %v394
        %v411 = vadd.f32 %v362, %v395
        %v412 = vadd.f32 %v363, %v396
        %v413 = vadd.f32 %v364, %v397
        %v414 = vadd.f32 %v365, %v398
        %v415 = vadd.f32 %v366, %v399
        %v416 = vadd.f32 %v367, %v400
        %v417 = vadd.f32 %v368, %v401
        %v418 = vadd.f32 %v369, %v402
        %v419 = vadd.f32 %v370, %v403
        %v420 = vadd.f32 %v371, %v404
        %v421 = vadd.f32 %v372, %v405
        %v422 = vld [vmem:[#allocation2 + $0x9] sm:$0xff]
        %v423 = vld [vmem:[#allocation2 + $0x11] sm:$0xff]
        %v424 = vld [vmem:[#allocation2 + $0x29] sm:$0xff]
        %v425 = vld [vmem:[#allocation2 + $0x31] sm:$0xff]
        %v426 = vld [vmem:[#allocation2 + $0x49] sm:$0xff]
        %v427 = vld [vmem:[#allocation2 + $0x51] sm:$0xff]
        %v428 = vld [vmem:[#allocation2 + $0x69] sm:$0xff]
        %v429 = vld [vmem:[#allocation2 + $0x71] sm:$0xff]
        %v430 = vld [vmem:[#allocation2 + $0x89] sm:$0xff]
        %v431 = vld [vmem:[#allocation2 + $0x91] sm:$0xff]
        %v432 = vld [vmem:[#allocation2 + $0xa9] sm:$0xff]
        %v433 = vld [vmem:[#allocation2 + $0xb1] sm:$0xff]
        %v434 = vld [vmem:[#allocation2 + $0xc9] sm:$0xff]
        %v435 = vld [vmem:[#allocation2 + $0xd1] sm:$0xff]
        %v436 = vld [vmem:[#allocation2 + $0xe9] sm:$0xff]
        %v437 = vld [vmem:[#allocation2 + $0xf1] sm:$0xff]
        %v438 = vperm.slane %v209, 0
        %v439 = vmul.f32 %v422, %v438
        %v440 = vmul.f32 %v423, %v438
        %v441 = vmul.f32 %v424, %v438
        %v442 = vmul.f32 %v425, %v438
        %v443 = vmul.f32 %v426, %v438
        %v444 = vmul.f32 %v427, %v438
        %v445 = vmul.f32 %v428, %v438
        %v446 = vmul.f32 %v429, %v438
        %v447 = vmul.f32 %v430, %v438
        %v448 = vmul.f32 %v431, %v438
        %v449 = vmul.f32 %v432, %v438
        %v450 = vmul.f32 %v433, %v438
        %v451 = vmul.f32 %v434, %v438
        %v452 = vmul.f32 %v435, %v438
        %v453 = vmul.f32 %v436, %v438
        %v454 = vmul.f32 %v437, %v438
        %v455 = vadd.f32 %v406, %v439
        %v456 = vadd.f32 %v407, %v440
        %v457 = vadd.f32 %v408, %v441
        %v458 = vadd.f32 %v409, %v442
        %v459 = vadd.f32 %v410, %v443
        %v460 = vadd.f32 %v411, %v444
        %v461 = vadd.f32 %v412, %v445
        %v462 = vadd.f32 %v413, %v446
        %v463 = vadd.f32 %v414, %v447
        %v464 = vadd.f32 %v415, %v448
        %v465 = vadd.f32 %v416, %v449
        %v466 = vadd.f32 %v417, %v450
        %v467 = vadd.f32 %v418, %v451
        %v468 = vadd.f32 %v419, %v452
        %v469 = vadd.f32 %v420, %v453
        %v470 = vadd.f32 %v421, %v454
        %v471 = vld [vmem:[%s227 + $0x7] sm:$0xff]
        %v472 = vld [vmem:[%s227 + $0xf] sm:$0xff]
        %v473 = vld [vmem:[%s227 + $0x27] sm:$0xff]
        %v474 = vld [vmem:[%s227 + $0x2f] sm:$0xff]
        %v475 = vld [vmem:[%s227 + $0x47] sm:$0xff]
        %v476 = vld [vmem:[%s227 + $0x4f] sm:$0xff]
        %v477 = vld [vmem:[%s227 + $0x67] sm:$0xff]
        %v478 = vld [vmem:[%s227 + $0x6f] sm:$0xff]
        %v479 = vld [vmem:[%s227 + $0x87] sm:$0xff]
        %v480 = vld [vmem:[%s227 + $0x8f] sm:$0xff]
        %v481 = vld [vmem:[%s227 + $0xa7] sm:$0xff]
        %v482 = vld [vmem:[%s227 + $0xaf] sm:$0xff]
        %v483 = vld [vmem:[%s227 + $0xc7] sm:$0xff]
        %v484 = vld [vmem:[%s227 + $0xcf] sm:$0xff]
        %v485 = vld [vmem:[%s227 + $0xe7] sm:$0xff]
        %v486 = vld [vmem:[%s227 + $0xef] sm:$0xff]
        %v487 = vperm.slane %v211, 0
        %v488 = vmul.f32 %v471, %v487
        %v489 = vmul.f32 %v472, %v487
        %v490 = vmul.f32 %v473, %v487
        %v491 = vmul.f32 %v474, %v487
        %v492 = vmul.f32 %v475, %v487
        %v493 = vmul.f32 %v476, %v487
        %v494 = vmul.f32 %v477, %v487
        %v495 = vmul.f32 %v478, %v487
        %v496 = vmul.f32 %v479, %v487
        %v497 = vmul.f32 %v480, %v487
        %v498 = vmul.f32 %v481, %v487
        %v499 = vmul.f32 %v482, %v487
        %v500 = vmul.f32 %v483, %v487
        %v501 = vmul.f32 %v484, %v487
        %v502 = vmul.f32 %v485, %v487
        %v503 = vmul.f32 %v486, %v487
        %v504 = vadd.f32 %v455, %v488
        %v505 = vadd.f32 %v456, %v489
        %v506 = vadd.f32 %v457, %v490
        %v507 = vadd.f32 %v458, %v491
        %v508 = vadd.f32 %v459, %v492
        %v509 = vadd.f32 %v460, %v493
        %v510 = vadd.f32 %v461, %v494
        %v511 = vadd.f32 %v462, %v495
        %v512 = vadd.f32 %v463, %v496
        %v513 = vadd.f32 %v464, %v497
        %v514 = vadd.f32 %v465, %v498
        %v515 = vadd.f32 %v466, %v499
        %v516 = vadd.f32 %v467, %v500
        %v517 = vadd.f32 %v468, %v501
        %v518 = vadd.f32 %v469, %v502
        %v519 = vadd.f32 %v470, %v503
        %v520 = vld [vmem:[%s227 + $0x8] sm:$0xff]
        %v521 = vld [vmem:[%s227 + $0x10] sm:$0xff]
        %v522 = vld [vmem:[%s227 + $0x28] sm:$0xff]
        %v523 = vld [vmem:[%s227 + $0x30] sm:$0xff]
        %v524 = vld [vmem:[%s227 + $0x48] sm:$0xff]
        %v525 = vld [vmem:[%s227 + $0x50] sm:$0xff]
        %v526 = vld [vmem:[%s227 + $0x68] sm:$0xff]
        %v527 = vld [vmem:[%s227 + $0x70] sm:$0xff]
        %v528 = vld [vmem:[%s227 + $0x88] sm:$0xff]
        %v529 = vld [vmem:[%s227 + $0x90] sm:$0xff]
        %v530 = vld [vmem:[%s227 + $0xa8] sm:$0xff]
        %v531 = vld [vmem:[%s227 + $0xb0] sm:$0xff]
        %v532 = vld [vmem:[%s227 + $0xc8] sm:$0xff]
        %v533 = vld [vmem:[%s227 + $0xd0] sm:$0xff]
        %v534 = vld [vmem:[%s227 + $0xe8] sm:$0xff]
        %v535 = vld [vmem:[%s227 + $0xf0] sm:$0xff]
        %v536 = vperm.slane %v212, 0
        %v537 = vmul.f32 %v520, %v536
        %v538 = vmul.f32 %v521, %v536
        %v539 = vmul.f32 %v522, %v536
        %v540 = vmul.f32 %v523, %v536
        %v541 = vmul.f32 %v524, %v536
        %v542 = vmul.f32 %v525, %v536
        %v543 = vmul.f32 %v526, %v536
        %v544 = vmul.f32 %v527, %v536
        %v545 = vmul.f32 %v528, %v536
        %v546 = vmul.f32 %v529, %v536
        %v547 = vmul.f32 %v530, %v536
        %v548 = vmul.f32 %v531, %v536
        %v549 = vmul.f32 %v532, %v536
        %v550 = vmul.f32 %v533, %v536
        %v551 = vmul.f32 %v534, %v536
        %v552 = vmul.f32 %v535, %v536
        %v553 = vadd.f32 %v504, %v537
        %v554 = vadd.f32 %v505, %v538
        %v555 = vadd.f32 %v506, %v539
        %v556 = vadd.f32 %v507, %v540
        %v557 = vadd.f32 %v508, %v541
        %v558 = vadd.f32 %v509, %v542
        %v559 = vadd.f32 %v510, %v543
        %v560 = vadd.f32 %v511, %v544
        %v561 = vadd.f32 %v512, %v545
        %v562 = vadd.f32 %v513, %v546
        %v563 = vadd.f32 %v514, %v547
        %v564 = vadd.f32 %v515, %v548
        %v565 = vadd.f32 %v516, %v549
        %v566 = vadd.f32 %v517, %v550
        %v567 = vadd.f32 %v518, %v551
        %v568 = vadd.f32 %v519, %v552
        %v569 = vld [vmem:[%s227 + $0x9] sm:$0xff]
        %v570 = vld [vmem:[%s227 + $0x11] sm:$0xff]
        %v571 = vld [vmem:[%s227 + $0x29] sm:$0xff]
        %v572 = vld [vmem:[%s227 + $0x31] sm:$0xff]
        %v573 = vld [vmem:[%s227 + $0x49] sm:$0xff]
        %v574 = vld [vmem:[%s227 + $0x51] sm:$0xff]
        %v575 = vld [vmem:[%s227 + $0x69] sm:$0xff]
        %v576 = vld [vmem:[%s227 + $0x71] sm:$0xff]
        %v577 = vld [vmem:[%s227 + $0x89] sm:$0xff]
        %v578 = vld [vmem:[%s227 + $0x91] sm:$0xff]
        %v579 = vld [vmem:[%s227 + $0xa9] sm:$0xff]
        %v580 = vld [vmem:[%s227 + $0xb1] sm:$0xff]
        %v581 = vld [vmem:[%s227 + $0xc9] sm:$0xff]
        %v582 = vld [vmem:[%s227 + $0xd1] sm:$0xff]
        %v583 = vld [vmem:[%s227 + $0xe9] sm:$0xff]
        %v584 = vld [vmem:[%s227 + $0xf1] sm:$0xff]
        %v585 = vperm.slane %v213, 0
        %v586 = vmul.f32 %v569, %v585
        %v587 = vmul.f32 %v570, %v585
        %v588 = vmul.f32 %v571, %v585
        %v589 = vmul.f32 %v572, %v585
        %v590 = vmul.f32 %v573, %v585
        %v591 = vmul.f32 %v574, %v585
        %v592 = vmul.f32 %v575, %v585
        %v593 = vmul.f32 %v576, %v585
        %v594 = vmul.f32 %v577, %v585
        %v595 = vmul.f32 %v578, %v585
        %v596 = vmul.f32 %v579, %v585
        %v597 = vmul.f32 %v580, %v585
        %v598 = vmul.f32 %v581, %v585
        %v599 = vmul.f32 %v582, %v585
        %v600 = vmul.f32 %v583, %v585
        %v601 = vmul.f32 %v584, %v585
        %v602 = vadd.f32 %v553, %v586
        %v603 = vadd.f32 %v554, %v587
        %v604 = vadd.f32 %v555, %v588
        %v605 = vadd.f32 %v556, %v589
        %v606 = vadd.f32 %v557, %v590
        %v607 = vadd.f32 %v558, %v591
        %v608 = vadd.f32 %v559, %v592
        %v609 = vadd.f32 %v560, %v593
        %v610 = vadd.f32 %v561, %v594
        %v611 = vadd.f32 %v562, %v595
        %v612 = vadd.f32 %v563, %v596
        %v613 = vadd.f32 %v564, %v597
        %v614 = vadd.f32 %v565, %v598
        %v615 = vadd.f32 %v566, %v599
        %v616 = vadd.f32 %v567, %v600
        %v617 = vadd.f32 %v568, %v601
        %s618 = scalar_lea.vmem [#allocation2], 64
        %v619 = vld [vmem:[%s618 + $0x7] sm:$0xff]
        %v620 = vld [vmem:[%s618 + $0xf] sm:$0xff]
        %v621 = vld [vmem:[%s618 + $0x27] sm:$0xff]
        %v622 = vld [vmem:[%s618 + $0x2f] sm:$0xff]
        %v623 = vld [vmem:[%s618 + $0x47] sm:$0xff]
        %v624 = vld [vmem:[%s618 + $0x4f] sm:$0xff]
        %v625 = vld [vmem:[%s618 + $0x67] sm:$0xff]
        %v626 = vld [vmem:[%s618 + $0x6f] sm:$0xff]
        %v627 = vld [vmem:[%s618 + $0x87] sm:$0xff]
        %v628 = vld [vmem:[%s618 + $0x8f] sm:$0xff]
        %v629 = vld [vmem:[%s618 + $0xa7] sm:$0xff]
        %v630 = vld [vmem:[%s618 + $0xaf] sm:$0xff]
        %v631 = vld [vmem:[%s618 + $0xc7] sm:$0xff]
        %v632 = vld [vmem:[%s618 + $0xcf] sm:$0xff]
        %v633 = vld [vmem:[%s618 + $0xe7] sm:$0xff]
        %v634 = vld [vmem:[%s618 + $0xef] sm:$0xff]
        %v635 = vperm.slane %v215, 0
        %v636 = vmul.f32 %v619, %v635
        %v637 = vmul.f32 %v620, %v635
        %v638 = vmul.f32 %v621, %v635
        %v639 = vmul.f32 %v622, %v635
        %v640 = vmul.f32 %v623, %v635
        %v641 = vmul.f32 %v624, %v635
        %v642 = vmul.f32 %v625, %v635
        %v643 = vmul.f32 %v626, %v635
        %v644 = vmul.f32 %v627, %v635
        %v645 = vmul.f32 %v628, %v635
        %v646 = vmul.f32 %v629, %v635
        %v647 = vmul.f32 %v630, %v635
        %v648 = vmul.f32 %v631, %v635
        %v649 = vmul.f32 %v632, %v635
        %v650 = vmul.f32 %v633, %v635
        %v651 = vmul.f32 %v634, %v635
        %v652 = vadd.f32 %v602, %v636
        %v653 = vadd.f32 %v603, %v637
        %v654 = vadd.f32 %v604, %v638
        %v655 = vadd.f32 %v605, %v639
        %v656 = vadd.f32 %v606, %v640
        %v657 = vadd.f32 %v607, %v641
        %v658 = vadd.f32 %v608, %v642
        %v659 = vadd.f32 %v609, %v643
        %v660 = vadd.f32 %v610, %v644
        %v661 = vadd.f32 %v611, %v645
        %v662 = vadd.f32 %v612, %v646
        %v663 = vadd.f32 %v613, %v647
        %v664 = vadd.f32 %v614, %v648
        %v665 = vadd.f32 %v615, %v649
        %v666 = vadd.f32 %v616, %v650
        %v667 = vadd.f32 %v617, %v651
        %v668 = vld [vmem:[%s618 + $0x8] sm:$0xff]
        %v669 = vld [vmem:[%s618 + $0x10] sm:$0xff]
        %v670 = vld [vmem:[%s618 + $0x28] sm:$0xff]
        %v671 = vld [vmem:[%s618 + $0x30] sm:$0xff]
        %v672 = vld [vmem:[%s618 + $0x48] sm:$0xff]
        %v673 = vld [vmem:[%s618 + $0x50] sm:$0xff]
        %v674 = vld [vmem:[%s618 + $0x68] sm:$0xff]
        %v675 = vld [vmem:[%s618 + $0x70] sm:$0xff]
        %v676 = vld [vmem:[%s618 + $0x88] sm:$0xff]
        %v677 = vld [vmem:[%s618 + $0x90] sm:$0xff]
        %v678 = vld [vmem:[%s618 + $0xa8] sm:$0xff]
        %v679 = vld [vmem:[%s618 + $0xb0] sm:$0xff]
        %v680 = vld [vmem:[%s618 + $0xc8] sm:$0xff]
        %v681 = vld [vmem:[%s618 + $0xd0] sm:$0xff]
        %v682 = vld [vmem:[%s618 + $0xe8] sm:$0xff]
        %v683 = vld [vmem:[%s618 + $0xf0] sm:$0xff]
        %v684 = vperm.slane %v216, 0
        %v685 = vmul.f32 %v668, %v684
        %v686 = vmul.f32 %v669, %v684
        %v687 = vmul.f32 %v670, %v684
        %v688 = vmul.f32 %v671, %v684
        %v689 = vmul.f32 %v672, %v684
        %v690 = vmul.f32 %v673, %v684
        %v691 = vmul.f32 %v674, %v684
        %v692 = vmul.f32 %v675, %v684
        %v693 = vmul.f32 %v676, %v684
        %v694 = vmul.f32 %v677, %v684
        %v695 = vmul.f32 %v678, %v684
        %v696 = vmul.f32 %v679, %v684
        %v697 = vmul.f32 %v680, %v684
        %v698 = vmul.f32 %v681, %v684
        %v699 = vmul.f32 %v682, %v684
        %v700 = vmul.f32 %v683, %v684
        %v701 = vadd.f32 %v652, %v685
        %v702 = vadd.f32 %v653, %v686
        %v703 = vadd.f32 %v654, %v687
        %v704 = vadd.f32 %v655, %v688
        %v705 = vadd.f32 %v656, %v689
        %v706 = vadd.f32 %v657, %v690
        %v707 = vadd.f32 %v658, %v691
        %v708 = vadd.f32 %v659, %v692
        %v709 = vadd.f32 %v660, %v693
        %v710 = vadd.f32 %v661, %v694
        %v711 = vadd.f32 %v662, %v695
        %v712 = vadd.f32 %v663, %v696
        %v713 = vadd.f32 %v664, %v697
        %v714 = vadd.f32 %v665, %v698
        %v715 = vadd.f32 %v666, %v699
        %v716 = vadd.f32 %v667, %v700
        %v717 = vld [vmem:[%s618 + $0x9] sm:$0xff]
        %v718 = vld [vmem:[%s618 + $0x11] sm:$0xff]
        %v719 = vld [vmem:[%s618 + $0x29] sm:$0xff]
        %v720 = vld [vmem:[%s618 + $0x31] sm:$0xff]
        %v721 = vld [vmem:[%s618 + $0x49] sm:$0xff]
        %v722 = vld [vmem:[%s618 + $0x51] sm:$0xff]
        %v723 = vld [vmem:[%s618 + $0x69] sm:$0xff]
        %v724 = vld [vmem:[%s618 + $0x71] sm:$0xff]
        %v725 = vld [vmem:[%s618 + $0x89] sm:$0xff]
        %v726 = vld [vmem:[%s618 + $0x91] sm:$0xff]
        %v727 = vld [vmem:[%s618 + $0xa9] sm:$0xff]
        %v728 = vld [vmem:[%s618 + $0xb1] sm:$0xff]
        %v729 = vld [vmem:[%s618 + $0xc9] sm:$0xff]
        %v730 = vld [vmem:[%s618 + $0xd1] sm:$0xff]
        %v731 = vld [vmem:[%s618 + $0xe9] sm:$0xff]
        %v732 = vld [vmem:[%s618 + $0xf1] sm:$0xff]
        %v733 = vperm.slane %v217, 0
        %v734 = vmul.f32 %v717, %v733
        %v735 = vmul.f32 %v718, %v733
        %v736 = vmul.f32 %v719, %v733
        %v737 = vmul.f32 %v720, %v733
        %v738 = vmul.f32 %v721, %v733
        %v739 = vmul.f32 %v722, %v733
        %v740 = vmul.f32 %v723, %v733
        %v741 = vmul.f32 %v724, %v733
        %v742 = vmul.f32 %v725, %v733
        %v743 = vmul.f32 %v726, %v733
        %v744 = vmul.f32 %v727, %v733
        %v745 = vmul.f32 %v728, %v733
        %v746 = vmul.f32 %v729, %v733
        %v747 = vmul.f32 %v730, %v733
        %v748 = vmul.f32 %v731, %v733
        %v749 = vmul.f32 %v732, %v733
        %v750 = vadd.f32 %v701, %v734
        %v751 = vadd.f32 %v702, %v735
        %v752 = vadd.f32 %v703, %v736
        %v753 = vadd.f32 %v704, %v737
        %v754 = vadd.f32 %v705, %v738
        %v755 = vadd.f32 %v706, %v739
        %v756 = vadd.f32 %v707, %v740
        %v757 = vadd.f32 %v708, %v741
        %v758 = vadd.f32 %v709, %v742
        %v759 = vadd.f32 %v710, %v743
        %v760 = vadd.f32 %v711, %v744
        %v761 = vadd.f32 %v712, %v745
        %v762 = vadd.f32 %v713, %v746
        %v763 = vadd.f32 %v714, %v747
        %v764 = vadd.f32 %v715, %v748
        %v765 = vadd.f32 %v716, %v749
        %766 = vst [vmem:[%s196] sm:$0xff] %v750
        %767 = vst [vmem:[%s196 + $0x8] sm:$0xff] %v751
        %768 = vst [vmem:[%s196 + $0x10] sm:$0xff] %v752
        %769 = vst [vmem:[%s196 + $0x18] sm:$0xff] %v753
        %770 = vst [vmem:[%s196 + $0x20] sm:$0xff] %v754
        %771 = vst [vmem:[%s196 + $0x28] sm:$0xff] %v755
        %772 = vst [vmem:[%s196 + $0x30] sm:$0xff] %v756
        %773 = vst [vmem:[%s196 + $0x38] sm:$0xff] %v757
        %774 = vst [vmem:[%s196 + $0x40] sm:$0xff] %v758
        %775 = vst [vmem:[%s196 + $0x48] sm:$0xff] %v759
        %776 = vst [vmem:[%s196 + $0x50] sm:$0xff] %v760
        %777 = vst [vmem:[%s196 + $0x58] sm:$0xff] %v761
        %778 = vst [vmem:[%s196 + $0x60] sm:$0xff] %v762
        %779 = vst [vmem:[%s196 + $0x68] sm:$0xff] %v763
        %780 = vst [vmem:[%s196 + $0x70] sm:$0xff] %v764
        %781 = vst [vmem:[%s196 + $0x78] sm:$0xff] %v765
        %s782 = scalar_lea.vmem [#allocation2], 256
        %v783 = vld [vmem:[%s782 + $0x7] sm:$0xff]
        %v784 = vld [vmem:[%s782 + $0xf] sm:$0xff]
        %v785 = vld [vmem:[%s782 + $0x27] sm:$0xff]
        %v786 = vld [vmem:[%s782 + $0x2f] sm:$0xff]
        %v787 = vld [vmem:[%s782 + $0x47] sm:$0xff]
        %v788 = vld [vmem:[%s782 + $0x4f] sm:$0xff]
        %v789 = vld [vmem:[%s782 + $0x67] sm:$0xff]
        %v790 = vld [vmem:[%s782 + $0x6f] sm:$0xff]
        %v791 = vld [vmem:[%s782 + $0x87] sm:$0xff]
        %v792 = vld [vmem:[%s782 + $0x8f] sm:$0xff]
        %v793 = vld [vmem:[%s782 + $0xa7] sm:$0xff]
        %v794 = vld [vmem:[%s782 + $0xaf] sm:$0xff]
        %v795 = vld [vmem:[%s782 + $0xc7] sm:$0xff]
        %v796 = vld [vmem:[%s782 + $0xcf] sm:$0xff]
        %v797 = vld [vmem:[%s782 + $0xe7] sm:$0xff]
        %v798 = vld [vmem:[%s782 + $0xef] sm:$0xff]
        %v799 = vmul.f32 %v783, %v340
        %v800 = vmul.f32 %v784, %v340
        %v801 = vmul.f32 %v785, %v340
        %v802 = vmul.f32 %v786, %v340
        %v803 = vmul.f32 %v787, %v340
        %v804 = vmul.f32 %v788, %v340
        %v805 = vmul.f32 %v789, %v340
        %v806 = vmul.f32 %v790, %v340
        %v807 = vmul.f32 %v791, %v340
        %v808 = vmul.f32 %v792, %v340
        %v809 = vmul.f32 %v793, %v340
        %v810 = vmul.f32 %v794, %v340
        %v811 = vmul.f32 %v795, %v340
        %v812 = vmul.f32 %v796, %v340
        %v813 = vmul.f32 %v797, %v340
        %v814 = vmul.f32 %v798, %v340
        %v815 = vadd.f32 %v799, 0.0
        %v816 = vadd.f32 %v800, 0.0
        %v817 = vadd.f32 %v801, 0.0
        %v818 = vadd.f32 %v802, 0.0
        %v819 = vadd.f32 %v803, 0.0
        %v820 = vadd.f32 %v804, 0.0
        %v821 = vadd.f32 %v805, 0.0
        %v822 = vadd.f32 %v806, 0.0
        %v823 = vadd.f32 %v807, 0.0
        %v824 = vadd.f32 %v808, 0.0
        %v825 = vadd.f32 %v809, 0.0
        %v826 = vadd.f32 %v810, 0.0
        %v827 = vadd.f32 %v811, 0.0
        %v828 = vadd.f32 %v812, 0.0
        %v829 = vadd.f32 %v813, 0.0
        %v830 = vadd.f32 %v814, 0.0
        %v831 = vld [vmem:[%s782 + $0x8] sm:$0xff]
        %v832 = vld [vmem:[%s782 + $0x10] sm:$0xff]
        %v833 = vld [vmem:[%s782 + $0x28] sm:$0xff]
        %v834 = vld [vmem:[%s782 + $0x30] sm:$0xff]
        %v835 = vld [vmem:[%s782 + $0x48] sm:$0xff]
        %v836 = vld [vmem:[%s782 + $0x50] sm:$0xff]
        %v837 = vld [vmem:[%s782 + $0x68] sm:$0xff]
        %v838 = vld [vmem:[%s782 + $0x70] sm:$0xff]
        %v839 = vld [vmem:[%s782 + $0x88] sm:$0xff]
        %v840 = vld [vmem:[%s782 + $0x90] sm:$0xff]
        %v841 = vld [vmem:[%s782 + $0xa8] sm:$0xff]
        %v842 = vld [vmem:[%s782 + $0xb0] sm:$0xff]
        %v843 = vld [vmem:[%s782 + $0xc8] sm:$0xff]
        %v844 = vld [vmem:[%s782 + $0xd0] sm:$0xff]
        %v845 = vld [vmem:[%s782 + $0xe8] sm:$0xff]
        %v846 = vld [vmem:[%s782 + $0xf0] sm:$0xff]
        %v847 = vmul.f32 %v831, %v389
        %v848 = vmul.f32 %v832, %v389
        %v849 = vmul.f32 %v833, %v389
        %v850 = vmul.f32 %v834, %v389
        %v851 = vmul.f32 %v835, %v389
        %v852 = vmul.f32 %v836, %v389
        %v853 = vmul.f32 %v837, %v389
        %v854 = vmul.f32 %v838, %v389
        %v855 = vmul.f32 %v839, %v389
        %v856 = vmul.f32 %v840, %v389
        %v857 = vmul.f32 %v841, %v389
        %v858 = vmul.f32 %v842, %v389
        %v859 = vmul.f32 %v843, %v389
        %v860 = vmul.f32 %v844, %v389
        %v861 = vmul.f32 %v845, %v389
        %v862 = vmul.f32 %v846, %v389
        %v863 = vadd.f32 %v815, %v847
        %v864 = vadd.f32 %v816, %v848
        %v865 = vadd.f32 %v817, %v849
        %v866 = vadd.f32 %v818, %v850
        %v867 = vadd.f32 %v819, %v851
        %v868 = vadd.f32 %v820, %v852
        %v869 = vadd.f32 %v821, %v853
        %v870 = vadd.f32 %v822, %v854
        %v871 = vadd.f32 %v823, %v855
        %v872 = vadd.f32 %v824, %v856
        %v873 = vadd.f32 %v825, %v857
        %v874 = vadd.f32 %v826, %v858
        %v875 = vadd.f32 %v827, %v859
        %v876 = vadd.f32 %v828, %v860
        %v877 = vadd.f32 %v829, %v861
        %v878 = vadd.f32 %v830, %v862
        %v879 = vld [vmem:[%s782 + $0x9] sm:$0xff]
        %v880 = vld [vmem:[%s782 + $0x11] sm:$0xff]
        %v881 = vld [vmem:[%s782 + $0x29] sm:$0xff]
        %v882 = vld [vmem:[%s782 + $0x31] sm:$0xff]
        %v883 = vld [vmem:[%s782 + $0x49] sm:$0xff]
        %v884 = vld [vmem:[%s782 + $0x51] sm:$0xff]
        %v885 = vld [vmem:[%s782 + $0x69] sm:$0xff]
        %v886 = vld [vmem:[%s782 + $0x71] sm:$0xff]
        %v887 = vld [vmem:[%s782 + $0x89] sm:$0xff]
        %v888 = vld [vmem:[%s782 + $0x91] sm:$0xff]
        %v889 = vld [vmem:[%s782 + $0xa9] sm:$0xff]
        %v890 = vld [vmem:[%s782 + $0xb1] sm:$0xff]
        %v891 = vld [vmem:[%s782 + $0xc9] sm:$0xff]
        %v892 = vld [vmem:[%s782 + $0xd1] sm:$0xff]
        %v893 = vld [vmem:[%s782 + $0xe9] sm:$0xff]
        %v894 = vld [vmem:[%s782 + $0xf1] sm:$0xff]
        %v895 = vmul.f32 %v879, %v438
        %v896 = vmul.f32 %v880, %v438
        %v897 = vmul.f32 %v881, %v438
        %v898 = vmul.f32 %v882, %v438
        %v899 = vmul.f32 %v883, %v438
        %v900 = vmul.f32 %v884, %v438
        %v901 = vmul.f32 %v885, %v438
        %v902 = vmul.f32 %v886, %v438
        %v903 = vmul.f32 %v887, %v438
        %v904 = vmul.f32 %v888, %v438
        %v905 = vmul.f32 %v889, %v438
        %v906 = vmul.f32 %v890, %v438
        %v907 = vmul.f32 %v891, %v438
        %v908 = vmul.f32 %v892, %v438
        %v909 = vmul.f32 %v893, %v438
        %v910 = vmul.f32 %v894, %v438
        %v911 = vadd.f32 %v863, %v895
        %v912 = vadd.f32 %v864, %v896
        %v913 = vadd.f32 %v865, %v897
        %v914 = vadd.f32 %v866, %v898
        %v915 = vadd.f32 %v867, %v899
        %v916 = vadd.f32 %v868, %v900
        %v917 = vadd.f32 %v869, %v901
        %v918 = vadd.f32 %v870, %v902
        %v919 = vadd.f32 %v871, %v903
        %v920 = vadd.f32 %v872, %v904
        %v921 = vadd.f32 %v873, %v905
        %v922 = vadd.f32 %v874, %v906
        %v923 = vadd.f32 %v875, %v907
        %v924 = vadd.f32 %v876, %v908
        %v925 = vadd.f32 %v877, %v909
        %v926 = vadd.f32 %v878, %v910
        %s927 = scalar_lea.vmem [#allocation2], 288
        %v928 = vld [vmem:[%s927 + $0x7] sm:$0xff]
        %v929 = vld [vmem:[%s927 + $0xf] sm:$0xff]
        %v930 = vld [vmem:[%s927 + $0x27] sm:$0xff]
        %v931 = vld [vmem:[%s927 + $0x2f] sm:$0xff]
        %v932 = vld [vmem:[%s927 + $0x47] sm:$0xff]
        %v933 = vld [vmem:[%s927 + $0x4f] sm:$0xff]
        %v934 = vld [vmem:[%s927 + $0x67] sm:$0xff]
        %v935 = vld [vmem:[%s927 + $0x6f] sm:$0xff]
        %v936 = vld [vmem:[%s927 + $0x87] sm:$0xff]
        %v937 = vld [vmem:[%s927 + $0x8f] sm:$0xff]
        %v938 = vld [vmem:[%s927 + $0xa7] sm:$0xff]
        %v939 = vld [vmem:[%s927 + $0xaf] sm:$0xff]
        %v940 = vld [vmem:[%s927 + $0xc7] sm:$0xff]
        %v941 = vld [vmem:[%s927 + $0xcf] sm:$0xff]
        %v942 = vld [vmem:[%s927 + $0xe7] sm:$0xff]
        %v943 = vld [vmem:[%s927 + $0xef] sm:$0xff]
        %v944 = vmul.f32 %v928, %v487
        %v945 = vmul.f32 %v929, %v487
        %v946 = vmul.f32 %v930, %v487
        %v947 = vmul.f32 %v931, %v487
        %v948 = vmul.f32 %v932, %v487
        %v949 = vmul.f32 %v933, %v487
        %v950 = vmul.f32 %v934, %v487
        %v951 = vmul.f32 %v935, %v487
        %v952 = vmul.f32 %v936, %v487
        %v953 = vmul.f32 %v937, %v487
        %v954 = vmul.f32 %v938, %v487
        %v955 = vmul.f32 %v939, %v487
        %v956 = vmul.f32 %v940, %v487
        %v957 = vmul.f32 %v941, %v487
        %v958 = vmul.f32 %v942, %v487
        %v959 = vmul.f32 %v943, %v487
        %v960 = vadd.f32 %v911, %v944
        %v961 = vadd.f32 %v912, %v945
        %v962 = vadd.f32 %v913, %v946
        %v963 = vadd.f32 %v914, %v947
        %v964 = vadd.f32 %v915, %v948
        %v965 = vadd.f32 %v916, %v949
        %v966 = vadd.f32 %v917, %v950
        %v967 = vadd.f32 %v918, %v951
        %v968 = vadd.f32 %v919, %v952
        %v969 = vadd.f32 %v920, %v953
        %v970 = vadd.f32 %v921, %v954
        %v971 = vadd.f32 %v922, %v955
        %v972 = vadd.f32 %v923, %v956
        %v973 = vadd.f32 %v924, %v957
        %v974 = vadd.f32 %v925, %v958
        %v975 = vadd.f32 %v926, %v959
        %v976 = vld [vmem:[%s927 + $0x8] sm:$0xff]
        %v977 = vld [vmem:[%s927 + $0x10] sm:$0xff]
        %v978 = vld [vmem:[%s927 + $0x28] sm:$0xff]
        %v979 = vld [vmem:[%s927 + $0x30] sm:$0xff]
        %v980 = vld [vmem:[%s927 + $0x48] sm:$0xff]
        %v981 = vld [vmem:[%s927 + $0x50] sm:$0xff]
        %v982 = vld [vmem:[%s927 + $0x68] sm:$0xff]
        %v983 = vld [vmem:[%s927 + $0x70] sm:$0xff]
        %v984 = vld [vmem:[%s927 + $0x88] sm:$0xff]
        %v985 = vld [vmem:[%s927 + $0x90] sm:$0xff]
        %v986 = vld [vmem:[%s927 + $0xa8] sm:$0xff]
        %v987 = vld [vmem:[%s927 + $0xb0] sm:$0xff]
        %v988 = vld [vmem:[%s927 + $0xc8] sm:$0xff]
        %v989 = vld [vmem:[%s927 + $0xd0] sm:$0xff]
        %v990 = vld [vmem:[%s927 + $0xe8] sm:$0xff]
        %v991 = vld [vmem:[%s927 + $0xf0] sm:$0xff]
        %v992 = vmul.f32 %v976, %v536
        %v993 = vmul.f32 %v977, %v536
        %v994 = vmul.f32 %v978, %v536
        %v995 = vmul.f32 %v979, %v536
        %v996 = vmul.f32 %v980, %v536
        %v997 = vmul.f32 %v981, %v536
        %v998 = vmul.f32 %v982, %v536
        %v999 = vmul.f32 %v983, %v536
        %v1000 = vmul.f32 %v984, %v536
        %v1001 = vmul.f32 %v985, %v536
        %v1002 = vmul.f32 %v986, %v536
        %v1003 = vmul.f32 %v987, %v536
        %v1004 = vmul.f32 %v988, %v536
        %v1005 = vmul.f32 %v989, %v536
        %v1006 = vmul.f32 %v990, %v536
        %v1007 = vmul.f32 %v991, %v536
        %v1008 = vadd.f32 %v960, %v992
        %v1009 = vadd.f32 %v961, %v993
        %v1010 = vadd.f32 %v962, %v994
        %v1011 = vadd.f32 %v963, %v995
        %v1012 = vadd.f32 %v964, %v996
        %v1013 = vadd.f32 %v965, %v997
        %v1014 = vadd.f32 %v966, %v998
        %v1015 = vadd.f32 %v967, %v999
        %v1016 = vadd.f32 %v968, %v1000
        %v1017 = vadd.f32 %v969, %v1001
        %v1018 = vadd.f32 %v970, %v1002
        %v1019 = vadd.f32 %v971, %v1003
        %v1020 = vadd.f32 %v972, %v1004
        %v1021 = vadd.f32 %v973, %v1005
        %v1022 = vadd.f32 %v974, %v1006
        %v1023 = vadd.f32 %v975, %v1007
        %v1024 = vld [vmem:[%s927 + $0x9] sm:$0xff]
        %v1025 = vld [vmem:[%s927 + $0x11] sm:$0xff]
        %v1026 = vld [vmem:[%s927 + $0x29] sm:$0xff]
        %v1027 = vld [vmem:[%s927 + $0x31] sm:$0xff]
        %v1028 = vld [vmem:[%s927 + $0x49] sm:$0xff]
        %v1029 = vld [vmem:[%s927 + $0x51] sm:$0xff]
        %v1030 = vld [vmem:[%s927 + $0x69] sm:$0xff]
        %v1031 = vld [vmem:[%s927 + $0x71] sm:$0xff]
        %v1032 = vld [vmem:[%s927 + $0x89] sm:$0xff]
        %v1033 = vld [vmem:[%s927 + $0x91] sm:$0xff]
        %v1034 = vld [vmem:[%s927 + $0xa9] sm:$0xff]
        %v1035 = vld [vmem:[%s927 + $0xb1] sm:$0xff]
        %v1036 = vld [vmem:[%s927 + $0xc9] sm:$0xff]
        %v1037 = vld [vmem:[%s927 + $0xd1] sm:$0xff]
        %v1038 = vld [vmem:[%s927 + $0xe9] sm:$0xff]
        %v1039 = vld [vmem:[%s927 + $0xf1] sm:$0xff]
        %v1040 = vmul.f32 %v1024, %v585
        %v1041 = vmul.f32 %v1025, %v585
        %v1042 = vmul.f32 %v1026, %v585
        %v1043 = vmul.f32 %v1027, %v585
        %v1044 = vmul.f32 %v1028, %v585
        %v1045 = vmul.f32 %v1029, %v585
        %v1046 = vmul.f32 %v1030, %v585
        %v1047 = vmul.f32 %v1031, %v585
        %v1048 = vmul.f32 %v1032, %v585
        %v1049 = vmul.f32 %v1033, %v585
        %v1050 = vmul.f32 %v1034, %v585
        %v1051 = vmul.f32 %v1035, %v585
        %v1052 = vmul.f32 %v1036, %v585
        %v1053 = vmul.f32 %v1037, %v585
        %v1054 = vmul.f32 %v1038, %v585
        %v1055 = vmul.f32 %v1039, %v585
        %v1056 = vadd.f32 %v1008, %v1040
        %v1057 = vadd.f32 %v1009, %v1041
        %v1058 = vadd.f32 %v1010, %v1042
        %v1059 = vadd.f32 %v1011, %v1043
        %v1060 = vadd.f32 %v1012, %v1044
        %v1061 = vadd.f32 %v1013, %v1045
        %v1062 = vadd.f32 %v1014, %v1046
        %v1063 = vadd.f32 %v1015, %v1047
        %v1064 = vadd.f32 %v1016, %v1048
        %v1065 = vadd.f32 %v1017, %v1049
        %v1066 = vadd.f32 %v1018, %v1050
        %v1067 = vadd.f32 %v1019, %v1051
        %v1068 = vadd.f32 %v1020, %v1052
        %v1069 = vadd.f32 %v1021, %v1053
        %v1070 = vadd.f32 %v1022, %v1054
        %v1071 = vadd.f32 %v1023, %v1055
        %s1072 = scalar_lea.vmem [#allocation2], 320
        %v1073 = vld [vmem:[%s1072 + $0x7] sm:$0xff]
        %v1074 = vld [vmem:[%s1072 + $0xf] sm:$0xff]
        %v1075 = vld [vmem:[%s1072 + $0x27] sm:$0xff]
        %v1076 = vld [vmem:[%s1072 + $0x2f] sm:$0xff]
        %v1077 = vld [vmem:[%s1072 + $0x47] sm:$0xff]
        %v1078 = vld [vmem:[%s1072 + $0x4f] sm:$0xff]
        %v1079 = vld [vmem:[%s1072 + $0x67] sm:$0xff]
        %v1080 = vld [vmem:[%s1072 + $0x6f] sm:$0xff]
        %v1081 = vld [vmem:[%s1072 + $0x87] sm:$0xff]
        %v1082 = vld [vmem:[%s1072 + $0x8f] sm:$0xff]
        %v1083 = vld [vmem:[%s1072 + $0xa7] sm:$0xff]
        %v1084 = vld [vmem:[%s1072 + $0xaf] sm:$0xff]
        %v1085 = vld [vmem:[%s1072 + $0xc7] sm:$0xff]
        %v1086 = vld [vmem:[%s1072 + $0xcf] sm:$0xff]
        %v1087 = vld [vmem:[%s1072 + $0xe7] sm:$0xff]
        %v1088 = vld [vmem:[%s1072 + $0xef] sm:$0xff]
        %v1089 = vmul.f32 %v1073, %v635
        %v1090 = vmul.f32 %v1074, %v635
        %v1091 = vmul.f32 %v1075, %v635
        %v1092 = vmul.f32 %v1076, %v635
        %v1093 = vmul.f32 %v1077, %v635
        %v1094 = vmul.f32 %v1078, %v635
        %v1095 = vmul.f32 %v1079, %v635
        %v1096 = vmul.f32 %v1080, %v635
        %v1097 = vmul.f32 %v1081, %v635
        %v1098 = vmul.f32 %v1082, %v635
        %v1099 = vmul.f32 %v1083, %v635
        %v1100 = vmul.f32 %v1084, %v635
        %v1101 = vmul.f32 %v1085, %v635
        %v1102 = vmul.f32 %v1086, %v635
        %v1103 = vmul.f32 %v1087, %v635
        %v1104 = vmul.f32 %v1088, %v635
        %v1105 = vadd.f32 %v1056, %v1089
        %v1106 = vadd.f32 %v1057, %v1090
        %v1107 = vadd.f32 %v1058, %v1091
        %v1108 = vadd.f32 %v1059, %v1092
        %v1109 = vadd.f32 %v1060, %v1093
        %v1110 = vadd.f32 %v1061, %v1094
        %v1111 = vadd.f32 %v1062, %v1095
        %v1112 = vadd.f32 %v1063, %v1096
        %v1113 = vadd.f32 %v1064, %v1097
        %v1114 = vadd.f32 %v1065, %v1098
        %v1115 = vadd.f32 %v1066, %v1099
        %v1116 = vadd.f32 %v1067, %v1100
        %v1117 = vadd.f32 %v1068, %v1101
        %v1118 = vadd.f32 %v1069, %v1102
        %v1119 = vadd.f32 %v1070, %v1103
        %v1120 = vadd.f32 %v1071, %v1104
        %v1121 = vld [vmem:[%s1072 + $0x8] sm:$0xff]
        %v1122 = vld [vmem:[%s1072 + $0x10] sm:$0xff]
        %v1123 = vld [vmem:[%s1072 + $0x28] sm:$0xff]
        %v1124 = vld [vmem:[%s1072 + $0x30] sm:$0xff]
        %v1125 = vld [vmem:[%s1072 + $0x48] sm:$0xff]
        %v1126 = vld [vmem:[%s1072 + $0x50] sm:$0xff]
        %v1127 = vld [vmem:[%s1072 + $0x68] sm:$0xff]
        %v1128 = vld [vmem:[%s1072 + $0x70] sm:$0xff]
        %v1129 = vld [vmem:[%s1072 + $0x88] sm:$0xff]
        %v1130 = vld [vmem:[%s1072 + $0x90] sm:$0xff]
        %v1131 = vld [vmem:[%s1072 + $0xa8] sm:$0xff]
        %v1132 = vld [vmem:[%s1072 + $0xb0] sm:$0xff]
        %v1133 = vld [vmem:[%s1072 + $0xc8] sm:$0xff]
        %v1134 = vld [vmem:[%s1072 + $0xd0] sm:$0xff]
        %v1135 = vld [vmem:[%s1072 + $0xe8] sm:$0xff]
        %v1136 = vld [vmem:[%s1072 + $0xf0] sm:$0xff]
        %v1137 = vmul.f32 %v1121, %v684
        %v1138 = vmul.f32 %v1122, %v684
        %v1139 = vmul.f32 %v1123, %v684
        %v1140 = vmul.f32 %v1124, %v684
        %v1141 = vmul.f32 %v1125, %v684
        %v1142 = vmul.f32 %v1126, %v684
        %v1143 = vmul.f32 %v1127, %v684
        %v1144 = vmul.f32 %v1128, %v684
        %v1145 = vmul.f32 %v1129, %v684
        %v1146 = vmul.f32 %v1130, %v684
        %v1147 = vmul.f32 %v1131, %v684
        %v1148 = vmul.f32 %v1132, %v684
        %v1149 = vmul.f32 %v1133, %v684
        %v1150 = vmul.f32 %v1134, %v684
        %v1151 = vmul.f32 %v1135, %v684
        %v1152 = vmul.f32 %v1136, %v684
        %v1153 = vadd.f32 %v1105, %v1137
        %v1154 = vadd.f32 %v1106, %v1138
        %v1155 = vadd.f32 %v1107, %v1139
        %v1156 = vadd.f32 %v1108, %v1140
        %v1157 = vadd.f32 %v1109, %v1141
        %v1158 = vadd.f32 %v1110, %v1142
        %v1159 = vadd.f32 %v1111, %v1143
        %v1160 = vadd.f32 %v1112, %v1144
        %v1161 = vadd.f32 %v1113, %v1145
        %v1162 = vadd.f32 %v1114, %v1146
        %v1163 = vadd.f32 %v1115, %v1147
        %v1164 = vadd.f32 %v1116, %v1148
        %v1165 = vadd.f32 %v1117, %v1149
        %v1166 = vadd.f32 %v1118, %v1150
        %v1167 = vadd.f32 %v1119, %v1151
        %v1168 = vadd.f32 %v1120, %v1152
        %v1169 = vld [vmem:[%s1072 + $0x9] sm:$0xff]
        %v1170 = vld [vmem:[%s1072 + $0x11] sm:$0xff]
        %v1171 = vld [vmem:[%s1072 + $0x29] sm:$0xff]
        %v1172 = vld [vmem:[%s1072 + $0x31] sm:$0xff]
        %v1173 = vld [vmem:[%s1072 + $0x49] sm:$0xff]
        %v1174 = vld [vmem:[%s1072 + $0x51] sm:$0xff]
        %v1175 = vld [vmem:[%s1072 + $0x69] sm:$0xff]
        %v1176 = vld [vmem:[%s1072 + $0x71] sm:$0xff]
        %v1177 = vld [vmem:[%s1072 + $0x89] sm:$0xff]
        %v1178 = vld [vmem:[%s1072 + $0x91] sm:$0xff]
        %v1179 = vld [vmem:[%s1072 + $0xa9] sm:$0xff]
        %v1180 = vld [vmem:[%s1072 + $0xb1] sm:$0xff]
        %v1181 = vld [vmem:[%s1072 + $0xc9] sm:$0xff]
        %v1182 = vld [vmem:[%s1072 + $0xd1] sm:$0xff]
        %v1183 = vld [vmem:[%s1072 + $0xe9] sm:$0xff]
        %v1184 = vld [vmem:[%s1072 + $0xf1] sm:$0xff]
        %v1185 = vmul.f32 %v1169, %v733
        %v1186 = vmul.f32 %v1170, %v733
        %v1187 = vmul.f32 %v1171, %v733
        %v1188 = vmul.f32 %v1172, %v733
        %v1189 = vmul.f32 %v1173, %v733
        %v1190 = vmul.f32 %v1174, %v733
        %v1191 = vmul.f32 %v1175, %v733
        %v1192 = vmul.f32 %v1176, %v733
        %v1193 = vmul.f32 %v1177, %v733
        %v1194 = vmul.f32 %v1178, %v733
        %v1195 = vmul.f32 %v1179, %v733
        %v1196 = vmul.f32 %v1180, %v733
        %v1197 = vmul.f32 %v1181, %v733
        %v1198 = vmul.f32 %v1182, %v733
        %v1199 = vmul.f32 %v1183, %v733
        %v1200 = vmul.f32 %v1184, %v733
        %v1201 = vadd.f32 %v1153, %v1185
        %v1202 = vadd.f32 %v1154, %v1186
        %v1203 = vadd.f32 %v1155, %v1187
        %v1204 = vadd.f32 %v1156, %v1188
        %v1205 = vadd.f32 %v1157, %v1189
        %v1206 = vadd.f32 %v1158, %v1190
        %v1207 = vadd.f32 %v1159, %v1191
        %v1208 = vadd.f32 %v1160, %v1192
        %v1209 = vadd.f32 %v1161, %v1193
        %v1210 = vadd.f32 %v1162, %v1194
        %v1211 = vadd.f32 %v1163, %v1195
        %v1212 = vadd.f32 %v1164, %v1196
        %v1213 = vadd.f32 %v1165, %v1197
        %v1214 = vadd.f32 %v1166, %v1198
        %v1215 = vadd.f32 %v1167, %v1199
        %v1216 = vadd.f32 %v1168, %v1200
        %s1217 = scalar_lea.vmem %s196, 128 [#allocation6]
        %1218 = vst [vmem:[%s1217] sm:$0xff] %v1201
        %1219 = vst [vmem:[%s1217 + $0x8] sm:$0xff] %v1202
        %1220 = vst [vmem:[%s1217 + $0x10] sm:$0xff] %v1203
        %1221 = vst [vmem:[%s1217 + $0x18] sm:$0xff] %v1204
        %1222 = vst [vmem:[%s1217 + $0x20] sm:$0xff] %v1205
        %1223 = vst [vmem:[%s1217 + $0x28] sm:$0xff] %v1206
        %1224 = vst [vmem:[%s1217 + $0x30] sm:$0xff] %v1207
        %1225 = vst [vmem:[%s1217 + $0x38] sm:$0xff] %v1208
        %1226 = vst [vmem:[%s1217 + $0x40] sm:$0xff] %v1209
        %1227 = vst [vmem:[%s1217 + $0x48] sm:$0xff] %v1210
        %1228 = vst [vmem:[%s1217 + $0x50] sm:$0xff] %v1211
        %1229 = vst [vmem:[%s1217 + $0x58] sm:$0xff] %v1212
        %1230 = vst [vmem:[%s1217 + $0x60] sm:$0xff] %v1213
        %1231 = vst [vmem:[%s1217 + $0x68] sm:$0xff] %v1214
        %1232 = vst [vmem:[%s1217 + $0x70] sm:$0xff] %v1215
        %1233 = vst [vmem:[%s1217 + $0x78] sm:$0xff] %v1216
        %s1234 = scalar_lea.vmem [#allocation3], 256
        %v1235 = vld [vmem:[%s1234] sm:$0xff]
        %v1236 = vld [vmem:[%s1234 + $0x8] sm:$0xff]
        %v1237 = vld [vmem:[%s1234 + $0x10] sm:$0xff]
        %v1238 = vld [vmem:[%s1234 + $0x18] sm:$0xff]
        %v1239 = vld [vmem:[%s1234 + $0x20] sm:$0xff]
        %v1240 = vld [vmem:[%s1234 + $0x28] sm:$0xff]
        %v1241 = vld [vmem:[%s1234 + $0x30] sm:$0xff]
        %v1242 = vld [vmem:[%s1234 + $0x38] sm:$0xff]
        %v1243 = vld [vmem:[%s1234 + $0x40] sm:$0xff]
        %v1244 = vld [vmem:[%s1234 + $0x48] sm:$0xff]
        %v1245 = vld [vmem:[%s1234 + $0x50] sm:$0xff]
        %v1246 = vld [vmem:[%s1234 + $0x58] sm:$0xff]
        %v1247 = vld [vmem:[%s1234 + $0x60] sm:$0xff]
        %v1248 = vld [vmem:[%s1234 + $0x68] sm:$0xff]
        %v1249 = vld [vmem:[%s1234 + $0x70] sm:$0xff]
        %v1250 = vld [vmem:[%s1234 + $0x78] sm:$0xff]
        %v1251 = vld [vmem:[%s1234 + $0x80] sm:$0xff]
        %v1252 = vld [vmem:[%s1234 + $0x88] sm:$0xff]
        %v1253 = vld [vmem:[%s1234 + $0x90] sm:$0xff]
        %v1254 = vld [vmem:[%s1234 + $0x98] sm:$0xff]
        %v1255 = vld [vmem:[%s1234 + $0xa0] sm:$0xff]
        %v1256 = vld [vmem:[%s1234 + $0xa8] sm:$0xff]
        %v1257 = vld [vmem:[%s1234 + $0xb0] sm:$0xff]
        %v1258 = vld [vmem:[%s1234 + $0xb8] sm:$0xff]
        %v1259 = vld [vmem:[%s1234 + $0xc0] sm:$0xff]
        %v1260 = vld [vmem:[%s1234 + $0xc8] sm:$0xff]
        %v1261 = vld [vmem:[%s1234 + $0xd0] sm:$0xff]
        %v1262 = vld [vmem:[%s1234 + $0xd8] sm:$0xff]
        %v1263 = vld [vmem:[%s1234 + $0xe0] sm:$0xff]
        %v1264 = vld [vmem:[%s1234 + $0xe8] sm:$0xff]
        %v1265 = vld [vmem:[%s1234 + $0xf0] sm:$0xff]
        %v1266 = vld [vmem:[%s1234 + $0xf8] sm:$0xff]
        %1267 = vst [vmem:[%s227 + $0x8] sm:$0xff] %v1235
        %1268 = vst [vmem:[%s227 + $0x10] sm:$0xff] %v1236
        %1269 = vst [vmem:[%s227 + $0x28] sm:$0xff] %v1237
        %1270 = vst [vmem:[%s227 + $0x30] sm:$0xff] %v1238
        %1271 = vst [vmem:[%s227 + $0x48] sm:$0xff] %v1239
        %1272 = vst [vmem:[%s227 + $0x50] sm:$0xff] %v1240
        %1273 = vst [vmem:[%s227 + $0x68] sm:$0xff] %v1241
        %1274 = vst [vmem:[%s227 + $0x70] sm:$0xff] %v1242
        %1275 = vst [vmem:[%s227 + $0x88] sm:$0xff] %v1243
        %1276 = vst [vmem:[%s227 + $0x90] sm:$0xff] %v1244
        %1277 = vst [vmem:[%s227 + $0xa8] sm:$0xff] %v1245
        %1278 = vst [vmem:[%s227 + $0xb0] sm:$0xff] %v1246
        %1279 = vst [vmem:[%s227 + $0xc8] sm:$0xff] %v1247
        %1280 = vst [vmem:[%s227 + $0xd0] sm:$0xff] %v1248
        %1281 = vst [vmem:[%s227 + $0xe8] sm:$0xff] %v1249
        %1282 = vst [vmem:[%s227 + $0xf0] sm:$0xff] %v1250
        %1283 = vst [vmem:[%s227 + $0x108] sm:$0xff] %v1251
        %1284 = vst [vmem:[%s227 + $0x110] sm:$0xff] %v1252
        %1285 = vst [vmem:[%s227 + $0x128] sm:$0xff] %v1253
        %1286 = vst [vmem:[%s227 + $0x130] sm:$0xff] %v1254
        %1287 = vst [vmem:[%s227 + $0x148] sm:$0xff] %v1255
        %1288 = vst [vmem:[%s227 + $0x150] sm:$0xff] %v1256
        %1289 = vst [vmem:[%s227 + $0x168] sm:$0xff] %v1257
        %1290 = vst [vmem:[%s227 + $0x170] sm:$0xff] %v1258
        %1291 = vst [vmem:[%s227 + $0x188] sm:$0xff] %v1259
        %1292 = vst [vmem:[%s227 + $0x190] sm:$0xff] %v1260
        %1293 = vst [vmem:[%s227 + $0x1a8] sm:$0xff] %v1261
        %1294 = vst [vmem:[%s227 + $0x1b0] sm:$0xff] %v1262
        %1295 = vst [vmem:[%s227 + $0x1c8] sm:$0xff] %v1263
        %1296 = vst [vmem:[%s227 + $0x1d0] sm:$0xff] %v1264
        %1297 = vst [vmem:[%s227 + $0x1e8] sm:$0xff] %v1265
        %1298 = vst [vmem:[%s227 + $0x1f0] sm:$0xff] %v1266
        %v1299 = vld [vmem:[#allocation2 + $0x7] sm:$0xff]
        %v1300 = vld [vmem:[#allocation2 + $0xf] sm:$0xff]
        %v1301 = vld [vmem:[#allocation2 + $0x27] sm:$0xff]
        %v1302 = vld [vmem:[#allocation2 + $0x2f] sm:$0xff]
        %v1303 = vld [vmem:[#allocation2 + $0x47] sm:$0xff]
        %v1304 = vld [vmem:[#allocation2 + $0x4f] sm:$0xff]
        %v1305 = vld [vmem:[#allocation2 + $0x67] sm:$0xff]
        %v1306 = vld [vmem:[#allocation2 + $0x6f] sm:$0xff]
        %v1307 = vld [vmem:[#allocation2 + $0x87] sm:$0xff]
        %v1308 = vld [vmem:[#allocation2 + $0x8f] sm:$0xff]
        %v1309 = vld [vmem:[#allocation2 + $0xa7] sm:$0xff]
        %v1310 = vld [vmem:[#allocation2 + $0xaf] sm:$0xff]
        %v1311 = vld [vmem:[#allocation2 + $0xc7] sm:$0xff]
        %v1312 = vld [vmem:[#allocation2 + $0xcf] sm:$0xff]
        %v1313 = vld [vmem:[#allocation2 + $0xe7] sm:$0xff]
        %v1314 = vld [vmem:[#allocation2 + $0xef] sm:$0xff]
        %v1315 = vmul.f32 %v1299, %v340
        %v1316 = vmul.f32 %v1300, %v340
        %v1317 = vmul.f32 %v1301, %v340
        %v1318 = vmul.f32 %v1302, %v340
        %v1319 = vmul.f32 %v1303, %v340
        %v1320 = vmul.f32 %v1304, %v340
        %v1321 = vmul.f32 %v1305, %v340
        %v1322 = vmul.f32 %v1306, %v340
        %v1323 = vmul.f32 %v1307, %v340
        %v1324 = vmul.f32 %v1308, %v340
        %v1325 = vmul.f32 %v1309, %v340
        %v1326 = vmul.f32 %v1310, %v340
        %v1327 = vmul.f32 %v1311, %v340
        %v1328 = vmul.f32 %v1312, %v340
        %v1329 = vmul.f32 %v1313, %v340
        %v1330 = vmul.f32 %v1314, %v340
        %v1331 = vadd.f32 %v1315, 0.0
        %v1332 = vadd.f32 %v1316, 0.0
        %v1333 = vadd.f32 %v1317, 0.0
        %v1334 = vadd.f32 %v1318, 0.0
        %v1335 = vadd.f32 %v1319, 0.0
        %v1336 = vadd.f32 %v1320, 0.0
        %v1337 = vadd.f32 %v1321, 0.0
        %v1338 = vadd.f32 %v1322, 0.0
        %v1339 = vadd.f32 %v1323, 0.0
        %v1340 = vadd.f32 %v1324, 0.0
        %v1341 = vadd.f32 %v1325, 0.0
        %v1342 = vadd.f32 %v1326, 0.0
        %v1343 = vadd.f32 %v1327, 0.0
        %v1344 = vadd.f32 %v1328, 0.0
        %v1345 = vadd.f32 %v1329, 0.0
        %v1346 = vadd.f32 %v1330, 0.0
        %v1347 = vld [vmem:[#allocation2 + $0x8] sm:$0xff]
        %v1348 = vld [vmem:[#allocation2 + $0x10] sm:$0xff]
        %v1349 = vld [vmem:[#allocation2 + $0x28] sm:$0xff]
        %v1350 = vld [vmem:[#allocation2 + $0x30] sm:$0xff]
        %v1351 = vld [vmem:[#allocation2 + $0x48] sm:$0xff]
        %v1352 = vld [vmem:[#allocation2 + $0x50] sm:$0xff]
        %v1353 = vld [vmem:[#allocation2 + $0x68] sm:$0xff]
        %v1354 = vld [vmem:[#allocation2 + $0x70] sm:$0xff]
        %v1355 = vld [vmem:[#allocation2 + $0x88] sm:$0xff]
        %v1356 = vld [vmem:[#allocation2 + $0x90] sm:$0xff]
        %v1357 = vld [vmem:[#allocation2 + $0xa8] sm:$0xff]
        %v1358 = vld [vmem:[#allocation2 + $0xb0] sm:$0xff]
        %v1359 = vld [vmem:[#allocation2 + $0xc8] sm:$0xff]
        %v1360 = vld [vmem:[#allocation2 + $0xd0] sm:$0xff]
        %v1361 = vld [vmem:[#allocation2 + $0xe8] sm:$0xff]
        %v1362 = vld [vmem:[#allocation2 + $0xf0] sm:$0xff]
        %v1363 = vmul.f32 %v1347, %v389
        %v1364 = vmul.f32 %v1348, %v389
        %v1365 = vmul.f32 %v1349, %v389
        %v1366 = vmul.f32 %v1350, %v389
        %v1367 = vmul.f32 %v1351, %v389
        %v1368 = vmul.f32 %v1352, %v389
        %v1369 = vmul.f32 %v1353, %v389
        %v1370 = vmul.f32 %v1354, %v389
        %v1371 = vmul.f32 %v1355, %v389
        %v1372 = vmul.f32 %v1356, %v389
        %v1373 = vmul.f32 %v1357, %v389
        %v1374 = vmul.f32 %v1358, %v389
        %v1375 = vmul.f32 %v1359, %v389
        %v1376 = vmul.f32 %v1360, %v389
        %v1377 = vmul.f32 %v1361, %v389
        %v1378 = vmul.f32 %v1362, %v389
        %v1379 = vadd.f32 %v1331, %v1363
        %v1380 = vadd.f32 %v1332, %v1364
        %v1381 = vadd.f32 %v1333, %v1365
        %v1382 = vadd.f32 %v1334, %v1366
        %v1383 = vadd.f32 %v1335, %v1367
        %v1384 = vadd.f32 %v1336, %v1368
        %v1385 = vadd.f32 %v1337, %v1369
        %v1386 = vadd.f32 %v1338, %v1370
        %v1387 = vadd.f32 %v1339, %v1371
        %v1388 = vadd.f32 %v1340, %v1372
        %v1389 = vadd.f32 %v1341, %v1373
        %v1390 = vadd.f32 %v1342, %v1374
        %v1391 = vadd.f32 %v1343, %v1375
        %v1392 = vadd.f32 %v1344, %v1376
        %v1393 = vadd.f32 %v1345, %v1377
        %v1394 = vadd.f32 %v1346, %v1378
        %v1395 = vld [vmem:[#allocation2 + $0x9] sm:$0xff]
        %v1396 = vld [vmem:[#allocation2 + $0x11] sm:$0xff]
        %v1397 = vld [vmem:[#allocation2 + $0x29] sm:$0xff]
        %v1398 = vld [vmem:[#allocation2 + $0x31] sm:$0xff]
        %v1399 = vld [vmem:[#allocation2 + $0x49] sm:$0xff]
        %v1400 = vld [vmem:[#allocation2 + $0x51] sm:$0xff]
        %v1401 = vld [vmem:[#allocation2 + $0x69] sm:$0xff]
        %v1402 = vld [vmem:[#allocation2 + $0x71] sm:$0xff]
        %v1403 = vld [vmem:[#allocation2 + $0x89] sm:$0xff]
        %v1404 = vld [vmem:[#allocation2 + $0x91] sm:$0xff]
        %v1405 = vld [vmem:[#allocation2 + $0xa9] sm:$0xff]
        %v1406 = vld [vmem:[#allocation2 + $0xb1] sm:$0xff]
        %v1407 = vld [vmem:[#allocation2 + $0xc9] sm:$0xff]
        %v1408 = vld [vmem:[#allocation2 + $0xd1] sm:$0xff]
        %v1409 = vld [vmem:[#allocation2 + $0xe9] sm:$0xff]
        %v1410 = vld [vmem:[#allocation2 + $0xf1] sm:$0xff]
        %v1411 = vmul.f32 %v1395, %v438
        %v1412 = vmul.f32 %v1396, %v438
        %v1413 = vmul.f32 %v1397, %v438
        %v1414 = vmul.f32 %v1398, %v438
        %v1415 = vmul.f32 %v1399, %v438
        %v1416 = vmul.f32 %v1400, %v438
        %v1417 = vmul.f32 %v1401, %v438
        %v1418 = vmul.f32 %v1402, %v438
        %v1419 = vmul.f32 %v1403, %v438
        %v1420 = vmul.f32 %v1404, %v438
        %v1421 = vmul.f32 %v1405, %v438
        %v1422 = vmul.f32 %v1406, %v438
        %v1423 = vmul.f32 %v1407, %v438
        %v1424 = vmul.f32 %v1408, %v438
        %v1425 = vmul.f32 %v1409, %v438
        %v1426 = vmul.f32 %v1410, %v438
        %v1427 = vadd.f32 %v1379, %v1411
        %v1428 = vadd.f32 %v1380, %v1412
        %v1429 = vadd.f32 %v1381, %v1413
        %v1430 = vadd.f32 %v1382, %v1414
        %v1431 = vadd.f32 %v1383, %v1415
        %v1432 = vadd.f32 %v1384, %v1416
        %v1433 = vadd.f32 %v1385, %v1417
        %v1434 = vadd.f32 %v1386, %v1418
        %v1435 = vadd.f32 %v1387, %v1419
        %v1436 = vadd.f32 %v1388, %v1420
        %v1437 = vadd.f32 %v1389, %v1421
        %v1438 = vadd.f32 %v1390, %v1422
        %v1439 = vadd.f32 %v1391, %v1423
        %v1440 = vadd.f32 %v1392, %v1424
        %v1441 = vadd.f32 %v1393, %v1425
        %v1442 = vadd.f32 %v1394, %v1426
        %v1443 = vld [vmem:[%s227 + $0x7] sm:$0xff]
        %v1444 = vld [vmem:[%s227 + $0xf] sm:$0xff]
        %v1445 = vld [vmem:[%s227 + $0x27] sm:$0xff]
        %v1446 = vld [vmem:[%s227 + $0x2f] sm:$0xff]
        %v1447 = vld [vmem:[%s227 + $0x47] sm:$0xff]
        %v1448 = vld [vmem:[%s227 + $0x4f] sm:$0xff]
        %v1449 = vld [vmem:[%s227 + $0x67] sm:$0xff]
        %v1450 = vld [vmem:[%s227 + $0x6f] sm:$0xff]
        %v1451 = vld [vmem:[%s227 + $0x87] sm:$0xff]
        %v1452 = vld [vmem:[%s227 + $0x8f] sm:$0xff]
        %v1453 = vld [vmem:[%s227 + $0xa7] sm:$0xff]
        %v1454 = vld [vmem:[%s227 + $0xaf] sm:$0xff]
        %v1455 = vld [vmem:[%s227 + $0xc7] sm:$0xff]
        %v1456 = vld [vmem:[%s227 + $0xcf] sm:$0xff]
        %v1457 = vld [vmem:[%s227 + $0xe7] sm:$0xff]
        %v1458 = vld [vmem:[%s227 + $0xef] sm:$0xff]
        %v1459 = vmul.f32 %v1443, %v487
        %v1460 = vmul.f32 %v1444, %v487
        %v1461 = vmul.f32 %v1445, %v487
        %v1462 = vmul.f32 %v1446, %v487
        %v1463 = vmul.f32 %v1447, %v487
        %v1464 = vmul.f32 %v1448, %v487
        %v1465 = vmul.f32 %v1449, %v487
        %v1466 = vmul.f32 %v1450, %v487
        %v1467 = vmul.f32 %v1451, %v487
        %v1468 = vmul.f32 %v1452, %v487
        %v1469 = vmul.f32 %v1453, %v487
        %v1470 = vmul.f32 %v1454, %v487
        %v1471 = vmul.f32 %v1455, %v487
        %v1472 = vmul.f32 %v1456, %v487
        %v1473 = vmul.f32 %v1457, %v487
        %v1474 = vmul.f32 %v1458, %v487
        %v1475 = vadd.f32 %v1427, %v1459
        %v1476 = vadd.f32 %v1428, %v1460
        %v1477 = vadd.f32 %v1429, %v1461
        %v1478 = vadd.f32 %v1430, %v1462
        %v1479 = vadd.f32 %v1431, %v1463
        %v1480 = vadd.f32 %v1432, %v1464
        %v1481 = vadd.f32 %v1433, %v1465
        %v1482 = vadd.f32 %v1434, %v1466
        %v1483 = vadd.f32 %v1435, %v1467
        %v1484 = vadd.f32 %v1436, %v1468
        %v1485 = vadd.f32 %v1437, %v1469
        %v1486 = vadd.f32 %v1438, %v1470
        %v1487 = vadd.f32 %v1439, %v1471
        %v1488 = vadd.f32 %v1440, %v1472
        %v1489 = vadd.f32 %v1441, %v1473
        %v1490 = vadd.f32 %v1442, %v1474
        %v1491 = vld [vmem:[%s227 + $0x8] sm:$0xff]
        %v1492 = vld [vmem:[%s227 + $0x10] sm:$0xff]
        %v1493 = vld [vmem:[%s227 + $0x28] sm:$0xff]
        %v1494 = vld [vmem:[%s227 + $0x30] sm:$0xff]
        %v1495 = vld [vmem:[%s227 + $0x48] sm:$0xff]
        %v1496 = vld [vmem:[%s227 + $0x50] sm:$0xff]
        %v1497 = vld [vmem:[%s227 + $0x68] sm:$0xff]
        %v1498 = vld [vmem:[%s227 + $0x70] sm:$0xff]
        %v1499 = vld [vmem:[%s227 + $0x88] sm:$0xff]
        %v1500 = vld [vmem:[%s227 + $0x90] sm:$0xff]
        %v1501 = vld [vmem:[%s227 + $0xa8] sm:$0xff]
        %v1502 = vld [vmem:[%s227 + $0xb0] sm:$0xff]
        %v1503 = vld [vmem:[%s227 + $0xc8] sm:$0xff]
        %v1504 = vld [vmem:[%s227 + $0xd0] sm:$0xff]
        %v1505 = vld [vmem:[%s227 + $0xe8] sm:$0xff]
        %v1506 = vld [vmem:[%s227 + $0xf0] sm:$0xff]
        %v1507 = vmul.f32 %v1491, %v536
        %v1508 = vmul.f32 %v1492, %v536
        %v1509 = vmul.f32 %v1493, %v536
        %v1510 = vmul.f32 %v1494, %v536
        %v1511 = vmul.f32 %v1495, %v536
        %v1512 = vmul.f32 %v1496, %v536
        %v1513 = vmul.f32 %v1497, %v536
        %v1514 = vmul.f32 %v1498, %v536
        %v1515 = vmul.f32 %v1499, %v536
        %v1516 = vmul.f32 %v1500, %v536
        %v1517 = vmul.f32 %v1501, %v536
        %v1518 = vmul.f32 %v1502, %v536
        %v1519 = vmul.f32 %v1503, %v536
        %v1520 = vmul.f32 %v1504, %v536
        %v1521 = vmul.f32 %v1505, %v536
        %v1522 = vmul.f32 %v1506, %v536
        %v1523 = vadd.f32 %v1475, %v1507
        %v1524 = vadd.f32 %v1476, %v1508
        %v1525 = vadd.f32 %v1477, %v1509
        %v1526 = vadd.f32 %v1478, %v1510
        %v1527 = vadd.f32 %v1479, %v1511
        %v1528 = vadd.f32 %v1480, %v1512
        %v1529 = vadd.f32 %v1481, %v1513
        %v1530 = vadd.f32 %v1482, %v1514
        %v1531 = vadd.f32 %v1483, %v1515
        %v1532 = vadd.f32 %v1484, %v1516
        %v1533 = vadd.f32 %v1485, %v1517
        %v1534 = vadd.f32 %v1486, %v1518
        %v1535 = vadd.f32 %v1487, %v1519
        %v1536 = vadd.f32 %v1488, %v1520
        %v1537 = vadd.f32 %v1489, %v1521
        %v1538 = vadd.f32 %v1490, %v1522
        %v1539 = vld [vmem:[%s227 + $0x9] sm:$0xff]
        %v1540 = vld [vmem:[%s227 + $0x11] sm:$0xff]
        %v1541 = vld [vmem:[%s227 + $0x29] sm:$0xff]
        %v1542 = vld [vmem:[%s227 + $0x31] sm:$0xff]
        %v1543 = vld [vmem:[%s227 + $0x49] sm:$0xff]
        %v1544 = vld [vmem:[%s227 + $0x51] sm:$0xff]
        %v1545 = vld [vmem:[%s227 + $0x69] sm:$0xff]
        %v1546 = vld [vmem:[%s227 + $0x71] sm:$0xff]
        %v1547 = vld [vmem:[%s227 + $0x89] sm:$0xff]
        %v1548 = vld [vmem:[%s227 + $0x91] sm:$0xff]
        %v1549 = vld [vmem:[%s227 + $0xa9] sm:$0xff]
        %v1550 = vld [vmem:[%s227 + $0xb1] sm:$0xff]
        %v1551 = vld [vmem:[%s227 + $0xc9] sm:$0xff]
        %v1552 = vld [vmem:[%s227 + $0xd1] sm:$0xff]
        %v1553 = vld [vmem:[%s227 + $0xe9] sm:$0xff]
        %v1554 = vld [vmem:[%s227 + $0xf1] sm:$0xff]
        %v1555 = vmul.f32 %v1539, %v585
        %v1556 = vmul.f32 %v1540, %v585
        %v1557 = vmul.f32 %v1541, %v585
        %v1558 = vmul.f32 %v1542, %v585
        %v1559 = vmul.f32 %v1543, %v585
        %v1560 = vmul.f32 %v1544, %v585
        %v1561 = vmul.f32 %v1545, %v585
        %v1562 = vmul.f32 %v1546, %v585
        %v1563 = vmul.f32 %v1547, %v585
        %v1564 = vmul.f32 %v1548, %v585
        %v1565 = vmul.f32 %v1549, %v585
        %v1566 = vmul.f32 %v1550, %v585
        %v1567 = vmul.f32 %v1551, %v585
        %v1568 = vmul.f32 %v1552, %v585
        %v1569 = vmul.f32 %v1553, %v585
        %v1570 = vmul.f32 %v1554, %v585
        %v1571 = vadd.f32 %v1523, %v1555
        %v1572 = vadd.f32 %v1524, %v1556
        %v1573 = vadd.f32 %v1525, %v1557
        %v1574 = vadd.f32 %v1526, %v1558
        %v1575 = vadd.f32 %v1527, %v1559
        %v1576 = vadd.f32 %v1528, %v1560
        %v1577 = vadd.f32 %v1529, %v1561
        %v1578 = vadd.f32 %v1530, %v1562
        %v1579 = vadd.f32 %v1531, %v1563
        %v1580 = vadd.f32 %v1532, %v1564
        %v1581 = vadd.f32 %v1533, %v1565
        %v1582 = vadd.f32 %v1534, %v1566
        %v1583 = vadd.f32 %v1535, %v1567
        %v1584 = vadd.f32 %v1536, %v1568
        %v1585 = vadd.f32 %v1537, %v1569
        %v1586 = vadd.f32 %v1538, %v1570
        %v1587 = vld [vmem:[%s618 + $0x7] sm:$0xff]
        %v1588 = vld [vmem:[%s618 + $0xf] sm:$0xff]
        %v1589 = vld [vmem:[%s618 + $0x27] sm:$0xff]
        %v1590 = vld [vmem:[%s618 + $0x2f] sm:$0xff]
        %v1591 = vld [vmem:[%s618 + $0x47] sm:$0xff]
        %v1592 = vld [vmem:[%s618 + $0x4f] sm:$0xff]
        %v1593 = vld [vmem:[%s618 + $0x67] sm:$0xff]
        %v1594 = vld [vmem:[%s618 + $0x6f] sm:$0xff]
        %v1595 = vld [vmem:[%s618 + $0x87] sm:$0xff]
        %v1596 = vld [vmem:[%s618 + $0x8f] sm:$0xff]
        %v1597 = vld [vmem:[%s618 + $0xa7] sm:$0xff]
        %v1598 = vld [vmem:[%s618 + $0xaf] sm:$0xff]
        %v1599 = vld [vmem:[%s618 + $0xc7] sm:$0xff]
        %v1600 = vld [vmem:[%s618 + $0xcf] sm:$0xff]
        %v1601 = vld [vmem:[%s618 + $0xe7] sm:$0xff]
        %v1602 = vld [vmem:[%s618 + $0xef] sm:$0xff]
        %v1603 = vmul.f32 %v1587, %v635
        %v1604 = vmul.f32 %v1588, %v635
        %v1605 = vmul.f32 %v1589, %v635
        %v1606 = vmul.f32 %v1590, %v635
        %v1607 = vmul.f32 %v1591, %v635
        %v1608 = vmul.f32 %v1592, %v635
        %v1609 = vmul.f32 %v1593, %v635
        %v1610 = vmul.f32 %v1594, %v635
        %v1611 = vmul.f32 %v1595, %v635
        %v1612 = vmul.f32 %v1596, %v635
        %v1613 = vmul.f32 %v1597, %v635
        %v1614 = vmul.f32 %v1598, %v635
        %v1615 = vmul.f32 %v1599, %v635
        %v1616 = vmul.f32 %v1600, %v635
        %v1617 = vmul.f32 %v1601, %v635
        %v1618 = vmul.f32 %v1602, %v635
        %v1619 = vadd.f32 %v1571, %v1603
        %v1620 = vadd.f32 %v1572, %v1604
        %v1621 = vadd.f32 %v1573, %v1605
        %v1622 = vadd.f32 %v1574, %v1606
        %v1623 = vadd.f32 %v1575, %v1607
        %v1624 = vadd.f32 %v1576, %v1608
        %v1625 = vadd.f32 %v1577, %v1609
        %v1626 = vadd.f32 %v1578, %v1610
        %v1627 = vadd.f32 %v1579, %v1611
        %v1628 = vadd.f32 %v1580, %v1612
        %v1629 = vadd.f32 %v1581, %v1613
        %v1630 = vadd.f32 %v1582, %v1614
        %v1631 = vadd.f32 %v1583, %v1615
        %v1632 = vadd.f32 %v1584, %v1616
        %v1633 = vadd.f32 %v1585, %v1617
        %v1634 = vadd.f32 %v1586, %v1618
        %v1635 = vld [vmem:[%s618 + $0x8] sm:$0xff]
        %v1636 = vld [vmem:[%s618 + $0x10] sm:$0xff]
        %v1637 = vld [vmem:[%s618 + $0x28] sm:$0xff]
        %v1638 = vld [vmem:[%s618 + $0x30] sm:$0xff]
        %v1639 = vld [vmem:[%s618 + $0x48] sm:$0xff]
        %v1640 = vld [vmem:[%s618 + $0x50] sm:$0xff]
        %v1641 = vld [vmem:[%s618 + $0x68] sm:$0xff]
        %v1642 = vld [vmem:[%s618 + $0x70] sm:$0xff]
        %v1643 = vld [vmem:[%s618 + $0x88] sm:$0xff]
        %v1644 = vld [vmem:[%s618 + $0x90] sm:$0xff]
        %v1645 = vld [vmem:[%s618 + $0xa8] sm:$0xff]
        %v1646 = vld [vmem:[%s618 + $0xb0] sm:$0xff]
        %v1647 = vld [vmem:[%s618 + $0xc8] sm:$0xff]
        %v1648 = vld [vmem:[%s618 + $0xd0] sm:$0xff]
        %v1649 = vld [vmem:[%s618 + $0xe8] sm:$0xff]
        %v1650 = vld [vmem:[%s618 + $0xf0] sm:$0xff]
        %v1651 = vmul.f32 %v1635, %v684
        %v1652 = vmul.f32 %v1636, %v684
        %v1653 = vmul.f32 %v1637, %v684
        %v1654 = vmul.f32 %v1638, %v684
        %v1655 = vmul.f32 %v1639, %v684
        %v1656 = vmul.f32 %v1640, %v684
        %v1657 = vmul.f32 %v1641, %v684
        %v1658 = vmul.f32 %v1642, %v684
        %v1659 = vmul.f32 %v1643, %v684
        %v1660 = vmul.f32 %v1644, %v684
        %v1661 = vmul.f32 %v1645, %v684
        %v1662 = vmul.f32 %v1646, %v684
        %v1663 = vmul.f32 %v1647, %v684
        %v1664 = vmul.f32 %v1648, %v684
        %v1665 = vmul.f32 %v1649, %v684
        %v1666 = vmul.f32 %v1650, %v684
        %v1667 = vadd.f32 %v1619, %v1651
        %v1668 = vadd.f32 %v1620, %v1652
        %v1669 = vadd.f32 %v1621, %v1653
        %v1670 = vadd.f32 %v1622, %v1654
        %v1671 = vadd.f32 %v1623, %v1655
        %v1672 = vadd.f32 %v1624, %v1656
        %v1673 = vadd.f32 %v1625, %v1657
        %v1674 = vadd.f32 %v1626, %v1658
        %v1675 = vadd.f32 %v1627, %v1659
        %v1676 = vadd.f32 %v1628, %v1660
        %v1677 = vadd.f32 %v1629, %v1661
        %v1678 = vadd.f32 %v1630, %v1662
        %v1679 = vadd.f32 %v1631, %v1663
        %v1680 = vadd.f32 %v1632, %v1664
        %v1681 = vadd.f32 %v1633, %v1665
        %v1682 = vadd.f32 %v1634, %v1666
        %v1683 = vld [vmem:[%s618 + $0x9] sm:$0xff]
        %v1684 = vld [vmem:[%s618 + $0x11] sm:$0xff]
        %v1685 = vld [vmem:[%s618 + $0x29] sm:$0xff]
        %v1686 = vld [vmem:[%s618 + $0x31] sm:$0xff]
        %v1687 = vld [vmem:[%s618 + $0x49] sm:$0xff]
        %v1688 = vld [vmem:[%s618 + $0x51] sm:$0xff]
        %v1689 = vld [vmem:[%s618 + $0x69] sm:$0xff]
        %v1690 = vld [vmem:[%s618 + $0x71] sm:$0xff]
        %v1691 = vld [vmem:[%s618 + $0x89] sm:$0xff]
        %v1692 = vld [vmem:[%s618 + $0x91] sm:$0xff]
        %v1693 = vld [vmem:[%s618 + $0xa9] sm:$0xff]
        %v1694 = vld [vmem:[%s618 + $0xb1] sm:$0xff]
        %v1695 = vld [vmem:[%s618 + $0xc9] sm:$0xff]
        %v1696 = vld [vmem:[%s618 + $0xd1] sm:$0xff]
        %v1697 = vld [vmem:[%s618 + $0xe9] sm:$0xff]
        %v1698 = vld [vmem:[%s618 + $0xf1] sm:$0xff]
        %v1699 = vmul.f32 %v1683, %v733
        %v1700 = vmul.f32 %v1684, %v733
        %v1701 = vmul.f32 %v1685, %v733
        %v1702 = vmul.f32 %v1686, %v733
        %v1703 = vmul.f32 %v1687, %v733
        %v1704 = vmul.f32 %v1688, %v733
        %v1705 = vmul.f32 %v1689, %v733
        %v1706 = vmul.f32 %v1690, %v733
        %v1707 = vmul.f32 %v1691, %v733
        %v1708 = vmul.f32 %v1692, %v733
        %v1709 = vmul.f32 %v1693, %v733
        %v1710 = vmul.f32 %v1694, %v733
        %v1711 = vmul.f32 %v1695, %v733
        %v1712 = vmul.f32 %v1696, %v733
        %v1713 = vmul.f32 %v1697, %v733
        %v1714 = vmul.f32 %v1698, %v733
        %v1715 = vadd.f32 %v1667, %v1699
        %v1716 = vadd.f32 %v1668, %v1700
        %v1717 = vadd.f32 %v1669, %v1701
        %v1718 = vadd.f32 %v1670, %v1702
        %v1719 = vadd.f32 %v1671, %v1703
        %v1720 = vadd.f32 %v1672, %v1704
        %v1721 = vadd.f32 %v1673, %v1705
        %v1722 = vadd.f32 %v1674, %v1706
        %v1723 = vadd.f32 %v1675, %v1707
        %v1724 = vadd.f32 %v1676, %v1708
        %v1725 = vadd.f32 %v1677, %v1709
        %v1726 = vadd.f32 %v1678, %v1710
        %v1727 = vadd.f32 %v1679, %v1711
        %v1728 = vadd.f32 %v1680, %v1712
        %v1729 = vadd.f32 %v1681, %v1713
        %v1730 = vadd.f32 %v1682, %v1714
        %s1731 = scalar_lea.vmem %s196, 256 [#allocation6]
        %1732 = vst [vmem:[%s1731] sm:$0xff] %v1715
        %1733 = vst [vmem:[%s1731 + $0x8] sm:$0xff] %v1716
        %1734 = vst [vmem:[%s1731 + $0x10] sm:$0xff] %v1717
        %1735 = vst [vmem:[%s1731 + $0x18] sm:$0xff] %v1718
        %1736 = vst [vmem:[%s1731 + $0x20] sm:$0xff] %v1719
        %1737 = vst [vmem:[%s1731 + $0x28] sm:$0xff] %v1720
        %1738 = vst [vmem:[%s1731 + $0x30] sm:$0xff] %v1721
        %1739 = vst [vmem:[%s1731 + $0x38] sm:$0xff] %v1722
        %1740 = vst [vmem:[%s1731 + $0x40] sm:$0xff] %v1723
        %1741 = vst [vmem:[%s1731 + $0x48] sm:$0xff] %v1724
        %1742 = vst [vmem:[%s1731 + $0x50] sm:$0xff] %v1725
        %1743 = vst [vmem:[%s1731 + $0x58] sm:$0xff] %v1726
        %1744 = vst [vmem:[%s1731 + $0x60] sm:$0xff] %v1727
        %1745 = vst [vmem:[%s1731 + $0x68] sm:$0xff] %v1728
        %1746 = vst [vmem:[%s1731 + $0x70] sm:$0xff] %v1729
        %1747 = vst [vmem:[%s1731 + $0x78] sm:$0xff] %v1730
        %v1748 = vld [vmem:[%s782 + $0x7] sm:$0xff]
        %v1749 = vld [vmem:[%s782 + $0xf] sm:$0xff]
        %v1750 = vld [vmem:[%s782 + $0x27] sm:$0xff]
        %v1751 = vld [vmem:[%s782 + $0x2f] sm:$0xff]
        %v1752 = vld [vmem:[%s782 + $0x47] sm:$0xff]
        %v1753 = vld [vmem:[%s782 + $0x4f] sm:$0xff]
        %v1754 = vld [vmem:[%s782 + $0x67] sm:$0xff]
        %v1755 = vld [vmem:[%s782 + $0x6f] sm:$0xff]
        %v1756 = vld [vmem:[%s782 + $0x87] sm:$0xff]
        %v1757 = vld [vmem:[%s782 + $0x8f] sm:$0xff]
        %v1758 = vld [vmem:[%s782 + $0xa7] sm:$0xff]
        %v1759 = vld [vmem:[%s782 + $0xaf] sm:$0xff]
        %v1760 = vld [vmem:[%s782 + $0xc7] sm:$0xff]
        %v1761 = vld [vmem:[%s782 + $0xcf] sm:$0xff]
        %v1762 = vld [vmem:[%s782 + $0xe7] sm:$0xff]
        %v1763 = vld [vmem:[%s782 + $0xef] sm:$0xff]
        %v1764 = vmul.f32 %v1748, %v340
        %v1765 = vmul.f32 %v1749, %v340
        %v1766 = vmul.f32 %v1750, %v340
        %v1767 = vmul.f32 %v1751, %v340
        %v1768 = vmul.f32 %v1752, %v340
        %v1769 = vmul.f32 %v1753, %v340
        %v1770 = vmul.f32 %v1754, %v340
        %v1771 = vmul.f32 %v1755, %v340
        %v1772 = vmul.f32 %v1756, %v340
        %v1773 = vmul.f32 %v1757, %v340
        %v1774 = vmul.f32 %v1758, %v340
        %v1775 = vmul.f32 %v1759, %v340
        %v1776 = vmul.f32 %v1760, %v340
        %v1777 = vmul.f32 %v1761, %v340
        %v1778 = vmul.f32 %v1762, %v340
        %v1779 = vmul.f32 %v1763, %v340
        %v1780 = vadd.f32 %v1764, 0.0
        %v1781 = vadd.f32 %v1765, 0.0
        %v1782 = vadd.f32 %v1766, 0.0
        %v1783 = vadd.f32 %v1767, 0.0
        %v1784 = vadd.f32 %v1768, 0.0
        %v1785 = vadd.f32 %v1769, 0.0
        %v1786 = vadd.f32 %v1770, 0.0
        %v1787 = vadd.f32 %v1771, 0.0
        %v1788 = vadd.f32 %v1772, 0.0
        %v1789 = vadd.f32 %v1773, 0.0
        %v1790 = vadd.f32 %v1774, 0.0
        %v1791 = vadd.f32 %v1775, 0.0
        %v1792 = vadd.f32 %v1776, 0.0
        %v1793 = vadd.f32 %v1777, 0.0
        %v1794 = vadd.f32 %v1778, 0.0
        %v1795 = vadd.f32 %v1779, 0.0
        %v1796 = vld [vmem:[%s782 + $0x8] sm:$0xff]
        %v1797 = vld [vmem:[%s782 + $0x10] sm:$0xff]
        %v1798 = vld [vmem:[%s782 + $0x28] sm:$0xff]
        %v1799 = vld [vmem:[%s782 + $0x30] sm:$0xff]
        %v1800 = vld [vmem:[%s782 + $0x48] sm:$0xff]
        %v1801 = vld [vmem:[%s782 + $0x50] sm:$0xff]
        %v1802 = vld [vmem:[%s782 + $0x68] sm:$0xff]
        %v1803 = vld [vmem:[%s782 + $0x70] sm:$0xff]
        %v1804 = vld [vmem:[%s782 + $0x88] sm:$0xff]
        %v1805 = vld [vmem:[%s782 + $0x90] sm:$0xff]
        %v1806 = vld [vmem:[%s782 + $0xa8] sm:$0xff]
        %v1807 = vld [vmem:[%s782 + $0xb0] sm:$0xff]
        %v1808 = vld [vmem:[%s782 + $0xc8] sm:$0xff]
        %v1809 = vld [vmem:[%s782 + $0xd0] sm:$0xff]
        %v1810 = vld [vmem:[%s782 + $0xe8] sm:$0xff]
        %v1811 = vld [vmem:[%s782 + $0xf0] sm:$0xff]
        %v1812 = vmul.f32 %v1796, %v389
        %v1813 = vmul.f32 %v1797, %v389
        %v1814 = vmul.f32 %v1798, %v389
        %v1815 = vmul.f32 %v1799, %v389
        %v1816 = vmul.f32 %v1800, %v389
        %v1817 = vmul.f32 %v1801, %v389
        %v1818 = vmul.f32 %v1802, %v389
        %v1819 = vmul.f32 %v1803, %v389
        %v1820 = vmul.f32 %v1804, %v389
        %v1821 = vmul.f32 %v1805, %v389
        %v1822 = vmul.f32 %v1806, %v389
        %v1823 = vmul.f32 %v1807, %v389
        %v1824 = vmul.f32 %v1808, %v389
        %v1825 = vmul.f32 %v1809, %v389
        %v1826 = vmul.f32 %v1810, %v389
        %v1827 = vmul.f32 %v1811, %v389
        %v1828 = vadd.f32 %v1780, %v1812
        %v1829 = vadd.f32 %v1781, %v1813
        %v1830 = vadd.f32 %v1782, %v1814
        %v1831 = vadd.f32 %v1783, %v1815
        %v1832 = vadd.f32 %v1784, %v1816
        %v1833 = vadd.f32 %v1785, %v1817
        %v1834 = vadd.f32 %v1786, %v1818
        %v1835 = vadd.f32 %v1787, %v1819
        %v1836 = vadd.f32 %v1788, %v1820
        %v1837 = vadd.f32 %v1789, %v1821
        %v1838 = vadd.f32 %v1790, %v1822
        %v1839 = vadd.f32 %v1791, %v1823
        %v1840 = vadd.f32 %v1792, %v1824
        %v1841 = vadd.f32 %v1793, %v1825
        %v1842 = vadd.f32 %v1794, %v1826
        %v1843 = vadd.f32 %v1795, %v1827
        %v1844 = vld [vmem:[%s782 + $0x9] sm:$0xff]
        %v1845 = vld [vmem:[%s782 + $0x11] sm:$0xff]
        %v1846 = vld [vmem:[%s782 + $0x29] sm:$0xff]
        %v1847 = vld [vmem:[%s782 + $0x31] sm:$0xff]
        %v1848 = vld [vmem:[%s782 + $0x49] sm:$0xff]
        %v1849 = vld [vmem:[%s782 + $0x51] sm:$0xff]
        %v1850 = vld [vmem:[%s782 + $0x69] sm:$0xff]
        %v1851 = vld [vmem:[%s782 + $0x71] sm:$0xff]
        %v1852 = vld [vmem:[%s782 + $0x89] sm:$0xff]
        %v1853 = vld [vmem:[%s782 + $0x91] sm:$0xff]
        %v1854 = vld [vmem:[%s782 + $0xa9] sm:$0xff]
        %v1855 = vld [vmem:[%s782 + $0xb1] sm:$0xff]
        %v1856 = vld [vmem:[%s782 + $0xc9] sm:$0xff]
        %v1857 = vld [vmem:[%s782 + $0xd1] sm:$0xff]
        %v1858 = vld [vmem:[%s782 + $0xe9] sm:$0xff]
        %v1859 = vld [vmem:[%s782 + $0xf1] sm:$0xff]
        %v1860 = vmul.f32 %v1844, %v438
        %v1861 = vmul.f32 %v1845, %v438
        %v1862 = vmul.f32 %v1846, %v438
        %v1863 = vmul.f32 %v1847, %v438
        %v1864 = vmul.f32 %v1848, %v438
        %v1865 = vmul.f32 %v1849, %v438
        %v1866 = vmul.f32 %v1850, %v438
        %v1867 = vmul.f32 %v1851, %v438
        %v1868 = vmul.f32 %v1852, %v438
        %v1869 = vmul.f32 %v1853, %v438
        %v1870 = vmul.f32 %v1854, %v438
        %v1871 = vmul.f32 %v1855, %v438
        %v1872 = vmul.f32 %v1856, %v438
        %v1873 = vmul.f32 %v1857, %v438
        %v1874 = vmul.f32 %v1858, %v438
        %v1875 = vmul.f32 %v1859, %v438
        %v1876 = vadd.f32 %v1828, %v1860
        %v1877 = vadd.f32 %v1829, %v1861
        %v1878 = vadd.f32 %v1830, %v1862
        %v1879 = vadd.f32 %v1831, %v1863
        %v1880 = vadd.f32 %v1832, %v1864
        %v1881 = vadd.f32 %v1833, %v1865
        %v1882 = vadd.f32 %v1834, %v1866
        %v1883 = vadd.f32 %v1835, %v1867
        %v1884 = vadd.f32 %v1836, %v1868
        %v1885 = vadd.f32 %v1837, %v1869
        %v1886 = vadd.f32 %v1838, %v1870
        %v1887 = vadd.f32 %v1839, %v1871
        %v1888 = vadd.f32 %v1840, %v1872
        %v1889 = vadd.f32 %v1841, %v1873
        %v1890 = vadd.f32 %v1842, %v1874
        %v1891 = vadd.f32 %v1843, %v1875
        %v1892 = vld [vmem:[%s927 + $0x7] sm:$0xff]
        %v1893 = vld [vmem:[%s927 + $0xf] sm:$0xff]
        %v1894 = vld [vmem:[%s927 + $0x27] sm:$0xff]
        %v1895 = vld [vmem:[%s927 + $0x2f] sm:$0xff]
        %v1896 = vld [vmem:[%s927 + $0x47] sm:$0xff]
        %v1897 = vld [vmem:[%s927 + $0x4f] sm:$0xff]
        %v1898 = vld [vmem:[%s927 + $0x67] sm:$0xff]
        %v1899 = vld [vmem:[%s927 + $0x6f] sm:$0xff]
        %v1900 = vld [vmem:[%s927 + $0x87] sm:$0xff]
        %v1901 = vld [vmem:[%s927 + $0x8f] sm:$0xff]
        %v1902 = vld [vmem:[%s927 + $0xa7] sm:$0xff]
        %v1903 = vld [vmem:[%s927 + $0xaf] sm:$0xff]
        %v1904 = vld [vmem:[%s927 + $0xc7] sm:$0xff]
        %v1905 = vld [vmem:[%s927 + $0xcf] sm:$0xff]
        %v1906 = vld [vmem:[%s927 + $0xe7] sm:$0xff]
        %v1907 = vld [vmem:[%s927 + $0xef] sm:$0xff]
        %v1908 = vmul.f32 %v1892, %v487
        %v1909 = vmul.f32 %v1893, %v487
        %v1910 = vmul.f32 %v1894, %v487
        %v1911 = vmul.f32 %v1895, %v487
        %v1912 = vmul.f32 %v1896, %v487
        %v1913 = vmul.f32 %v1897, %v487
        %v1914 = vmul.f32 %v1898, %v487
        %v1915 = vmul.f32 %v1899, %v487
        %v1916 = vmul.f32 %v1900, %v487
        %v1917 = vmul.f32 %v1901, %v487
        %v1918 = vmul.f32 %v1902, %v487
        %v1919 = vmul.f32 %v1903, %v487
        %v1920 = vmul.f32 %v1904, %v487
        %v1921 = vmul.f32 %v1905, %v487
        %v1922 = vmul.f32 %v1906, %v487
        %v1923 = vmul.f32 %v1907, %v487
        %v1924 = vadd.f32 %v1876, %v1908
        %v1925 = vadd.f32 %v1877, %v1909
        %v1926 = vadd.f32 %v1878, %v1910
        %v1927 = vadd.f32 %v1879, %v1911
        %v1928 = vadd.f32 %v1880, %v1912
        %v1929 = vadd.f32 %v1881, %v1913
        %v1930 = vadd.f32 %v1882, %v1914
        %v1931 = vadd.f32 %v1883, %v1915
        %v1932 = vadd.f32 %v1884, %v1916
        %v1933 = vadd.f32 %v1885, %v1917
        %v1934 = vadd.f32 %v1886, %v1918
        %v1935 = vadd.f32 %v1887, %v1919
        %v1936 = vadd.f32 %v1888, %v1920
        %v1937 = vadd.f32 %v1889, %v1921
        %v1938 = vadd.f32 %v1890, %v1922
        %v1939 = vadd.f32 %v1891, %v1923
        %v1940 = vld [vmem:[%s927 + $0x8] sm:$0xff]
        %v1941 = vld [vmem:[%s927 + $0x10] sm:$0xff]
        %v1942 = vld [vmem:[%s927 + $0x28] sm:$0xff]
        %v1943 = vld [vmem:[%s927 + $0x30] sm:$0xff]
        %v1944 = vld [vmem:[%s927 + $0x48] sm:$0xff]
        %v1945 = vld [vmem:[%s927 + $0x50] sm:$0xff]
        %v1946 = vld [vmem:[%s927 + $0x68] sm:$0xff]
        %v1947 = vld [vmem:[%s927 + $0x70] sm:$0xff]
        %v1948 = vld [vmem:[%s927 + $0x88] sm:$0xff]
        %v1949 = vld [vmem:[%s927 + $0x90] sm:$0xff]
        %v1950 = vld [vmem:[%s927 + $0xa8] sm:$0xff]
        %v1951 = vld [vmem:[%s927 + $0xb0] sm:$0xff]
        %v1952 = vld [vmem:[%s927 + $0xc8] sm:$0xff]
        %v1953 = vld [vmem:[%s927 + $0xd0] sm:$0xff]
        %v1954 = vld [vmem:[%s927 + $0xe8] sm:$0xff]
        %v1955 = vld [vmem:[%s927 + $0xf0] sm:$0xff]
        %v1956 = vmul.f32 %v1940, %v536
        %v1957 = vmul.f32 %v1941, %v536
        %v1958 = vmul.f32 %v1942, %v536
        %v1959 = vmul.f32 %v1943, %v536
        %v1960 = vmul.f32 %v1944, %v536
        %v1961 = vmul.f32 %v1945, %v536
        %v1962 = vmul.f32 %v1946, %v536
        %v1963 = vmul.f32 %v1947, %v536
        %v1964 = vmul.f32 %v1948, %v536
        %v1965 = vmul.f32 %v1949, %v536
        %v1966 = vmul.f32 %v1950, %v536
        %v1967 = vmul.f32 %v1951, %v536
        %v1968 = vmul.f32 %v1952, %v536
        %v1969 = vmul.f32 %v1953, %v536
        %v1970 = vmul.f32 %v1954, %v536
        %v1971 = vmul.f32 %v1955, %v536
        %v1972 = vadd.f32 %v1924, %v1956
        %v1973 = vadd.f32 %v1925, %v1957
        %v1974 = vadd.f32 %v1926, %v1958
        %v1975 = vadd.f32 %v1927, %v1959
        %v1976 = vadd.f32 %v1928, %v1960
        %v1977 = vadd.f32 %v1929, %v1961
        %v1978 = vadd.f32 %v1930, %v1962
        %v1979 = vadd.f32 %v1931, %v1963
        %v1980 = vadd.f32 %v1932, %v1964
        %v1981 = vadd.f32 %v1933, %v1965
        %v1982 = vadd.f32 %v1934, %v1966
        %v1983 = vadd.f32 %v1935, %v1967
        %v1984 = vadd.f32 %v1936, %v1968
        %v1985 = vadd.f32 %v1937, %v1969
        %v1986 = vadd.f32 %v1938, %v1970
        %v1987 = vadd.f32 %v1939, %v1971
        %v1988 = vld [vmem:[%s927 + $0x9] sm:$0xff]
        %v1989 = vld [vmem:[%s927 + $0x11] sm:$0xff]
        %v1990 = vld [vmem:[%s927 + $0x29] sm:$0xff]
        %v1991 = vld [vmem:[%s927 + $0x31] sm:$0xff]
        %v1992 = vld [vmem:[%s927 + $0x49] sm:$0xff]
        %v1993 = vld [vmem:[%s927 + $0x51] sm:$0xff]
        %v1994 = vld [vmem:[%s927 + $0x69] sm:$0xff]
        %v1995 = vld [vmem:[%s927 + $0x71] sm:$0xff]
        %v1996 = vld [vmem:[%s927 + $0x89] sm:$0xff]
        %v1997 = vld [vmem:[%s927 + $0x91] sm:$0xff]
        %v1998 = vld [vmem:[%s927 + $0xa9] sm:$0xff]
        %v1999 = vld [vmem:[%s927 + $0xb1] sm:$0xff]
        %v2000 = vld [vmem:[%s927 + $0xc9] sm:$0xff]
        %v2001 = vld [vmem:[%s927 + $0xd1] sm:$0xff]
        %v2002 = vld [vmem:[%s927 + $0xe9] sm:$0xff]
        %v2003 = vld [vmem:[%s927 + $0xf1] sm:$0xff]
        %v2004 = vmul.f32 %v1988, %v585
        %v2005 = vmul.f32 %v1989, %v585
        %v2006 = vmul.f32 %v1990, %v585
        %v2007 = vmul.f32 %v1991, %v585
        %v2008 = vmul.f32 %v1992, %v585
        %v2009 = vmul.f32 %v1993, %v585
        %v2010 = vmul.f32 %v1994, %v585
        %v2011 = vmul.f32 %v1995, %v585
        %v2012 = vmul.f32 %v1996, %v585
        %v2013 = vmul.f32 %v1997, %v585
        %v2014 = vmul.f32 %v1998, %v585
        %v2015 = vmul.f32 %v1999, %v585
        %v2016 = vmul.f32 %v2000, %v585
        %v2017 = vmul.f32 %v2001, %v585
        %v2018 = vmul.f32 %v2002, %v585
        %v2019 = vmul.f32 %v2003, %v585
        %v2020 = vadd.f32 %v1972, %v2004
        %v2021 = vadd.f32 %v1973, %v2005
        %v2022 = vadd.f32 %v1974, %v2006
        %v2023 = vadd.f32 %v1975, %v2007
        %v2024 = vadd.f32 %v1976, %v2008
        %v2025 = vadd.f32 %v1977, %v2009
        %v2026 = vadd.f32 %v1978, %v2010
        %v2027 = vadd.f32 %v1979, %v2011
        %v2028 = vadd.f32 %v1980, %v2012
        %v2029 = vadd.f32 %v1981, %v2013
        %v2030 = vadd.f32 %v1982, %v2014
        %v2031 = vadd.f32 %v1983, %v2015
        %v2032 = vadd.f32 %v1984, %v2016
        %v2033 = vadd.f32 %v1985, %v2017
        %v2034 = vadd.f32 %v1986, %v2018
        %v2035 = vadd.f32 %v1987, %v2019
        %v2036 = vld [vmem:[%s1072 + $0x7] sm:$0xff]
        %v2037 = vld [vmem:[%s1072 + $0xf] sm:$0xff]
        %v2038 = vld [vmem:[%s1072 + $0x27] sm:$0xff]
        %v2039 = vld [vmem:[%s1072 + $0x2f] sm:$0xff]
        %v2040 = vld [vmem:[%s1072 + $0x47] sm:$0xff]
        %v2041 = vld [vmem:[%s1072 + $0x4f] sm:$0xff]
        %v2042 = vld [vmem:[%s1072 + $0x67] sm:$0xff]
        %v2043 = vld [vmem:[%s1072 + $0x6f] sm:$0xff]
        %v2044 = vld [vmem:[%s1072 + $0x87] sm:$0xff]
        %v2045 = vld [vmem:[%s1072 + $0x8f] sm:$0xff]
        %v2046 = vld [vmem:[%s1072 + $0xa7] sm:$0xff]
        %v2047 = vld [vmem:[%s1072 + $0xaf] sm:$0xff]
        %v2048 = vld [vmem:[%s1072 + $0xc7] sm:$0xff]
        %v2049 = vld [vmem:[%s1072 + $0xcf] sm:$0xff]
        %v2050 = vld [vmem:[%s1072 + $0xe7] sm:$0xff]
        %v2051 = vld [vmem:[%s1072 + $0xef] sm:$0xff]
        %v2052 = vmul.f32 %v2036, %v635
        %v2053 = vmul.f32 %v2037, %v635
        %v2054 = vmul.f32 %v2038, %v635
        %v2055 = vmul.f32 %v2039, %v635
        %v2056 = vmul.f32 %v2040, %v635
        %v2057 = vmul.f32 %v2041, %v635
        %v2058 = vmul.f32 %v2042, %v635
        %v2059 = vmul.f32 %v2043, %v635
        %v2060 = vmul.f32 %v2044, %v635
        %v2061 = vmul.f32 %v2045, %v635
        %v2062 = vmul.f32 %v2046, %v635
        %v2063 = vmul.f32 %v2047, %v635
        %v2064 = vmul.f32 %v2048, %v635
        %v2065 = vmul.f32 %v2049, %v635
        %v2066 = vmul.f32 %v2050, %v635
        %v2067 = vmul.f32 %v2051, %v635
        %v2068 = vadd.f32 %v2020, %v2052
        %v2069 = vadd.f32 %v2021, %v2053
        %v2070 = vadd.f32 %v2022, %v2054
        %v2071 = vadd.f32 %v2023, %v2055
        %v2072 = vadd.f32 %v2024, %v2056
        %v2073 = vadd.f32 %v2025, %v2057
        %v2074 = vadd.f32 %v2026, %v2058
        %v2075 = vadd.f32 %v2027, %v2059
        %v2076 = vadd.f32 %v2028, %v2060
        %v2077 = vadd.f32 %v2029, %v2061
        %v2078 = vadd.f32 %v2030, %v2062
        %v2079 = vadd.f32 %v2031, %v2063
        %v2080 = vadd.f32 %v2032, %v2064
        %v2081 = vadd.f32 %v2033, %v2065
        %v2082 = vadd.f32 %v2034, %v2066
        %v2083 = vadd.f32 %v2035, %v2067
        %v2084 = vld [vmem:[%s1072 + $0x8] sm:$0xff]
        %v2085 = vld [vmem:[%s1072 + $0x10] sm:$0xff]
        %v2086 = vld [vmem:[%s1072 + $0x28] sm:$0xff]
        %v2087 = vld [vmem:[%s1072 + $0x30] sm:$0xff]
        %v2088 = vld [vmem:[%s1072 + $0x48] sm:$0xff]
        %v2089 = vld [vmem:[%s1072 + $0x50] sm:$0xff]
        %v2090 = vld [vmem:[%s1072 + $0x68] sm:$0xff]
        %v2091 = vld [vmem:[%s1072 + $0x70] sm:$0xff]
        %v2092 = vld [vmem:[%s1072 + $0x88] sm:$0xff]
        %v2093 = vld [vmem:[%s1072 + $0x90] sm:$0xff]
        %v2094 = vld [vmem:[%s1072 + $0xa8] sm:$0xff]
        %v2095 = vld [vmem:[%s1072 + $0xb0] sm:$0xff]
        %v2096 = vld [vmem:[%s1072 + $0xc8] sm:$0xff]
        %v2097 = vld [vmem:[%s1072 + $0xd0] sm:$0xff]
        %v2098 = vld [vmem:[%s1072 + $0xe8] sm:$0xff]
        %v2099 = vld [vmem:[%s1072 + $0xf0] sm:$0xff]
        %v2100 = vmul.f32 %v2084, %v684
        %v2101 = vmul.f32 %v2085, %v684
        %v2102 = vmul.f32 %v2086, %v684
        %v2103 = vmul.f32 %v2087, %v684
        %v2104 = vmul.f32 %v2088, %v684
        %v2105 = vmul.f32 %v2089, %v684
        %v2106 = vmul.f32 %v2090, %v684
        %v2107 = vmul.f32 %v2091, %v684
        %v2108 = vmul.f32 %v2092, %v684
        %v2109 = vmul.f32 %v2093, %v684
        %v2110 = vmul.f32 %v2094, %v684
        %v2111 = vmul.f32 %v2095, %v684
        %v2112 = vmul.f32 %v2096, %v684
        %v2113 = vmul.f32 %v2097, %v684
        %v2114 = vmul.f32 %v2098, %v684
        %v2115 = vmul.f32 %v2099, %v684
        %v2116 = vadd.f32 %v2068, %v2100
        %v2117 = vadd.f32 %v2069, %v2101
        %v2118 = vadd.f32 %v2070, %v2102
        %v2119 = vadd.f32 %v2071, %v2103
        %v2120 = vadd.f32 %v2072, %v2104
        %v2121 = vadd.f32 %v2073, %v2105
        %v2122 = vadd.f32 %v2074, %v2106
        %v2123 = vadd.f32 %v2075, %v2107
        %v2124 = vadd.f32 %v2076, %v2108
        %v2125 = vadd.f32 %v2077, %v2109
        %v2126 = vadd.f32 %v2078, %v2110
        %v2127 = vadd.f32 %v2079, %v2111
        %v2128 = vadd.f32 %v2080, %v2112
        %v2129 = vadd.f32 %v2081, %v2113
        %v2130 = vadd.f32 %v2082, %v2114
        %v2131 = vadd.f32 %v2083, %v2115
        %v2132 = vld [vmem:[%s1072 + $0x9] sm:$0xff]
        %v2133 = vld [vmem:[%s1072 + $0x11] sm:$0xff]
        %v2134 = vld [vmem:[%s1072 + $0x29] sm:$0xff]
        %v2135 = vld [vmem:[%s1072 + $0x31] sm:$0xff]
        %v2136 = vld [vmem:[%s1072 + $0x49] sm:$0xff]
        %v2137 = vld [vmem:[%s1072 + $0x51] sm:$0xff]
        %v2138 = vld [vmem:[%s1072 + $0x69] sm:$0xff]
        %v2139 = vld [vmem:[%s1072 + $0x71] sm:$0xff]
        %v2140 = vld [vmem:[%s1072 + $0x89] sm:$0xff]
        %v2141 = vld [vmem:[%s1072 + $0x91] sm:$0xff]
        %v2142 = vld [vmem:[%s1072 + $0xa9] sm:$0xff]
        %v2143 = vld [vmem:[%s1072 + $0xb1] sm:$0xff]
        %v2144 = vld [vmem:[%s1072 + $0xc9] sm:$0xff]
        %v2145 = vld [vmem:[%s1072 + $0xd1] sm:$0xff]
        %v2146 = vld [vmem:[%s1072 + $0xe9] sm:$0xff]
        %v2147 = vld [vmem:[%s1072 + $0xf1] sm:$0xff]
        %v2148 = vmul.f32 %v2132, %v733
        %v2149 = vmul.f32 %v2133, %v733
        %v2150 = vmul.f32 %v2134, %v733
        %v2151 = vmul.f32 %v2135, %v733
        %v2152 = vmul.f32 %v2136, %v733
        %v2153 = vmul.f32 %v2137, %v733
        %v2154 = vmul.f32 %v2138, %v733
        %v2155 = vmul.f32 %v2139, %v733
        %v2156 = vmul.f32 %v2140, %v733
        %v2157 = vmul.f32 %v2141, %v733
        %v2158 = vmul.f32 %v2142, %v733
        %v2159 = vmul.f32 %v2143, %v733
        %v2160 = vmul.f32 %v2144, %v733
        %v2161 = vmul.f32 %v2145, %v733
        %v2162 = vmul.f32 %v2146, %v733
        %v2163 = vmul.f32 %v2147, %v733
        %v2164 = vadd.f32 %v2116, %v2148
        %v2165 = vadd.f32 %v2117, %v2149
        %v2166 = vadd.f32 %v2118, %v2150
        %v2167 = vadd.f32 %v2119, %v2151
        %v2168 = vadd.f32 %v2120, %v2152
        %v2169 = vadd.f32 %v2121, %v2153
        %v2170 = vadd.f32 %v2122, %v2154
        %v2171 = vadd.f32 %v2123, %v2155
        %v2172 = vadd.f32 %v2124, %v2156
        %v2173 = vadd.f32 %v2125, %v2157
        %v2174 = vadd.f32 %v2126, %v2158
        %v2175 = vadd.f32 %v2127, %v2159
        %v2176 = vadd.f32 %v2128, %v2160
        %v2177 = vadd.f32 %v2129, %v2161
        %v2178 = vadd.f32 %v2130, %v2162
        %v2179 = vadd.f32 %v2131, %v2163
        %s2180 = scalar_lea.vmem %s196, 384 [#allocation6]
        %2181 = vst [vmem:[%s2180] sm:$0xff] %v2164
        %2182 = vst [vmem:[%s2180 + $0x8] sm:$0xff] %v2165
        %2183 = vst [vmem:[%s2180 + $0x10] sm:$0xff] %v2166
        %2184 = vst [vmem:[%s2180 + $0x18] sm:$0xff] %v2167
        %2185 = vst [vmem:[%s2180 + $0x20] sm:$0xff] %v2168
        %2186 = vst [vmem:[%s2180 + $0x28] sm:$0xff] %v2169
        %2187 = vst [vmem:[%s2180 + $0x30] sm:$0xff] %v2170
        %2188 = vst [vmem:[%s2180 + $0x38] sm:$0xff] %v2171
        %2189 = vst [vmem:[%s2180 + $0x40] sm:$0xff] %v2172
        %2190 = vst [vmem:[%s2180 + $0x48] sm:$0xff] %v2173
        %2191 = vst [vmem:[%s2180 + $0x50] sm:$0xff] %v2174
        %2192 = vst [vmem:[%s2180 + $0x58] sm:$0xff] %v2175
        %2193 = vst [vmem:[%s2180 + $0x60] sm:$0xff] %v2176
        %2194 = vst [vmem:[%s2180 + $0x68] sm:$0xff] %v2177
        %2195 = vst [vmem:[%s2180 + $0x70] sm:$0xff] %v2178
        %2196 = vst [vmem:[%s2180 + $0x78] sm:$0xff] %v2179
        %s2197 = sand.u32 %s104, 1
        %s2198 = scalar_lea.sflag [#allocation5], %s2197
        %s2199 = sand.u32 %s104, 1
        %s2200 = smul.addr %s2199, 512
        %s2201 = scalar_lea.vmem [#allocation6], %s2200
        // Predicated region
        $region33: #{tpu_custom_call.1} parent=27 // pred_check
          %p2202 = pneg %p114
        $region34: #{tpu_custom_call.1} parent=27 // pred_check_branch
          %2204 = sbr.rel (%p2202) target = $region36
        $region35: #{tpu_custom_call.1} parent=27 // pred_region
          %s2205 = smul.u32 2, %s23
          %2207 = vsyncadd %s2198, 0
          %s2208 = smul.addr %s2205, 32
          %s2209 = sadd.s32 %s22, %s2208
          %s2210 = smul.addr %s24, 64
          %s2211 = sadd.s32 %s2209, %s2210
          %s2212 = smul.addr %s2211, 8
          %s2213 = scalar_lea.hbm %s2, %s2212
          %s2214 = sshll.u32 %s2201, 4
          %s2215 = int_to_ptr.vmem [resolvable:$true] %s2214
          %s2216 = sshll.u32 %s2213, 4
          %s2217 = int_to_ptr.hbm [resolvable:$true] %s2216
          %2222 = dma.vmem_to_hbm [thread:$0]  %s2215, 8192, %s2217, %s2198, 128, 128, 8
        $region36: #{tpu_custom_call.1} parent=27 // pred_fallthru
          _
      $region28: #{tpu_custom_call.1} parent=5 // pred_fallthru
        _
      %p2223 = scmp.le.s32.totalorder 2, %s12
      // Predicated region
      $region37: #{tpu_custom_call.1} parent=5 // pred_check
        %p2224 = pneg %p2223
      $region38: #{tpu_custom_call.1} parent=5 // pred_check_branch
        %2226 = sbr.rel (%p2224) target = $region40
      $region39: #{tpu_custom_call.1} parent=5 // pred_region
        %s2227 = ssub.s32 %s12, 2
        // Predicated region
        $region41: #{tpu_custom_call.1} parent=39 // pred_check
          %p2228 = pneg %p120
        $region42: #{tpu_custom_call.1} parent=39 // pred_check_branch
          %2230 = sbr.rel (%p2228) target = $region44
        $region43: #{tpu_custom_call.1} parent=39 // pred_region
          %s2231 = sand.u32 %s105, 1
          %s2232 = scalar_lea.sflag [#allocation5], %s2231
          %s2233 = sand.u32 %s105, 1
          %s2234 = smul.addr %s2233, 512
          %s2235 = scalar_lea.vmem [#allocation6], %s2234
          %2237 = dma.done %s2232, 8192
        $region44: #{tpu_custom_call.1} parent=39 // pred_fallthru
          _
      $region40: #{tpu_custom_call.1} parent=5 // pred_fallthru
        _
    $region6: #{tpu_custom_call.1} parent=1 // loop_footer
      %s16 = sadd.s32 1, %s12
    $region7: #{tpu_custom_call.1} parent=1 // loop_footer_branch
      %11 = sbr.rel target = $region3
    $region8: #{tpu_custom_call.1} parent=1 // loop_exit
      _
    %2238 = vsyncpa [#allocation4], 1
    %s2239 = scalar_lea.sflag [#allocation4], 1
    %2240 = vsyncpa %s2239, 1
    %2241 = vsyncpa [#allocation5], 1
    %s2242 = scalar_lea.sflag [#allocation5], 1
    %2243 = vsyncpa %s2242, 1

</llo_original>
